<compile_context>
chip_gen: v7x
topology: tpu7x:2x2x1
jax: 0.10.0
libtpu: 0.0.40
codegen_flags: <defaults>
</compile_context>

<pallas_src>
import jax
import jax.numpy as jnp
import numpy as np
from jax import lax
from jax.experimental import pallas as pl
from jax.experimental.pallas import tpu as pltpu


def _st_gated_attn_kernel(cur_ref, prev_ref, wgc_ref, wgp_ref, bg_ref,
                          wo_ref, bo_ref, out_ref,
                          score_cur_ref, gacc_ref, cols_ref):
    """One (batch, prev-frame) grid step of STGatedAttn for one FPN level.

    cur_ref  : [1, H+2, W+2, C]     zero-padded current-frame feature (same block
                                    for every s -> DMA'd once per batch element)
    prev_ref : [1, 1, H+2, W+2, C]  zero-padded previous-frame feature (frame s)
    wgc_ref  : [3, 3, C]            gating-conv weights acting on cur
    wgp_ref  : [3, 3, C]            gating-conv weights acting on prev
    bg_ref   : [1]  (SMEM)          gating-conv bias
    wo_ref   : [9*C, C]             conv_out weights, (kh, kw, cin) x cout
    bo_ref   : [1, C]               conv_out bias
    out_ref  : [1, H*W, C]          output block (written at the last s only)
    score_cur_ref : VMEM [H, W, 1]  cached cur half of the gating score
    gacc_ref      : VMEM [H+2, W+2, C] zero-haloed gated-feature accumulator
    cols_ref      : VMEM [H*W, 9*C] im2col staging for conv_out
    """
    s = pl.program_id(1)
    num_s = pl.num_programs(1)
    _, hp2, wp2, C = cur_ref.shape
    H, W = hp2 - 2, wp2 - 2

    prev = prev_ref[0, 0]                         # [H+2, W+2, C]
    wgp = wgp_ref[...]                            # [3, 3, C]

    # ---- init at s == 0: zero the haloed accumulator and hoist the
    #      s-invariant current-frame half of the gating conv (1 XLU reduce).
    @pl.when(s == 0)
    def _init():
        gacc_ref[...] = jnp.zeros_like(gacc_ref)
        cur_full = cur_ref[0]                     # [H+2, W+2, C]
        wgc = wgc_ref[...]
        tap_c = jnp.zeros((H, W, C), jnp.float32)
        for dy in range(3):
            for dx in range(3):
                tap_c = tap_c + cur_full[dy:dy + H, dx:dx + W, :] * \
                    wgc[dy, dx][None, None, :]
        score_cur_ref[...] = jnp.sum(tap_c, axis=-1, keepdims=True)

    # ---- per previous frame: gating conv (prev half), sigmoid, gated blend.
    #      9 taps accumulated on the VPU, then ONE cross-lane reduce.
    tap_p = jnp.zeros((H, W, C), jnp.float32)
    for dy in range(3):
        for dx in range(3):
            tap_p = tap_p + prev[dy:dy + H, dx:dx + W, :] * \
                wgp[dy, dx][None, None, :]
    score = score_cur_ref[...] + jnp.sum(tap_p, axis=-1, keepdims=True) \
        + bg_ref[0]                               # [H, W, 1]
    w = jax.nn.sigmoid(score)                     # [H, W, 1]

    cur_c = cur_ref[0, 1:1 + H, 1:1 + W, :]       # [H, W, C]
    prev_c = prev[1:1 + H, 1:1 + W, :]
    # cur*w + prev*(1-w) == prev + (cur - prev)*w  (one fewer multiply)
    gacc_ref[1:1 + H, 1:1 + W, :] += prev_c + (cur_c - prev_c) * w

    # ---- finalize at s == S1-1: conv_out as a single im2col matmul + bias.
    @pl.when(s == num_s - 1)
    def _finalize():
        taps = [(dy, dx) for dy in range(3) for dx in range(3)]
        for t, (dy, dx) in enumerate(taps):
            cols_ref[:, t * C:(t + 1) * C] = (
                gacc_ref[dy:dy + H, dx:dx + W, :].reshape(H * W, C))
        acc = jnp.dot(cols_ref[...], wo_ref[...],
                      preferred_element_type=jnp.float32)   # [H*W, C]
        out_ref[0] = (acc + bo_ref[...]).astype(out_ref.dtype)


def st_gated_attn_level(cur_nchw, prevs_nchw, wg, bg, wo, bo):
    """One FPN level of STGatedAttn.

    cur_nchw  : [B, C, H, W]       frame-0 feature (NCHW, like PyTorch)
    prevs_nchw: [S-1, B, C, H, W]  frames 1..S-1 features
    wg: [1, 2C, 3, 3], bg: [1], wo: [C, C, 3, 3], bo: [C] (PyTorch Conv2d layout)
    returns   : [B, C, H, W]
    """
    B, C, H, W = cur_nchw.shape
    S1 = prevs_nchw.shape[0]
    if S1 < 1:
        # PyTorch forward would crash for seq_len == 1 (gated_feat_all unset).
        raise ValueError("STGatedAttn requires seq_len >= 2")

    # NCHW -> NHWC + 1-pixel spatial zero pad (glue; channels end up on lanes,
    # which is the right layout for real FPN C=256).
    cur = jnp.transpose(cur_nchw, (0, 2, 3, 1)).astype(jnp.float32)
    prevs = jnp.transpose(prevs_nchw, (0, 1, 3, 4, 2)).astype(jnp.float32)
    cur_pad = jnp.pad(cur, ((0, 0), (1, 1), (1, 1), (0, 0)))
    prevs_pad = jnp.pad(prevs, ((0, 0), (0, 0), (1, 1), (1, 1), (0, 0)))

    # Gating weight split over the channel concat, moved to [kH, kW, C].
    wg_cur = jnp.transpose(wg[0, :C], (1, 2, 0)).astype(jnp.float32)    # [3,3,C]
    wg_prev = jnp.transpose(wg[0, C:], (1, 2, 0)).astype(jnp.float32)   # [3,3,C]
    # conv_out weight as one im2col matrix [(kh,kw,cin), cout] = [9C, C].
    wo_mat = jnp.transpose(wo, (2, 3, 1, 0)).reshape(9 * C, C).astype(jnp.float32)
    bg1 = bg.reshape(1).astype(jnp.float32)
    bo2 = bo.reshape(1, C).astype(jnp.float32)

    out_flat = pl.pallas_call(
        _st_gated_attn_kernel,
        out_shape=jax.ShapeDtypeStruct((B, H * W, C), jnp.float32),
        grid_spec=pltpu.PrefetchScalarGridSpec(
            num_scalar_prefetch=0,
            grid=(B, S1),                               # s = reduction axis
            in_specs=[
                # current frame: same block for every s (DMA'd once per b)
                pl.BlockSpec((1, H + 2, W + 2, C), lambda b, s: (b, 0, 0, 0)),
                # one previous frame per grid step -> pipelined across s
                pl.BlockSpec((1, 1, H + 2, W + 2, C),
                             lambda b, s: (s, b, 0, 0, 0)),
                pl.BlockSpec((3, 3, C), lambda b, s: (0, 0, 0)),
                pl.BlockSpec((3, 3, C), lambda b, s: (0, 0, 0)),
                pl.BlockSpec(memory_space=pltpu.MemorySpace.SMEM),
                pl.BlockSpec((9 * C, C), lambda b, s: (0, 0)),
                pl.BlockSpec((1, C), lambda b, s: (0, 0)),
            ],
            out_specs=pl.BlockSpec((1, H * W, C), lambda b, s: (b, 0, 0)),
            scratch_shapes=[
                pltpu.VMEM((H, W, 1), jnp.float32),          # hoisted cur score
                pltpu.VMEM((H + 2, W + 2, C), jnp.float32),  # gated accumulator
                pltpu.VMEM((H * W, 9 * C), jnp.float32),     # im2col staging
            ]),
        compiler_params=pltpu.CompilerParams(
            dimension_semantics=("parallel", "arbitrary")),
    )(cur_pad, prevs_pad, wg_cur, wg_prev, bg1, wo_mat, bo2)

    out_nhwc = out_flat.reshape(B, H, W, C)
    return jnp.transpose(out_nhwc, (0, 3, 1, 2))


def st_gated_attn_forward(img_feats_seq, params):
    """img_feats_seq: list (len seq_len) of lists (len num_levels) of NCHW arrays."""
    seq_len = len(img_feats_seq)
    num_levels = len(img_feats_seq[0])
    outs = []
    for nl in range(num_levels):
        cur = img_feats_seq[0][nl]
        prevs = jnp.stack([img_feats_seq[s][nl] for s in range(1, seq_len)], axis=0)
        wg, bg, wo, bo = params[nl]
        outs.append(st_gated_attn_level(cur, prevs, wg, bg, wo, bo))
    return outs


# ----------------------------- reference (pure JAX) -----------------------------
def _conv2d_nchw(x, w, b):
    y = lax.conv_general_dilated(
        x, w, window_strides=(1, 1), padding=((1, 1), (1, 1)),
        dimension_numbers=("NCHW", "OIHW", "NCHW"))
    return y + b.reshape(1, -1, 1, 1)


def ref_forward(img_feats_seq, params):
    seq_len = len(img_feats_seq)
    num_levels = len(img_feats_seq[0])
    outs = []
    for nl in range(num_levels):
        wg, bg, wo, bo = params[nl]
        cur = img_feats_seq[0][nl]
        gated_all = None
        for s in range(1, seq_len):
            prev = img_feats_seq[s][nl]
            w = jax.nn.sigmoid(_conv2d_nchw(jnp.concatenate([cur, prev], axis=1), wg, bg))
            gated = cur * w + prev * (1.0 - w)
            gated_all = gated if gated_all is None else gated_all + gated
        outs.append(_conv2d_nchw(gated_all, wo, bo))
    return outs


if __name__ == "__main__":
    num_channels = (4, 8)
    spatial = (16, 8)
    batch, seq_len = 2, 3

    key = jax.random.PRNGKey(0)

    # Deterministic parameter init (PyTorch Conv2d weight layout [out, in, kH, kW]).
    params = []
    for nl, c in enumerate(num_channels):
        key, k1, k2, k3, k4 = jax.random.split(key, 5)
        wg = jax.random.normal(k1, (1, 2 * c, 3, 3), jnp.float32) * 0.2
        bg = jax.random.normal(k2, (1,), jnp.float32) * 0.1
        wo = jax.random.normal(k3, (c, c, 3, 3), jnp.float32) * 0.2
        bo = jax.random.normal(k4, (c,), jnp.float32) * 0.1
        params.append((wg, bg, wo, bo))

    # Deterministic inputs: seq_len frames x num_levels levels, NCHW.
    img_feats_seq = []
    for s in range(seq_len):
        frame = []
        for nl, c in enumerate(num_channels):
            key, k = jax.random.split(key)
            frame.append(jax.random.normal(
                k, (batch, c, spatial[nl], spatial[nl]), jnp.float32))
        img_feats_seq.append(frame)

    outs = st_gated_attn_forward(img_feats_seq, params)
    outs = [jax.block_until_ready(o) for o in outs]

    refs = ref_forward(img_feats_seq, params)
    for o, r in zip(outs, refs):
        np.testing.assert_allclose(np.asarray(o), np.asarray(r), rtol=1e-4, atol=1e-4)

    print("KERNEL_OK")
</pallas_src>

<mosaic_0001>
module attributes {stable_mosaic.version = 11 : i64} {
  func.func @_st_gated_attn_kernel(%arg0: i32, %arg1: i32, %arg2: memref<1x18x18x4xf32, #tpu.memory_space<vmem>>, %arg3: memref<1x1x18x18x4xf32, #tpu.memory_space<vmem>>, %arg4: memref<3x3x4xf32, #tpu.memory_space<vmem>>, %arg5: memref<3x3x4xf32, #tpu.memory_space<vmem>>, %arg6: memref<1xf32, #tpu.memory_space<smem>>, %arg7: memref<36x4xf32, #tpu.memory_space<vmem>>, %arg8: memref<1x4xf32, #tpu.memory_space<vmem>>, %arg9: memref<1x256x4xf32, #tpu.memory_space<vmem>>, %arg10: memref<16x16x1xf32, #tpu.memory_space<vmem>>, %arg11: memref<18x18x4xf32, #tpu.memory_space<vmem>>, %arg12: memref<256x36xf32, #tpu.memory_space<vmem>>) attributes {dimension_semantics = [#tpu.dimension_semantics<parallel>, #tpu.dimension_semantics<arbitrary>], iteration_bounds = array<i64: 2, 2>, scalar_prefetch = 0 : i64, scratch_operands = 3 : i64, tpu.core_type = #tpu.core_type<tc>, window_params = [{transform_indices = @transform_0, window_bounds = array<i64: 1, 18, 18, 4>}, {transform_indices = @transform_1, window_bounds = array<i64: 1, 1, 18, 18, 4>}, {pipeline_mode = #tpu.pipeline_mode<synchronous>, transform_indices = @transform_2, window_bounds = array<i64: 3, 3, 4>}, {pipeline_mode = #tpu.pipeline_mode<synchronous>, transform_indices = @transform_3, window_bounds = array<i64: 3, 3, 4>}, {transform_indices = @transform_4, window_bounds = array<i64: 1>}, {pipeline_mode = #tpu.pipeline_mode<synchronous>, transform_indices = @transform_5, window_bounds = array<i64: 36, 4>}, {pipeline_mode = #tpu.pipeline_mode<synchronous>, transform_indices = @transform_6, window_bounds = array<i64: 1, 4>}, {transform_indices = @transform_7, window_bounds = array<i64: 1, 256, 4>}]} {
    %c0 = arith.constant 0 : index
    %c0_0 = arith.constant 0 : index
    %c0_1 = arith.constant 0 : index
    %c0_2 = arith.constant 0 : index
    %c0_3 = arith.constant 0 : index
    %0 = vector.load %arg3[%c0, %c0_0, %c0_1, %c0_2, %c0_3] : memref<1x1x18x18x4xf32, #tpu.memory_space<vmem>>, vector<1x1x18x18x4xf32>
    %1 = vector.shape_cast %0 : vector<1x1x18x18x4xf32> to vector<18x18x4xf32>
    %c0_4 = arith.constant 0 : index
    %c0_5 = arith.constant 0 : index
    %c0_6 = arith.constant 0 : index
    %2 = vector.load %arg5[%c0_4, %c0_5, %c0_6] : memref<3x3x4xf32, #tpu.memory_space<vmem>>, vector<3x3x4xf32>
    %c0_i32 = arith.constant 0 : i32
    %3 = arith.cmpi eq, %arg1, %c0_i32 : i32
    %4 = arith.extui %3 : i1 to i32
    %c0_i32_7 = arith.constant 0 : i32
    %5 = arith.cmpi ne, %4, %c0_i32_7 : i32
    scf.if %5 {
      %cst_24 = arith.constant 0.000000e+00 : f32
      %95 = vector.broadcast %cst_24 : f32 to vector<18x18x4xf32>
      %c0_25 = arith.constant 0 : index
      %c0_26 = arith.constant 0 : index
      %c0_27 = arith.constant 0 : index
      %96 = vector.load %arg11[%c0_25, %c0_26, %c0_27] : memref<18x18x4xf32, #tpu.memory_space<vmem>>, vector<18x18x4xf32>
      tpu.vector_store %arg11[%c0_25, %c0_26, %c0_27], %95 {strides = array<i32>} : memref<18x18x4xf32, #tpu.memory_space<vmem>>, vector<18x18x4xf32>,
      %c0_28 = arith.constant 0 : index
      %c0_29 = arith.constant 0 : index
      %c0_30 = arith.constant 0 : index
      %c0_31 = arith.constant 0 : index
      %97 = vector.load %arg2[%c0_28, %c0_29, %c0_30, %c0_31] : memref<1x18x18x4xf32, #tpu.memory_space<vmem>>, vector<1x18x18x4xf32>
      %98 = vector.shape_cast %97 : vector<1x18x18x4xf32> to vector<18x18x4xf32>
      %c0_32 = arith.constant 0 : index
      %c0_33 = arith.constant 0 : index
      %c0_34 = arith.constant 0 : index
      %99 = vector.load %arg4[%c0_32, %c0_33, %c0_34] : memref<3x3x4xf32, #tpu.memory_space<vmem>>, vector<3x3x4xf32>
      %cst_35 = arith.constant 0.000000e+00 : f32
      %100 = vector.broadcast %cst_35 : f32 to vector<16x16x4xf32>
      %101 = vector.extract_strided_slice %98 {offsets = [0, 0, 0], sizes = [16, 16, 4], strides = [1, 1, 1]} : vector<18x18x4xf32> to vector<16x16x4xf32>
      %102 = vector.extract_strided_slice %99 {offsets = [0, 0, 0], sizes = [1, 1, 4], strides = [1, 1, 1]} : vector<3x3x4xf32> to vector<1x1x4xf32>
      %103 = vector.shape_cast %102 : vector<1x1x4xf32> to vector<4xf32>
      %104 = vector.shape_cast %103 : vector<4xf32> to vector<1x1x4xf32>
      %105 = vector.broadcast %104 : vector<1x1x4xf32> to vector<16x16x4xf32>
      %106 = arith.mulf %101, %105 : vector<16x16x4xf32>
      %107 = arith.addf %100, %106 : vector<16x16x4xf32>
      %108 = vector.extract_strided_slice %98 {offsets = [0, 1, 0], sizes = [16, 16, 4], strides = [1, 1, 1]} : vector<18x18x4xf32> to vector<16x16x4xf32>
      %109 = vector.extract_strided_slice %99 {offsets = [0, 1, 0], sizes = [1, 1, 4], strides = [1, 1, 1]} : vector<3x3x4xf32> to vector<1x1x4xf32>
      %110 = vector.shape_cast %109 : vector<1x1x4xf32> to vector<4xf32>
      %111 = vector.shape_cast %110 : vector<4xf32> to vector<1x1x4xf32>
      %112 = vector.broadcast %111 : vector<1x1x4xf32> to vector<16x16x4xf32>
      %113 = arith.mulf %108, %112 : vector<16x16x4xf32>
      %114 = arith.addf %107, %113 : vector<16x16x4xf32>
      %115 = vector.extract_strided_slice %98 {offsets = [0, 2, 0], sizes = [16, 16, 4], strides = [1, 1, 1]} : vector<18x18x4xf32> to vector<16x16x4xf32>
      %116 = vector.extract_strided_slice %99 {offsets = [0, 2, 0], sizes = [1, 1, 4], strides = [1, 1, 1]} : vector<3x3x4xf32> to vector<1x1x4xf32>
      %117 = vector.shape_cast %116 : vector<1x1x4xf32> to vector<4xf32>
      %118 = vector.shape_cast %117 : vector<4xf32> to vector<1x1x4xf32>
      %119 = vector.broadcast %118 : vector<1x1x4xf32> to vector<16x16x4xf32>
      %120 = arith.mulf %115, %119 : vector<16x16x4xf32>
      %121 = arith.addf %114, %120 : vector<16x16x4xf32>
      %122 = vector.extract_strided_slice %98 {offsets = [1, 0, 0], sizes = [16, 16, 4], strides = [1, 1, 1]} : vector<18x18x4xf32> to vector<16x16x4xf32>
      %123 = vector.extract_strided_slice %99 {offsets = [1, 0, 0], sizes = [1, 1, 4], strides = [1, 1, 1]} : vector<3x3x4xf32> to vector<1x1x4xf32>
      %124 = vector.shape_cast %123 : vector<1x1x4xf32> to vector<4xf32>
      %125 = vector.shape_cast %124 : vector<4xf32> to vector<1x1x4xf32>
      %126 = vector.broadcast %125 : vector<1x1x4xf32> to vector<16x16x4xf32>
      %127 = arith.mulf %122, %126 : vector<16x16x4xf32>
      %128 = arith.addf %121, %127 : vector<16x16x4xf32>
      %129 = vector.extract_strided_slice %98 {offsets = [1, 1, 0], sizes = [16, 16, 4], strides = [1, 1, 1]} : vector<18x18x4xf32> to vector<16x16x4xf32>
      %130 = vector.extract_strided_slice %99 {offsets = [1, 1, 0], sizes = [1, 1, 4], strides = [1, 1, 1]} : vector<3x3x4xf32> to vector<1x1x4xf32>
      %131 = vector.shape_cast %130 : vector<1x1x4xf32> to vector<4xf32>
      %132 = vector.shape_cast %131 : vector<4xf32> to vector<1x1x4xf32>
      %133 = vector.broadcast %132 : vector<1x1x4xf32> to vector<16x16x4xf32>
      %134 = arith.mulf %129, %133 : vector<16x16x4xf32>
      %135 = arith.addf %128, %134 : vector<16x16x4xf32>
      %136 = vector.extract_strided_slice %98 {offsets = [1, 2, 0], sizes = [16, 16, 4], strides = [1, 1, 1]} : vector<18x18x4xf32> to vector<16x16x4xf32>
      %137 = vector.extract_strided_slice %99 {offsets = [1, 2, 0], sizes = [1, 1, 4], strides = [1, 1, 1]} : vector<3x3x4xf32> to vector<1x1x4xf32>
      %138 = vector.shape_cast %137 : vector<1x1x4xf32> to vector<4xf32>
      %139 = vector.shape_cast %138 : vector<4xf32> to vector<1x1x4xf32>
      %140 = vector.broadcast %139 : vector<1x1x4xf32> to vector<16x16x4xf32>
      %141 = arith.mulf %136, %140 : vector<16x16x4xf32>
      %142 = arith.addf %135, %141 : vector<16x16x4xf32>
      %143 = vector.extract_strided_slice %98 {offsets = [2, 0, 0], sizes = [16, 16, 4], strides = [1, 1, 1]} : vector<18x18x4xf32> to vector<16x16x4xf32>
      %144 = vector.extract_strided_slice %99 {offsets = [2, 0, 0], sizes = [1, 1, 4], strides = [1, 1, 1]} : vector<3x3x4xf32> to vector<1x1x4xf32>
      %145 = vector.shape_cast %144 : vector<1x1x4xf32> to vector<4xf32>
      %146 = vector.shape_cast %145 : vector<4xf32> to vector<1x1x4xf32>
      %147 = vector.broadcast %146 : vector<1x1x4xf32> to vector<16x16x4xf32>
      %148 = arith.mulf %143, %147 : vector<16x16x4xf32>
      %149 = arith.addf %142, %148 : vector<16x16x4xf32>
      %150 = vector.extract_strided_slice %98 {offsets = [2, 1, 0], sizes = [16, 16, 4], strides = [1, 1, 1]} : vector<18x18x4xf32> to vector<16x16x4xf32>
      %151 = vector.extract_strided_slice %99 {offsets = [2, 1, 0], sizes = [1, 1, 4], strides = [1, 1, 1]} : vector<3x3x4xf32> to vector<1x1x4xf32>
      %152 = vector.shape_cast %151 : vector<1x1x4xf32> to vector<4xf32>
      %153 = vector.shape_cast %152 : vector<4xf32> to vector<1x1x4xf32>
      %154 = vector.broadcast %153 : vector<1x1x4xf32> to vector<16x16x4xf32>
      %155 = arith.mulf %150, %154 : vector<16x16x4xf32>
      %156 = arith.addf %149, %155 : vector<16x16x4xf32>
      %157 = vector.extract_strided_slice %98 {offsets = [2, 2, 0], sizes = [16, 16, 4], strides = [1, 1, 1]} : vector<18x18x4xf32> to vector<16x16x4xf32>
      %158 = vector.extract_strided_slice %99 {offsets = [2, 2, 0], sizes = [1, 1, 4], strides = [1, 1, 1]} : vector<3x3x4xf32> to vector<1x1x4xf32>
      %159 = vector.shape_cast %158 : vector<1x1x4xf32> to vector<4xf32>
      %160 = vector.shape_cast %159 : vector<4xf32> to vector<1x1x4xf32>
      %161 = vector.broadcast %160 : vector<1x1x4xf32> to vector<16x16x4xf32>
      %162 = arith.mulf %157, %161 : vector<16x16x4xf32>
      %163 = arith.addf %156, %162 : vector<16x16x4xf32>
      %cst_36 = arith.constant dense<0.000000e+00> : vector<16x16xf32>
      %164 = vector.multi_reduction <add>, %163, %cst_36 [2] : vector<16x16x4xf32> to vector<16x16xf32>
      %165 = vector.shape_cast %164 : vector<16x16xf32> to vector<16x16x1xf32>
      %c0_37 = arith.constant 0 : index
      %c0_38 = arith.constant 0 : index
      %c0_39 = arith.constant 0 : index
      %166 = vector.load %arg10[%c0_37, %c0_38, %c0_39] : memref<16x16x1xf32, #tpu.memory_space<vmem>>, vector<16x16x1xf32>
      tpu.vector_store %arg10[%c0_37, %c0_38, %c0_39], %165 {strides = array<i32>} : memref<16x16x1xf32, #tpu.memory_space<vmem>>, vector<16x16x1xf32>,
    } else {
    }
    %cst = arith.constant 0.000000e+00 : f32
    %6 = vector.broadcast %cst : f32 to vector<16x16x4xf32>
    %7 = vector.extract_strided_slice %1 {offsets = [0, 0, 0], sizes = [16, 16, 4], strides = [1, 1, 1]} : vector<18x18x4xf32> to vector<16x16x4xf32>
    %8 = vector.extract_strided_slice %2 {offsets = [0, 0, 0], sizes = [1, 1, 4], strides = [1, 1, 1]} : vector<3x3x4xf32> to vector<1x1x4xf32>
    %9 = vector.shape_cast %8 : vector<1x1x4xf32> to vector<4xf32>
    %10 = vector.shape_cast %9 : vector<4xf32> to vector<1x1x4xf32>
    %11 = vector.broadcast %10 : vector<1x1x4xf32> to vector<16x16x4xf32>
    %12 = arith.mulf %7, %11 : vector<16x16x4xf32>
    %13 = arith.addf %6, %12 : vector<16x16x4xf32>
    %14 = vector.extract_strided_slice %1 {offsets = [0, 1, 0], sizes = [16, 16, 4], strides = [1, 1, 1]} : vector<18x18x4xf32> to vector<16x16x4xf32>
    %15 = vector.extract_strided_slice %2 {offsets = [0, 1, 0], sizes = [1, 1, 4], strides = [1, 1, 1]} : vector<3x3x4xf32> to vector<1x1x4xf32>
    %16 = vector.shape_cast %15 : vector<1x1x4xf32> to vector<4xf32>
    %17 = vector.shape_cast %16 : vector<4xf32> to vector<1x1x4xf32>
    %18 = vector.broadcast %17 : vector<1x1x4xf32> to vector<16x16x4xf32>
    %19 = arith.mulf %14, %18 : vector<16x16x4xf32>
    %20 = arith.addf %13, %19 : vector<16x16x4xf32>
    %21 = vector.extract_strided_slice %1 {offsets = [0, 2, 0], sizes = [16, 16, 4], strides = [1, 1, 1]} : vector<18x18x4xf32> to vector<16x16x4xf32>
    %22 = vector.extract_strided_slice %2 {offsets = [0, 2, 0], sizes = [1, 1, 4], strides = [1, 1, 1]} : vector<3x3x4xf32> to vector<1x1x4xf32>
    %23 = vector.shape_cast %22 : vector<1x1x4xf32> to vector<4xf32>
    %24 = vector.shape_cast %23 : vector<4xf32> to vector<1x1x4xf32>
    %25 = vector.broadcast %24 : vector<1x1x4xf32> to vector<16x16x4xf32>
    %26 = arith.mulf %21, %25 : vector<16x16x4xf32>
    %27 = arith.addf %20, %26 : vector<16x16x4xf32>
    %28 = vector.extract_strided_slice %1 {offsets = [1, 0, 0], sizes = [16, 16, 4], strides = [1, 1, 1]} : vector<18x18x4xf32> to vector<16x16x4xf32>
    %29 = vector.extract_strided_slice %2 {offsets = [1, 0, 0], sizes = [1, 1, 4], strides = [1, 1, 1]} : vector<3x3x4xf32> to vector<1x1x4xf32>
    %30 = vector.shape_cast %29 : vector<1x1x4xf32> to vector<4xf32>
    %31 = vector.shape_cast %30 : vector<4xf32> to vector<1x1x4xf32>
    %32 = vector.broadcast %31 : vector<1x1x4xf32> to vector<16x16x4xf32>
    %33 = arith.mulf %28, %32 : vector<16x16x4xf32>
    %34 = arith.addf %27, %33 : vector<16x16x4xf32>
    %35 = vector.extract_strided_slice %1 {offsets = [1, 1, 0], sizes = [16, 16, 4], strides = [1, 1, 1]} : vector<18x18x4xf32> to vector<16x16x4xf32>
    %36 = vector.extract_strided_slice %2 {offsets = [1, 1, 0], sizes = [1, 1, 4], strides = [1, 1, 1]} : vector<3x3x4xf32> to vector<1x1x4xf32>
    %37 = vector.shape_cast %36 : vector<1x1x4xf32> to vector<4xf32>
    %38 = vector.shape_cast %37 : vector<4xf32> to vector<1x1x4xf32>
    %39 = vector.broadcast %38 : vector<1x1x4xf32> to vector<16x16x4xf32>
    %40 = arith.mulf %35, %39 : vector<16x16x4xf32>
    %41 = arith.addf %34, %40 : vector<16x16x4xf32>
    %42 = vector.extract_strided_slice %1 {offsets = [1, 2, 0], sizes = [16, 16, 4], strides = [1, 1, 1]} : vector<18x18x4xf32> to vector<16x16x4xf32>
    %43 = vector.extract_strided_slice %2 {offsets = [1, 2, 0], sizes = [1, 1, 4], strides = [1, 1, 1]} : vector<3x3x4xf32> to vector<1x1x4xf32>
    %44 = vector.shape_cast %43 : vector<1x1x4xf32> to vector<4xf32>
    %45 = vector.shape_cast %44 : vector<4xf32> to vector<1x1x4xf32>
    %46 = vector.broadcast %45 : vector<1x1x4xf32> to vector<16x16x4xf32>
    %47 = arith.mulf %42, %46 : vector<16x16x4xf32>
    %48 = arith.addf %41, %47 : vector<16x16x4xf32>
    %49 = vector.extract_strided_slice %1 {offsets = [2, 0, 0], sizes = [16, 16, 4], strides = [1, 1, 1]} : vector<18x18x4xf32> to vector<16x16x4xf32>
    %50 = vector.extract_strided_slice %2 {offsets = [2, 0, 0], sizes = [1, 1, 4], strides = [1, 1, 1]} : vector<3x3x4xf32> to vector<1x1x4xf32>
    %51 = vector.shape_cast %50 : vector<1x1x4xf32> to vector<4xf32>
    %52 = vector.shape_cast %51 : vector<4xf32> to vector<1x1x4xf32>
    %53 = vector.broadcast %52 : vector<1x1x4xf32> to vector<16x16x4xf32>
    %54 = arith.mulf %49, %53 : vector<16x16x4xf32>
    %55 = arith.addf %48, %54 : vector<16x16x4xf32>
    %56 = vector.extract_strided_slice %1 {offsets = [2, 1, 0], sizes = [16, 16, 4], strides = [1, 1, 1]} : vector<18x18x4xf32> to vector<16x16x4xf32>
    %57 = vector.extract_strided_slice %2 {offsets = [2, 1, 0], sizes = [1, 1, 4], strides = [1, 1, 1]} : vector<3x3x4xf32> to vector<1x1x4xf32>
    %58 = vector.shape_cast %57 : vector<1x1x4xf32> to vector<4xf32>
    %59 = vector.shape_cast %58 : vector<4xf32> to vector<1x1x4xf32>
    %60 = vector.broadcast %59 : vector<1x1x4xf32> to vector<16x16x4xf32>
    %61 = arith.mulf %56, %60 : vector<16x16x4xf32>
    %62 = arith.addf %55, %61 : vector<16x16x4xf32>
    %63 = vector.extract_strided_slice %1 {offsets = [2, 2, 0], sizes = [16, 16, 4], strides = [1, 1, 1]} : vector<18x18x4xf32> to vector<16x16x4xf32>
    %64 = vector.extract_strided_slice %2 {offsets = [2, 2, 0], sizes = [1, 1, 4], strides = [1, 1, 1]} : vector<3x3x4xf32> to vector<1x1x4xf32>
    %65 = vector.shape_cast %64 : vector<1x1x4xf32> to vector<4xf32>
    %66 = vector.shape_cast %65 : vector<4xf32> to vector<1x1x4xf32>
    %67 = vector.broadcast %66 : vector<1x1x4xf32> to vector<16x16x4xf32>
    %68 = arith.mulf %63, %67 : vector<16x16x4xf32>
    %69 = arith.addf %62, %68 : vector<16x16x4xf32>
    %c0_8 = arith.constant 0 : index
    %c0_9 = arith.constant 0 : index
    %c0_10 = arith.constant 0 : index
    %70 = vector.load %arg10[%c0_8, %c0_9, %c0_10] : memref<16x16x1xf32, #tpu.memory_space<vmem>>, vector<16x16x1xf32>
    %cst_11 = arith.constant dense<0.000000e+00> : vector<16x16xf32>
    %71 = vector.multi_reduction <add>, %69, %cst_11 [2] : vector<16x16x4xf32> to vector<16x16xf32>
    %72 = vector.shape_cast %71 : vector<16x16xf32> to vector<16x16x1xf32>
    %73 = arith.addf %70, %72 : vector<16x16x1xf32>
    %c0_12 = arith.constant 0 : index
    %74 = memref.load %arg6[%c0_12] : memref<1xf32, #tpu.memory_space<smem>>
    %75 = vector.broadcast %74 : f32 to vector<16x16x1xf32>
    %76 = arith.addf %73, %75 : vector<16x16x1xf32>
    %77 = arith.negf %76 : vector<16x16x1xf32>
    %78 = math.exp %77 : vector<16x16x1xf32>
    %cst_13 = arith.constant 1.000000e+00 : f32
    %79 = vector.broadcast %cst_13 : f32 to vector<16x16x1xf32>
    %80 = arith.addf %79, %78 : vector<16x16x1xf32>
    %81 = arith.divf %79, %80 : vector<16x16x1xf32>
    %c0_14 = arith.constant 0 : index
    %c1 = arith.constant 1 : index
    %c1_15 = arith.constant 1 : index
    %c0_16 = arith.constant 0 : index
    %82 = vector.load %arg2[%c0_14, %c1, %c1_15, %c0_16] : memref<1x18x18x4xf32, #tpu.memory_space<vmem>>, vector<1x16x16x4xf32>
    %83 = vector.shape_cast %82 : vector<1x16x16x4xf32> to vector<16x16x4xf32>
    %84 = vector.extract_strided_slice %1 {offsets = [1, 1, 0], sizes = [16, 16, 4], strides = [1, 1, 1]} : vector<18x18x4xf32> to vector<16x16x4xf32>
    %c1_17 = arith.constant 1 : index
    %c1_18 = arith.constant 1 : index
    %c0_19 = arith.constant 0 : index
    %85 = vector.load %arg11[%c1_17, %c1_18, %c0_19] : memref<18x18x4xf32, #tpu.memory_space<vmem>>, vector<16x16x4xf32>
    %86 = arith.subf %83, %84 : vector<16x16x4xf32>
    %87 = vector.broadcast %81 : vector<16x16x1xf32> to vector<16x16x4xf32>
    %88 = arith.mulf %86, %87 : vector<16x16x4xf32>
    %89 = arith.addf %84, %88 : vector<16x16x4xf32>
    %90 = arith.addf %85, %89 : vector<16x16x4xf32>
    %c1_20 = arith.constant 1 : index
    %c1_21 = arith.constant 1 : index
    %c0_22 = arith.constant 0 : index
    %91 = vector.load %arg11[%c1_20, %c1_21, %c0_22] : memref<18x18x4xf32, #tpu.memory_space<vmem>>, vector<16x16x4xf32>
    tpu.vector_store %arg11[%c1_20, %c1_21, %c0_22], %90 {strides = array<i32>} : memref<18x18x4xf32, #tpu.memory_space<vmem>>, vector<16x16x4xf32>,
    %c1_i32 = arith.constant 1 : i32
    %92 = arith.cmpi eq, %arg1, %c1_i32 : i32
    %93 = arith.extui %92 : i1 to i32
    %c0_i32_23 = arith.constant 0 : i32
    %94 = arith.cmpi ne, %93, %c0_i32_23 : i32
    scf.if %94 {
      %c0_24 = arith.constant 0 : index
      %c0_25 = arith.constant 0 : index
      %c0_26 = arith.constant 0 : index
      %95 = vector.load %arg11[%c0_24, %c0_25, %c0_26] : memref<18x18x4xf32, #tpu.memory_space<vmem>>, vector<16x16x4xf32>
      %96 = vector.shape_cast %95 : vector<16x16x4xf32> to vector<256x4xf32>
      %c0_27 = arith.constant 0 : index
      %c0_28 = arith.constant 0 : index
      %97 = vector.load %arg12[%c0_27, %c0_28] : memref<256x36xf32, #tpu.memory_space<vmem>>, vector<256x4xf32>
      tpu.vector_store %arg12[%c0_27, %c0_28], %96 {strides = array<i32>} : memref<256x36xf32, #tpu.memory_space<vmem>>, vector<256x4xf32>,
      %c0_29 = arith.constant 0 : index
      %c1_30 = arith.constant 1 : index
      %c0_31 = arith.constant 0 : index
      %98 = vector.load %arg11[%c0_29, %c1_30, %c0_31] : memref<18x18x4xf32, #tpu.memory_space<vmem>>, vector<16x16x4xf32>
      %99 = vector.shape_cast %98 : vector<16x16x4xf32> to vector<256x4xf32>
      %c0_32 = arith.constant 0 : index
      %c4 = arith.constant 4 : index
      %100 = vector.load %arg12[%c0_32, %c4] : memref<256x36xf32, #tpu.memory_space<vmem>>, vector<256x4xf32>
      tpu.vector_store %arg12[%c0_32, %c4], %99 {strides = array<i32>} : memref<256x36xf32, #tpu.memory_space<vmem>>, vector<256x4xf32>,
      %c0_33 = arith.constant 0 : index
      %c2 = arith.constant 2 : index
      %c0_34 = arith.constant 0 : index
      %101 = vector.load %arg11[%c0_33, %c2, %c0_34] : memref<18x18x4xf32, #tpu.memory_space<vmem>>, vector<16x16x4xf32>
      %102 = vector.shape_cast %101 : vector<16x16x4xf32> to vector<256x4xf32>
      %c0_35 = arith.constant 0 : index
      %c8 = arith.constant 8 : index
      %103 = vector.load %arg12[%c0_35, %c8] : memref<256x36xf32, #tpu.memory_space<vmem>>, vector<256x4xf32>
      tpu.vector_store %arg12[%c0_35, %c8], %102 {strides = array<i32>} : memref<256x36xf32, #tpu.memory_space<vmem>>, vector<256x4xf32>,
      %c1_36 = arith.constant 1 : index
      %c0_37 = arith.constant 0 : index
      %c0_38 = arith.constant 0 : index
      %104 = vector.load %arg11[%c1_36, %c0_37, %c0_38] : memref<18x18x4xf32, #tpu.memory_space<vmem>>, vector<16x16x4xf32>
      %105 = vector.shape_cast %104 : vector<16x16x4xf32> to vector<256x4xf32>
      %c0_39 = arith.constant 0 : index
      %c12 = arith.constant 12 : index
      %106 = vector.load %arg12[%c0_39, %c12] : memref<256x36xf32, #tpu.memory_space<vmem>>, vector<256x4xf32>
      tpu.vector_store %arg12[%c0_39, %c12], %105 {strides = array<i32>} : memref<256x36xf32, #tpu.memory_space<vmem>>, vector<256x4xf32>,
      %c1_40 = arith.constant 1 : index
      %c1_41 = arith.constant 1 : index
      %c0_42 = arith.constant 0 : index
      %107 = vector.load %arg11[%c1_40, %c1_41, %c0_42] : memref<18x18x4xf32, #tpu.memory_space<vmem>>, vector<16x16x4xf32>
      %108 = vector.shape_cast %107 : vector<16x16x4xf32> to vector<256x4xf32>
      %c0_43 = arith.constant 0 : index
      %c16 = arith.constant 16 : index
      %109 = vector.load %arg12[%c0_43, %c16] : memref<256x36xf32, #tpu.memory_space<vmem>>, vector<256x4xf32>
      tpu.vector_store %arg12[%c0_43, %c16], %108 {strides = array<i32>} : memref<256x36xf32, #tpu.memory_space<vmem>>, vector<256x4xf32>,
      %c1_44 = arith.constant 1 : index
      %c2_45 = arith.constant 2 : index
      %c0_46 = arith.constant 0 : index
      %110 = vector.load %arg11[%c1_44, %c2_45, %c0_46] : memref<18x18x4xf32, #tpu.memory_space<vmem>>, vector<16x16x4xf32>
      %111 = vector.shape_cast %110 : vector<16x16x4xf32> to vector<256x4xf32>
      %c0_47 = arith.constant 0 : index
      %c20 = arith.constant 20 : index
      %112 = vector.load %arg12[%c0_47, %c20] : memref<256x36xf32, #tpu.memory_space<vmem>>, vector<256x4xf32>
      tpu.vector_store %arg12[%c0_47, %c20], %111 {strides = array<i32>} : memref<256x36xf32, #tpu.memory_space<vmem>>, vector<256x4xf32>,
      %c2_48 = arith.constant 2 : index
      %c0_49 = arith.constant 0 : index
      %c0_50 = arith.constant 0 : index
      %113 = vector.load %arg11[%c2_48, %c0_49, %c0_50] : memref<18x18x4xf32, #tpu.memory_space<vmem>>, vector<16x16x4xf32>
      %114 = vector.shape_cast %113 : vector<16x16x4xf32> to vector<256x4xf32>
      %c0_51 = arith.constant 0 : index
      %c24 = arith.constant 24 : index
      %115 = vector.load %arg12[%c0_51, %c24] : memref<256x36xf32, #tpu.memory_space<vmem>>, vector<256x4xf32>
      tpu.vector_store %arg12[%c0_51, %c24], %114 {strides = array<i32>} : memref<256x36xf32, #tpu.memory_space<vmem>>, vector<256x4xf32>,
      %c2_52 = arith.constant 2 : index
      %c1_53 = arith.constant 1 : index
      %c0_54 = arith.constant 0 : index
      %116 = vector.load %arg11[%c2_52, %c1_53, %c0_54] : memref<18x18x4xf32, #tpu.memory_space<vmem>>, vector<16x16x4xf32>
      %117 = vector.shape_cast %116 : vector<16x16x4xf32> to vector<256x4xf32>
      %c0_55 = arith.constant 0 : index
      %c28 = arith.constant 28 : index
      %118 = vector.load %arg12[%c0_55, %c28] : memref<256x36xf32, #tpu.memory_space<vmem>>, vector<256x4xf32>
      tpu.vector_store %arg12[%c0_55, %c28], %117 {strides = array<i32>} : memref<256x36xf32, #tpu.memory_space<vmem>>, vector<256x4xf32>,
      %c2_56 = arith.constant 2 : index
      %c2_57 = arith.constant 2 : index
      %c0_58 = arith.constant 0 : index
      %119 = vector.load %arg11[%c2_56, %c2_57, %c0_58] : memref<18x18x4xf32, #tpu.memory_space<vmem>>, vector<16x16x4xf32>
      %120 = vector.shape_cast %119 : vector<16x16x4xf32> to vector<256x4xf32>
      %c0_59 = arith.constant 0 : index
      %c32 = arith.constant 32 : index
      %121 = vector.load %arg12[%c0_59, %c32] : memref<256x36xf32, #tpu.memory_space<vmem>>, vector<256x4xf32>
      tpu.vector_store %arg12[%c0_59, %c32], %120 {strides = array<i32>} : memref<256x36xf32, #tpu.memory_space<vmem>>, vector<256x4xf32>,
      %c0_60 = arith.constant 0 : index
      %c0_61 = arith.constant 0 : index
      %122 = vector.load %arg12[%c0_60, %c0_61] : memref<256x36xf32, #tpu.memory_space<vmem>>, vector<256x36xf32>
      %c0_62 = arith.constant 0 : index
      %c0_63 = arith.constant 0 : index
      %123 = vector.load %arg7[%c0_62, %c0_63] : memref<36x4xf32, #tpu.memory_space<vmem>>, vector<36x4xf32>
      %cst_64 = arith.constant dense<0.000000e+00> : vector<256x4xf32>
      %124 = tpu.matmul %122, %123, %cst_64 {dimension_numbers = #tpu.dot_dimension_numbers<[1], [0], [0], [1], [0, 0, 1, 1], [], []>} : vector<256x36xf32>, vector<36x4xf32>, vector<256x4xf32> -> vector<256x4xf32>
      %c0_65 = arith.constant 0 : index
      %c0_66 = arith.constant 0 : index
      %125 = vector.load %arg8[%c0_65, %c0_66] : memref<1x4xf32, #tpu.memory_space<vmem>>, vector<1x4xf32>
      %126 = vector.broadcast %125 : vector<1x4xf32> to vector<256x4xf32>
      %127 = arith.addf %124, %126 : vector<256x4xf32>
      %c0_67 = arith.constant 0 : index
      %c0_68 = arith.constant 0 : index
      %c0_69 = arith.constant 0 : index
      %128 = vector.load %arg9[%c0_67, %c0_68, %c0_69] : memref<1x256x4xf32, #tpu.memory_space<vmem>>, vector<1x256x4xf32>
      %129 = vector.shape_cast %128 : vector<1x256x4xf32> to vector<256x4xf32>
      %130 = vector.shape_cast %127 : vector<256x4xf32> to vector<1x256x4xf32>
      tpu.vector_store %arg9[%c0_67, %c0_68, %c0_69], %130 {strides = array<i32>} : memref<1x256x4xf32, #tpu.memory_space<vmem>>, vector<1x256x4xf32>,
    } else {
    }
    return
  }
  func.func @transform_0(%arg0: i32, %arg1: i32) -> (i32, i32, i32, i32) {
    %c0_i32 = arith.constant 0 : i32
    %c0_i32_0 = arith.constant 0 : i32
    %c0_i32_1 = arith.constant 0 : i32
    %c0_i32_2 = arith.constant 0 : i32
    return %arg0, %c0_i32, %c0_i32_0, %c0_i32_1 : i32, i32, i32, i32
  }
  func.func @transform_1(%arg0: i32, %arg1: i32) -> (i32, i32, i32, i32, i32) {
    %c0_i32 = arith.constant 0 : i32
    %c0_i32_0 = arith.constant 0 : i32
    %c0_i32_1 = arith.constant 0 : i32
    %c0_i32_2 = arith.constant 0 : i32
    return %arg1, %arg0, %c0_i32, %c0_i32_0, %c0_i32_1 : i32, i32, i32, i32, i32
  }
  func.func @transform_2(%arg0: i32, %arg1: i32) -> (i32, i32, i32) {
    %c0_i32 = arith.constant 0 : i32
    %c0_i32_0 = arith.constant 0 : i32
    %c0_i32_1 = arith.constant 0 : i32
    %c0_i32_2 = arith.constant 0 : i32
    return %c0_i32, %c0_i32_0, %c0_i32_1 : i32, i32, i32
  }
  func.func @transform_3(%arg0: i32, %arg1: i32) -> (i32, i32, i32) {
    %c0_i32 = arith.constant 0 : i32
    %c0_i32_0 = arith.constant 0 : i32
    %c0_i32_1 = arith.constant 0 : i32
    %c0_i32_2 = arith.constant 0 : i32
    return %c0_i32, %c0_i32_0, %c0_i32_1 : i32, i32, i32
  }
  func.func @transform_4(%arg0: i32, %arg1: i32) -> i32 {
    %c0_i32 = arith.constant 0 : i32
    %c0_i32_0 = arith.constant 0 : i32
    return %c0_i32 : i32
  }
  func.func @transform_5(%arg0: i32, %arg1: i32) -> (i32, i32) {
    %c0_i32 = arith.constant 0 : i32
    %c0_i32_0 = arith.constant 0 : i32
    %c0_i32_1 = arith.constant 0 : i32
    return %c0_i32, %c0_i32_0 : i32, i32
  }
  func.func @transform_6(%arg0: i32, %arg1: i32) -> (i32, i32) {
    %c0_i32 = arith.constant 0 : i32
    %c0_i32_0 = arith.constant 0 : i32
    %c0_i32_1 = arith.constant 0 : i32
    return %c0_i32, %c0_i32_0 : i32, i32
  }
  func.func @transform_7(%arg0: i32, %arg1: i32) -> (i32, i32, i32) {
    %c0_i32 = arith.constant 0 : i32
    %c0_i32_0 = arith.constant 0 : i32
    %c0_i32_1 = arith.constant 0 : i32
    return %arg0, %c0_i32, %c0_i32_0 : i32, i32, i32
  }
}

</mosaic_0001>

<llo_original>
// kernel: tpu_custom_call.1
$region0: #{tpu_custom_call.1}
  #allocation0 [shape = 'u32[]', space=smem, size = 0x4, offset = 0x4, fixed_abs, tag = 'smem constant byte address 0x4 - core index']
  #allocation1 [shape = 'u32[144,128]{1,0:T(1,128)}', space=vmem, size = 0x12000, scoped, tag = 'internal scratch']
  #allocation2 [shape = 'f32[16,16,1]{2,1,0:T(8,128)}', space=vmem, size = 0x20000, scoped, tag = 'scratch operand']
  #allocation3 [shape = 'f32[18,18,4]{2,1,0:T(8,128)}', space=vmem, size = 0x36000, scoped, tag = 'scratch operand']
  #allocation4 [shape = 'f32[256,36]{1,0:T(8,128)}', space=vmem, size = 0x20000, scoped, tag = 'scratch operand']
  #allocation5 [shape = 'f32[1]{0:T(128)S(6)}', space=smem, size = 0x200, scoped, tag = 'scoped memory for tpu_custom_call.1']
  %s0 = inlined_call_operand.vmem [shape: f32[2,18,18,4], index: 0, kind: input, shape index: {}]
  %s1 = inlined_call_operand.vmem [shape: f32[2,2,18,18,4], index: 1, kind: input, shape index: {}]
  %s2 = inlined_call_operand.vmem [shape: f32[3,3,4], index: 2, kind: input, shape index: {}]
  %s3 = inlined_call_operand.vmem [shape: f32[3,3,4], index: 3, kind: input, shape index: {}]
  %s4 = inlined_call_operand.<no memory space> [shape: f32[1], index: 4, kind: input, shape index: {}]
  %s5 = inlined_call_operand.vmem [shape: f32[36,4], index: 5, kind: input, shape index: {}]
  %s6 = inlined_call_operand.vmem [shape: f32[1,4], index: 6, kind: input, shape index: {}]
  %s7 = inlined_call_operand.vmem [shape: f32[2,256,4], index: 7, kind: output, shape index: {}]
  %s8 = sld [smem:[#allocation0]]
  $region69: #{tpu_custom_call.1} parent=0
    _
  %s10 = ssub.s32 1, %s8
  %s11 = scalar_select 0, %s10, %s8
  %12 = sst [smem:[#allocation5]] %s4
  loop: start=0, step=1, limit=6
  $region2: #{tpu_custom_call.1} parent=0 // loop_pre_header
    _
  $region3: #{tpu_custom_call.1} parent=0 // loop_header
    %s14 = sphi 0, %s18
    %p15 = scmp.ge.s32.totalorder %s14, 6
    %s21 = sphi 0, %s33
    %s22 = sphi 0, %s29
    %s23 = sphi 0, %s21
    %s24 = sphi 0, %s22
    %s25 = sphi 0, %s23
    %s26 = sphi 0, %s24
    %s36 = sphi 0, %s38
    %s39 = sphi 0, %s36
    %s40 = sphi 0, %s39
    %s56 = sphi 0, %s40
    %s64 = sphi 0, %s66
    %s67 = sphi 0, %s64
    %s68 = sphi 0, %s67
    %s84 = sphi 0, %s68
    %s88 = sphi 0, %s88
    %s90 = sphi 0, %s88
    %s91 = sphi 0, %s90
    %s105 = sphi 0, %s91
    %s109 = sphi 0, %s109
    %s111 = sphi 0, %s109
    %s112 = sphi 0, %s111
    %s126 = sphi 0, %s112
    %s130 = sphi 0, %s130
    %s132 = sphi 0, %s130
    %s133 = sphi 0, %s132
    %s147 = sphi 0, %s133
    %s151 = sphi 0, %s151
    %s153 = sphi 0, %s151
    %s154 = sphi 0, %s153
    %s168 = sphi 0, %s154
    %s172 = sphi 0, %s172
    %s174 = sphi 0, %s172
    %s175 = sphi 0, %s174
    %s189 = sphi 0, %s175
    %s195 = sphi 0, %s197
    %s198 = sphi 0, %s195
    %s199 = sphi 0, %s198
    %s215 = sphi 0, %s199
  $region4: #{tpu_custom_call.1} parent=0 // loop_header_branch
    %17 = sbr.rel (%p15) target = $region8
  $region5: #{tpu_custom_call.1} parent=0 // loop_body
    %s19 = ssub.s32 %s14, 1
    %s20 = ssub.s32 %s14, 2
    %s27 = sadd.s32 1, %s22
    %p28 = scmp.ge.s32.totalorder %s27, 2
    %s29 = scalar_select %p28, 0, %s27
    %s30 = sadd.s32 1, %s21
    %s31 = scalar_select %p28, %s30, %s21
    %p32 = scmp.ge.s32.totalorder %s31, 2
    %s33 = scalar_select %p32, 0, %s31
    %s34 = ssub.s32 %s21, %s33
    %p35 = scmp.eq.s32.totalorder %s34, 0
    %s37 = sadd.s32 %s36, 1
    %s38 = scalar_select %p35, %s36, %s37
    %p41 = pneg %p35
    %p42 = scmp.eq.s32.totalorder %s14, 3
    %p43 = por %p41, %p42
    %p44 = scmp.ne.s32.totalorder %s36, %s39
    %p45 = scmp.eq.s32.totalorder %s14, 0
    %p46 = por %p44, %p45
    %p47 = scmp.ne.s32.totalorder %s36, %s39
    %p48 = scmp.eq.s32.totalorder %s19, 3
    %p49 = por %p47, %p48
    %p50 = scmp.ne.s32.totalorder %s39, %s40
    %p51 = scmp.eq.s32.totalorder %s19, 0
    %p52 = por %p50, %p51
    %p53 = scmp.ne.s32.totalorder %s39, %s40
    %p54 = scmp.eq.s32.totalorder %s20, 3
    %p55 = por %p53, %p54
    %p57 = scmp.ne.s32.totalorder %s40, %s56
    %p58 = scmp.eq.s32.totalorder %s20, 0
    %p59 = por %p57, %p58
    %s60 = ssub.s32 %s22, %s29
    %s61 = ssub.s32 %s21, %s33
    %s62 = sor.u32 %s60, %s61
    %p63 = scmp.eq.s32.totalorder %s62, 0
    %s65 = sadd.s32 %s64, 1
    %s66 = scalar_select %p63, %s64, %s65
    %p69 = pneg %p63
    %p70 = scmp.eq.s32.totalorder %s14, 3
    %p71 = por %p69, %p70
    %p72 = scmp.ne.s32.totalorder %s64, %s67
    %p73 = scmp.eq.s32.totalorder %s14, 0
    %p74 = por %p72, %p73
    %p75 = scmp.ne.s32.totalorder %s64, %s67
    %p76 = scmp.eq.s32.totalorder %s19, 3
    %p77 = por %p75, %p76
    %p78 = scmp.ne.s32.totalorder %s67, %s68
    %p79 = scmp.eq.s32.totalorder %s19, 0
    %p80 = por %p78, %p79
    %p81 = scmp.ne.s32.totalorder %s67, %s68
    %p82 = scmp.eq.s32.totalorder %s20, 3
    %p83 = por %p81, %p82
    %p85 = scmp.ne.s32.totalorder %s68, %s84
    %p86 = scmp.eq.s32.totalorder %s20, 0
    %p87 = por %p85, %p86
    %s89 = sadd.s32 %s88, 1
    %p92 = scmp.eq.s32.totalorder %s14, 3
    %p93 = scmp.ne.s32.totalorder %s88, %s90
    %p94 = scmp.eq.s32.totalorder %s14, 0
    %p95 = por %p93, %p94
    %p96 = scmp.ne.s32.totalorder %s88, %s90
    %p97 = scmp.eq.s32.totalorder %s19, 3
    %p98 = por %p96, %p97
    %p99 = scmp.ne.s32.totalorder %s90, %s91
    %p100 = scmp.eq.s32.totalorder %s19, 0
    %p101 = por %p99, %p100
    %p102 = scmp.ne.s32.totalorder %s90, %s91
    %p103 = scmp.eq.s32.totalorder %s20, 3
    %p104 = por %p102, %p103
    %p106 = scmp.ne.s32.totalorder %s91, %s105
    %p107 = scmp.eq.s32.totalorder %s20, 0
    %p108 = por %p106, %p107
    %s110 = sadd.s32 %s109, 1
    %p113 = scmp.eq.s32.totalorder %s14, 3
    %p114 = scmp.ne.s32.totalorder %s109, %s111
    %p115 = scmp.eq.s32.totalorder %s14, 0
    %p116 = por %p114, %p115
    %p117 = scmp.ne.s32.totalorder %s109, %s111
    %p118 = scmp.eq.s32.totalorder %s19, 3
    %p119 = por %p117, %p118
    %p120 = scmp.ne.s32.totalorder %s111, %s112
    %p121 = scmp.eq.s32.totalorder %s19, 0
    %p122 = por %p120, %p121
    %p123 = scmp.ne.s32.totalorder %s111, %s112
    %p124 = scmp.eq.s32.totalorder %s20, 3
    %p125 = por %p123, %p124
    %p127 = scmp.ne.s32.totalorder %s112, %s126
    %p128 = scmp.eq.s32.totalorder %s20, 0
    %p129 = por %p127, %p128
    %s131 = sadd.s32 %s130, 1
    %p134 = scmp.eq.s32.totalorder %s14, 3
    %p135 = scmp.ne.s32.totalorder %s130, %s132
    %p136 = scmp.eq.s32.totalorder %s14, 0
    %p137 = por %p135, %p136
    %p138 = scmp.ne.s32.totalorder %s130, %s132
    %p139 = scmp.eq.s32.totalorder %s19, 3
    %p140 = por %p138, %p139
    %p141 = scmp.ne.s32.totalorder %s132, %s133
    %p142 = scmp.eq.s32.totalorder %s19, 0
    %p143 = por %p141, %p142
    %p144 = scmp.ne.s32.totalorder %s132, %s133
    %p145 = scmp.eq.s32.totalorder %s20, 3
    %p146 = por %p144, %p145
    %p148 = scmp.ne.s32.totalorder %s133, %s147
    %p149 = scmp.eq.s32.totalorder %s20, 0
    %p150 = por %p148, %p149
    %s152 = sadd.s32 %s151, 1
    %p155 = scmp.eq.s32.totalorder %s14, 3
    %p156 = scmp.ne.s32.totalorder %s151, %s153
    %p157 = scmp.eq.s32.totalorder %s14, 0
    %p158 = por %p156, %p157
    %p159 = scmp.ne.s32.totalorder %s151, %s153
    %p160 = scmp.eq.s32.totalorder %s19, 3
    %p161 = por %p159, %p160
    %p162 = scmp.ne.s32.totalorder %s153, %s154
    %p163 = scmp.eq.s32.totalorder %s19, 0
    %p164 = por %p162, %p163
    %p165 = scmp.ne.s32.totalorder %s153, %s154
    %p166 = scmp.eq.s32.totalorder %s20, 3
    %p167 = por %p165, %p166
    %p169 = scmp.ne.s32.totalorder %s154, %s168
    %p170 = scmp.eq.s32.totalorder %s20, 0
    %p171 = por %p169, %p170
    %s173 = sadd.s32 %s172, 1
    %p176 = scmp.eq.s32.totalorder %s14, 3
    %p177 = scmp.ne.s32.totalorder %s172, %s174
    %p178 = scmp.eq.s32.totalorder %s14, 0
    %p179 = por %p177, %p178
    %p180 = scmp.ne.s32.totalorder %s172, %s174
    %p181 = scmp.eq.s32.totalorder %s19, 3
    %p182 = por %p180, %p181
    %p183 = scmp.ne.s32.totalorder %s174, %s175
    %p184 = scmp.eq.s32.totalorder %s19, 0
    %p185 = por %p183, %p184
    %p186 = scmp.ne.s32.totalorder %s174, %s175
    %p187 = scmp.eq.s32.totalorder %s20, 3
    %p188 = por %p186, %p187
    %p190 = scmp.ne.s32.totalorder %s175, %s189
    %p191 = scmp.eq.s32.totalorder %s20, 0
    %p192 = por %p190, %p191
    %s193 = ssub.s32 %s21, %s33
    %p194 = scmp.eq.s32.totalorder %s193, 0
    %s196 = sadd.s32 %s195, 1
    %s197 = scalar_select %p194, %s195, %s196
    %p200 = pneg %p194
    %p201 = scmp.eq.s32.totalorder %s14, 3
    %p202 = por %p200, %p201
    %p203 = scmp.ne.s32.totalorder %s195, %s198
    %p204 = scmp.eq.s32.totalorder %s14, 0
    %p205 = por %p203, %p204
    %p206 = scmp.ne.s32.totalorder %s195, %s198
    %p207 = scmp.eq.s32.totalorder %s19, 3
    %p208 = por %p206, %p207
    %p209 = scmp.ne.s32.totalorder %s198, %s199
    %p210 = scmp.eq.s32.totalorder %s19, 0
    %p211 = por %p209, %p210
    %p212 = scmp.ne.s32.totalorder %s198, %s199
    %p213 = scmp.eq.s32.totalorder %s20, 3
    %p214 = por %p212, %p213
    %p216 = scmp.ne.s32.totalorder %s199, %s215
    %p217 = scmp.eq.s32.totalorder %s20, 0
    %p218 = por %p216, %p217
    %p219 = scmp.le.s32.totalorder 1, %s14
    %p220 = scmp.lt.s32.totalorder %s14, 5
    %p221 = pnand %p219, %p220
    %p222 = pneg %p221
    // Predicated region
    $region9: #{tpu_custom_call.1} parent=5 // pred_check
      _
    $region10: #{tpu_custom_call.1} parent=5 // pred_check_branch
      %224 = sbr.rel (%p221) target = $region12
    $region11: #{tpu_custom_call.1} parent=5 // pred_region
      %s225 = ssub.s32 %s14, 1
      // Predicated region
      $region13: #{tpu_custom_call.1} parent=11 // pred_check
        %p226 = pneg %p101
      $region14: #{tpu_custom_call.1} parent=11 // pred_check_branch
        %228 = sbr.rel (%p226) target = $region16
      $region15: #{tpu_custom_call.1} parent=11 // pred_region
        _
      $region16: #{tpu_custom_call.1} parent=11 // pred_fallthru
        _
      // Predicated region
      $region17: #{tpu_custom_call.1} parent=11 // pred_check
        %p229 = pneg %p122
      $region18: #{tpu_custom_call.1} parent=11 // pred_check_branch
        %231 = sbr.rel (%p229) target = $region20
      $region19: #{tpu_custom_call.1} parent=11 // pred_region
        _
      $region20: #{tpu_custom_call.1} parent=11 // pred_fallthru
        _
      // Predicated region
      $region21: #{tpu_custom_call.1} parent=11 // pred_check
        %p232 = pneg %p143
      $region22: #{tpu_custom_call.1} parent=11 // pred_check_branch
        %234 = sbr.rel (%p232) target = $region24
      $region23: #{tpu_custom_call.1} parent=11 // pred_region
        _
      $region24: #{tpu_custom_call.1} parent=11 // pred_fallthru
        _
      // Predicated region
      $region25: #{tpu_custom_call.1} parent=11 // pred_check
        %p235 = pneg %p164
      $region26: #{tpu_custom_call.1} parent=11 // pred_check_branch
        %237 = sbr.rel (%p235) target = $region28
      $region27: #{tpu_custom_call.1} parent=11 // pred_region
        _
      $region28: #{tpu_custom_call.1} parent=11 // pred_fallthru
        _
      // Predicated region
      $region29: #{tpu_custom_call.1} parent=11 // pred_check
        %p238 = pneg %p185
      $region30: #{tpu_custom_call.1} parent=11 // pred_check_branch
        %240 = sbr.rel (%p238) target = $region32
      $region31: #{tpu_custom_call.1} parent=11 // pred_region
        _
      $region32: #{tpu_custom_call.1} parent=11 // pred_fallthru
        _
    $region12: #{tpu_custom_call.1} parent=5 // pred_fallthru
      _
    %p241 = scmp.lt.s32.totalorder %s14, 4
    // Predicated region
    $region33: #{tpu_custom_call.1} parent=5 // pred_check
      %p242 = pneg %p241
    $region34: #{tpu_custom_call.1} parent=5 // pred_check_branch
      %244 = sbr.rel (%p242) target = $region36
    $region35: #{tpu_custom_call.1} parent=5 // pred_region
      // Predicated region
      $region37: #{tpu_custom_call.1} parent=35 // pred_check
        %p245 = pneg %p46
      $region38: #{tpu_custom_call.1} parent=35 // pred_check_branch
        %247 = sbr.rel (%p245) target = $region40
      $region39: #{tpu_custom_call.1} parent=35 // pred_region
        %p248 = scmp.lt.s32.totalorder %s21, 1
        %s249 = scalar_select %p248, %s21, 1
        %s250 = smul.addr %s249, 54
        %s251 = smul.addr %s250, 8
        %s252 = scalar_lea.vmem %s0, %s251
      $region40: #{tpu_custom_call.1} parent=35 // pred_fallthru
        _
      // Predicated region
      $region41: #{tpu_custom_call.1} parent=35 // pred_check
        %p253 = pneg %p74
      $region42: #{tpu_custom_call.1} parent=35 // pred_check_branch
        %255 = sbr.rel (%p253) target = $region44
      $region43: #{tpu_custom_call.1} parent=35 // pred_region
        %p256 = scmp.lt.s32.totalorder %s22, 1
        %s257 = scalar_select %p256, %s22, 1
        %p258 = scmp.lt.s32.totalorder %s21, 1
        %s259 = scalar_select %p258, %s21, 1
        %s260 = smul.addr %s259, 54
        %s261 = smul.addr %s257, 108
        %s262 = sadd.s32 %s260, %s261
        %s263 = smul.addr %s262, 8
        %s264 = scalar_lea.vmem %s1, %s263
      $region44: #{tpu_custom_call.1} parent=35 // pred_fallthru
        _
    $region36: #{tpu_custom_call.1} parent=5 // pred_fallthru
      _
    %p265 = scmp.le.s32.totalorder 1, %s14
    %p266 = scmp.lt.s32.totalorder %s14, 5
    %p267 = pnand %p265, %p266
    %p268 = pneg %p267
    // Predicated region
    $region45: #{tpu_custom_call.1} parent=5 // pred_check
      _
    $region46: #{tpu_custom_call.1} parent=5 // pred_check_branch
      %270 = sbr.rel (%p267) target = $region48
    $region47: #{tpu_custom_call.1} parent=5 // pred_region
      %s271 = ssub.s32 %s14, 1
      %p272 = scmp.lt.s32.totalorder %s23, 1
      %s273 = scalar_select %p272, %s23, 1
      %s274 = smul.addr %s273, 54
      %s275 = smul.addr %s274, 8
      %s276 = scalar_lea.vmem %s0, %s275
      %p277 = pneg %p52
      %p278 = pneg %p49
      %p279 = scmp.lt.s32.totalorder %s24, 1
      %s280 = scalar_select %p279, %s24, 1
      %p281 = scmp.lt.s32.totalorder %s23, 1
      %s282 = scalar_select %p281, %s23, 1
      %s283 = smul.addr %s282, 54
      %s284 = smul.addr %s280, 108
      %s285 = sadd.s32 %s283, %s284
      %s286 = smul.addr %s285, 8
      %s287 = scalar_lea.vmem %s1, %s286
      %p288 = pneg %p80
      %p289 = pneg %p77
      %p290 = pneg %p101
      %p291 = pneg %p98
      %p292 = pneg %p122
      %p293 = pneg %p119
      %p294 = pneg %p143
      %p295 = pneg %p140
      %p296 = pneg %p164
      %p297 = pneg %p161
      %p298 = pneg %p185
      %p299 = pneg %p182
      %p300 = pneg %p211
      %p301 = pneg %p208
      %p302 = scmp.lt.s32.totalorder %s23, 1
      %s303 = scalar_select %p302, %s23, 1
      %s304 = smul.addr %s303, 32
      %s305 = smul.addr %s304, 8
      %s306 = scalar_lea.vmem %s7, %s305
      %p307 = scmp.lt.s32.totalorder %s23, 1
      %s308 = scalar_select %p307, %s23, 1
      %s309 = smul.addr %s308, 54
      %s310 = smul.addr %s309, 8
      %s311 = scalar_lea.vmem %s0, %s310
      %p312 = scmp.lt.s32.totalorder %s24, 1
      %s313 = scalar_select %p312, %s24, 1
      %p314 = scmp.lt.s32.totalorder %s23, 1
      %s315 = scalar_select %p314, %s23, 1
      %s316 = smul.addr %s315, 54
      %s317 = smul.addr %s313, 108
      %s318 = sadd.s32 %s316, %s317
      %s319 = smul.addr %s318, 8
      %s320 = scalar_lea.vmem %s1, %s319
      %p321 = scmp.lt.s32.totalorder %s23, 1
      %s322 = scalar_select %p321, %s23, 1
      %s323 = smul.addr %s322, 32
      %s324 = smul.addr %s323, 8
      %s325 = scalar_lea.vmem %s7, %s324
      %v326 = vld [vmem:[%s320] sm:$0xff]
      %v327 = vld [vmem:[%s320 + $0x8] sm:$0xff]
      %v328 = vld [vmem:[%s320 + $0x10] sm:$0x3]
      %v329 = vld [vmem:[%s320 + $0x18] sm:$0xff]
      %v330 = vld [vmem:[%s320 + $0x20] sm:$0xff]
      %v331 = vld [vmem:[%s320 + $0x28] sm:$0x3]
      %v332 = vld [vmem:[%s320 + $0x30] sm:$0xff]
      %v333 = vld [vmem:[%s320 + $0x38] sm:$0xff]
      %v334 = vld [vmem:[%s320 + $0x40] sm:$0x3]
      %v335 = vld [vmem:[%s320 + $0x48] sm:$0xff]
      %v336 = vld [vmem:[%s320 + $0x50] sm:$0xff]
      %v337 = vld [vmem:[%s320 + $0x58] sm:$0x3]
      %v338 = vld [vmem:[%s320 + $0x60] sm:$0xff]
      %v339 = vld [vmem:[%s320 + $0x68] sm:$0xff]
      %v340 = vld [vmem:[%s320 + $0x70] sm:$0x3]
      %v341 = vld [vmem:[%s320 + $0x78] sm:$0xff]
      %v342 = vld [vmem:[%s320 + $0x80] sm:$0xff]
      %v343 = vld [vmem:[%s320 + $0x88] sm:$0x3]
      %v344 = vld [vmem:[%s320 + $0x90] sm:$0xff]
      %v345 = vld [vmem:[%s320 + $0x98] sm:$0xff]
      %v346 = vld [vmem:[%s320 + $0xa0] sm:$0x3]
      %v347 = vld [vmem:[%s320 + $0xa8] sm:$0xff]
      %v348 = vld [vmem:[%s320 + $0xb0] sm:$0xff]
      %v349 = vld [vmem:[%s320 + $0xb8] sm:$0x3]
      %v350 = vld [vmem:[%s320 + $0xc0] sm:$0xff]
      %v351 = vld [vmem:[%s320 + $0xc8] sm:$0xff]
      %v352 = vld [vmem:[%s320 + $0xd0] sm:$0x3]
      %v353 = vld [vmem:[%s320 + $0xd8] sm:$0xff]
      %v354 = vld [vmem:[%s320 + $0xe0] sm:$0xff]
      %v355 = vld [vmem:[%s320 + $0xe8] sm:$0x3]
      %v356 = vld [vmem:[%s320 + $0xf0] sm:$0xff]
      %v357 = vld [vmem:[%s320 + $0xf8] sm:$0xff]
      %v358 = vld [vmem:[%s320 + $0x100] sm:$0x3]
      %v359 = vld [vmem:[%s320 + $0x108] sm:$0xff]
      %v360 = vld [vmem:[%s320 + $0x110] sm:$0xff]
      %v361 = vld [vmem:[%s320 + $0x118] sm:$0x3]
      %v362 = vld [vmem:[%s320 + $0x120] sm:$0xff]
      %v363 = vld [vmem:[%s320 + $0x128] sm:$0xff]
      %v364 = vld [vmem:[%s320 + $0x130] sm:$0x3]
      %v365 = vld [vmem:[%s320 + $0x138] sm:$0xff]
      %v366 = vld [vmem:[%s320 + $0x140] sm:$0xff]
      %v367 = vld [vmem:[%s320 + $0x148] sm:$0x3]
      %v368 = vld [vmem:[%s320 + $0x150] sm:$0xff]
      %v369 = vld [vmem:[%s320 + $0x158] sm:$0xff]
      %v370 = vld [vmem:[%s320 + $0x160] sm:$0x3]
      %v371 = vld [vmem:[%s320 + $0x168] sm:$0xff]
      %v372 = vld [vmem:[%s320 + $0x170] sm:$0xff]
      %v373 = vld [vmem:[%s320 + $0x178] sm:$0x3]
      %v374 = vld [vmem:[%s320 + $0x180] sm:$0xff]
      %v375 = vld [vmem:[%s320 + $0x188] sm:$0xff]
      %v376 = vld [vmem:[%s320 + $0x190] sm:$0x3]
      %v377 = vld [vmem:[%s320 + $0x198] sm:$0xff]
      %v378 = vld [vmem:[%s320 + $0x1a0] sm:$0xff]
      %v379 = vld [vmem:[%s320 + $0x1a8] sm:$0x3]
      %v380 = vld [vmem:[%s3] sm:$0x7]
      %v381 = vld [vmem:[%s3 + $0x4] sm:$0x7]
      %v382 = vld [vmem:[%s3 + $0x8] sm:$0x7]
      %p383 = scmp.eq.s32.totalorder %s24, 0
      // Predicated region
      $region49: #{tpu_custom_call.1} parent=47 // pred_check
        %p384 = pneg %p383
      $region50: #{tpu_custom_call.1} parent=47 // pred_check_branch
        %386 = sbr.rel (%p384) target = $region52
      $region51: #{tpu_custom_call.1} parent=47 // pred_region
        %vm387 = vcmask 31744
        %388 = vst.msk [vmem:[#allocation3] sm:$0xff] %vm387, 0.0
        %389 = vst.msk [vmem:[#allocation3 + $0x8] sm:$0xff] %vm387, 0.0
        %vm390 = vcmask 25600
        %391 = vst.msk [vmem:[#allocation3 + $0x10] sm:$0x3] %vm390, 0.0
        %392 = vst.msk [vmem:[#allocation3 + $0x18] sm:$0xff] %vm387, 0.0
        %393 = vst.msk [vmem:[#allocation3 + $0x20] sm:$0xff] %vm387, 0.0
        %394 = vst.msk [vmem:[#allocation3 + $0x28] sm:$0x3] %vm390, 0.0
        %395 = vst.msk [vmem:[#allocation3 + $0x30] sm:$0xff] %vm387, 0.0
        %396 = vst.msk [vmem:[#allocation3 + $0x38] sm:$0xff] %vm387, 0.0
        %397 = vst.msk [vmem:[#allocation3 + $0x40] sm:$0x3] %vm390, 0.0
        %398 = vst.msk [vmem:[#allocation3 + $0x48] sm:$0xff] %vm387, 0.0
        %399 = vst.msk [vmem:[#allocation3 + $0x50] sm:$0xff] %vm387, 0.0
        %400 = vst.msk [vmem:[#allocation3 + $0x58] sm:$0x3] %vm390, 0.0
        %401 = vst.msk [vmem:[#allocation3 + $0x60] sm:$0xff] %vm387, 0.0
        %402 = vst.msk [vmem:[#allocation3 + $0x68] sm:$0xff] %vm387, 0.0
        %403 = vst.msk [vmem:[#allocation3 + $0x70] sm:$0x3] %vm390, 0.0
        %404 = vst.msk [vmem:[#allocation3 + $0x78] sm:$0xff] %vm387, 0.0
        %405 = vst.msk [vmem:[#allocation3 + $0x80] sm:$0xff] %vm387, 0.0
        %406 = vst.msk [vmem:[#allocation3 + $0x88] sm:$0x3] %vm390, 0.0
        %407 = vst.msk [vmem:[#allocation3 + $0x90] sm:$0xff] %vm387, 0.0
        %408 = vst.msk [vmem:[#allocation3 + $0x98] sm:$0xff] %vm387, 0.0
        %409 = vst.msk [vmem:[#allocation3 + $0xa0] sm:$0x3] %vm390, 0.0
        %410 = vst.msk [vmem:[#allocation3 + $0xa8] sm:$0xff] %vm387, 0.0
        %411 = vst.msk [vmem:[#allocation3 + $0xb0] sm:$0xff] %vm387, 0.0
        %412 = vst.msk [vmem:[#allocation3 + $0xb8] sm:$0x3] %vm390, 0.0
        %413 = vst.msk [vmem:[#allocation3 + $0xc0] sm:$0xff] %vm387, 0.0
        %414 = vst.msk [vmem:[#allocation3 + $0xc8] sm:$0xff] %vm387, 0.0
        %415 = vst.msk [vmem:[#allocation3 + $0xd0] sm:$0x3] %vm390, 0.0
        %416 = vst.msk [vmem:[#allocation3 + $0xd8] sm:$0xff] %vm387, 0.0
        %417 = vst.msk [vmem:[#allocation3 + $0xe0] sm:$0xff] %vm387, 0.0
        %418 = vst.msk [vmem:[#allocation3 + $0xe8] sm:$0x3] %vm390, 0.0
        %419 = vst.msk [vmem:[#allocation3 + $0xf0] sm:$0xff] %vm387, 0.0
        %420 = vst.msk [vmem:[#allocation3 + $0xf8] sm:$0xff] %vm387, 0.0
        %421 = vst.msk [vmem:[#allocation3 + $0x100] sm:$0x3] %vm390, 0.0
        %422 = vst.msk [vmem:[#allocation3 + $0x108] sm:$0xff] %vm387, 0.0
        %423 = vst.msk [vmem:[#allocation3 + $0x110] sm:$0xff] %vm387, 0.0
        %424 = vst.msk [vmem:[#allocation3 + $0x118] sm:$0x3] %vm390, 0.0
        %425 = vst.msk [vmem:[#allocation3 + $0x120] sm:$0xff] %vm387, 0.0
        %426 = vst.msk [vmem:[#allocation3 + $0x128] sm:$0xff] %vm387, 0.0
        %427 = vst.msk [vmem:[#allocation3 + $0x130] sm:$0x3] %vm390, 0.0
        %428 = vst.msk [vmem:[#allocation3 + $0x138] sm:$0xff] %vm387, 0.0
        %429 = vst.msk [vmem:[#allocation3 + $0x140] sm:$0xff] %vm387, 0.0
        %430 = vst.msk [vmem:[#allocation3 + $0x148] sm:$0x3] %vm390, 0.0
        %431 = vst.msk [vmem:[#allocation3 + $0x150] sm:$0xff] %vm387, 0.0
        %432 = vst.msk [vmem:[#allocation3 + $0x158] sm:$0xff] %vm387, 0.0
        %433 = vst.msk [vmem:[#allocation3 + $0x160] sm:$0x3] %vm390, 0.0
        %434 = vst.msk [vmem:[#allocation3 + $0x168] sm:$0xff] %vm387, 0.0
        %435 = vst.msk [vmem:[#allocation3 + $0x170] sm:$0xff] %vm387, 0.0
        %436 = vst.msk [vmem:[#allocation3 + $0x178] sm:$0x3] %vm390, 0.0
        %437 = vst.msk [vmem:[#allocation3 + $0x180] sm:$0xff] %vm387, 0.0
        %438 = vst.msk [vmem:[#allocation3 + $0x188] sm:$0xff] %vm387, 0.0
        %439 = vst.msk [vmem:[#allocation3 + $0x190] sm:$0x3] %vm390, 0.0
        %440 = vst.msk [vmem:[#allocation3 + $0x198] sm:$0xff] %vm387, 0.0
        %441 = vst.msk [vmem:[#allocation3 + $0x1a0] sm:$0xff] %vm387, 0.0
        %442 = vst.msk [vmem:[#allocation3 + $0x1a8] sm:$0x3] %vm390, 0.0
        %v443 = vld [vmem:[%s311] sm:$0xff]
        %v444 = vld [vmem:[%s311 + $0x8] sm:$0xff]
        %v445 = vld [vmem:[%s311 + $0x10] sm:$0x3]
        %v446 = vld [vmem:[%s311 + $0x18] sm:$0xff]
        %v447 = vld [vmem:[%s311 + $0x20] sm:$0xff]
        %v448 = vld [vmem:[%s311 + $0x28] sm:$0x3]
        %v449 = vld [vmem:[%s311 + $0x30] sm:$0xff]
        %v450 = vld [vmem:[%s311 + $0x38] sm:$0xff]
        %v451 = vld [vmem:[%s311 + $0x40] sm:$0x3]
        %v452 = vld [vmem:[%s311 + $0x48] sm:$0xff]
        %v453 = vld [vmem:[%s311 + $0x50] sm:$0xff]
        %v454 = vld [vmem:[%s311 + $0x58] sm:$0x3]
        %v455 = vld [vmem:[%s311 + $0x60] sm:$0xff]
        %v456 = vld [vmem:[%s311 + $0x68] sm:$0xff]
        %v457 = vld [vmem:[%s311 + $0x70] sm:$0x3]
        %v458 = vld [vmem:[%s311 + $0x78] sm:$0xff]
        %v459 = vld [vmem:[%s311 + $0x80] sm:$0xff]
        %v460 = vld [vmem:[%s311 + $0x88] sm:$0x3]
        %v461 = vld [vmem:[%s311 + $0x90] sm:$0xff]
        %v462 = vld [vmem:[%s311 + $0x98] sm:$0xff]
        %v463 = vld [vmem:[%s311 + $0xa0] sm:$0x3]
        %v464 = vld [vmem:[%s311 + $0xa8] sm:$0xff]
        %v465 = vld [vmem:[%s311 + $0xb0] sm:$0xff]
        %v466 = vld [vmem:[%s311 + $0xb8] sm:$0x3]
        %v467 = vld [vmem:[%s311 + $0xc0] sm:$0xff]
        %v468 = vld [vmem:[%s311 + $0xc8] sm:$0xff]
        %v469 = vld [vmem:[%s311 + $0xd0] sm:$0x3]
        %v470 = vld [vmem:[%s311 + $0xd8] sm:$0xff]
        %v471 = vld [vmem:[%s311 + $0xe0] sm:$0xff]
        %v472 = vld [vmem:[%s311 + $0xe8] sm:$0x3]
        %v473 = vld [vmem:[%s311 + $0xf0] sm:$0xff]
        %v474 = vld [vmem:[%s311 + $0xf8] sm:$0xff]
        %v475 = vld [vmem:[%s311 + $0x100] sm:$0x3]
        %v476 = vld [vmem:[%s311 + $0x108] sm:$0xff]
        %v477 = vld [vmem:[%s311 + $0x110] sm:$0xff]
        %v478 = vld [vmem:[%s311 + $0x118] sm:$0x3]
        %v479 = vld [vmem:[%s311 + $0x120] sm:$0xff]
        %v480 = vld [vmem:[%s311 + $0x128] sm:$0xff]
        %v481 = vld [vmem:[%s311 + $0x130] sm:$0x3]
        %v482 = vld [vmem:[%s311 + $0x138] sm:$0xff]
        %v483 = vld [vmem:[%s311 + $0x140] sm:$0xff]
        %v484 = vld [vmem:[%s311 + $0x148] sm:$0x3]
        %v485 = vld [vmem:[%s311 + $0x150] sm:$0xff]
        %v486 = vld [vmem:[%s311 + $0x158] sm:$0xff]
        %v487 = vld [vmem:[%s311 + $0x160] sm:$0x3]
        %v488 = vld [vmem:[%s311 + $0x168] sm:$0xff]
        %v489 = vld [vmem:[%s311 + $0x170] sm:$0xff]
        %v490 = vld [vmem:[%s311 + $0x178] sm:$0x3]
        %v491 = vld [vmem:[%s311 + $0x180] sm:$0xff]
        %v492 = vld [vmem:[%s311 + $0x188] sm:$0xff]
        %v493 = vld [vmem:[%s311 + $0x190] sm:$0x3]
        %v494 = vld [vmem:[%s311 + $0x198] sm:$0xff]
        %v495 = vld [vmem:[%s311 + $0x1a0] sm:$0xff]
        %v496 = vld [vmem:[%s311 + $0x1a8] sm:$0x3]
        %v497 = vld [vmem:[%s2] sm:$0x7]
        %v498 = vld [vmem:[%s2 + $0x4] sm:$0x7]
        %v499 = vld [vmem:[%s2 + $0x8] sm:$0x7]
        %v500 = vlaneseq
        %v501 = vshrl.u32 %v500, 7
        %v502 = vsub.s32 0, %v501
        %v503 = vrot.slane %v497, %v502
        %v504 = vmul.f32 %v443, %v503
        %v505 = vmul.f32 %v444, %v503
        %v506 = vmul.f32 %v446, %v503
        %v507 = vmul.f32 %v447, %v503
        %v508 = vmul.f32 %v449, %v503
        %v509 = vmul.f32 %v450, %v503
        %v510 = vmul.f32 %v452, %v503
        %v511 = vmul.f32 %v453, %v503
        %v512 = vmul.f32 %v455, %v503
        %v513 = vmul.f32 %v456, %v503
        %v514 = vmul.f32 %v458, %v503
        %v515 = vmul.f32 %v459, %v503
        %v516 = vmul.f32 %v461, %v503
        %v517 = vmul.f32 %v462, %v503
        %v518 = vmul.f32 %v464, %v503
        %v519 = vmul.f32 %v465, %v503
        %v520 = vmul.f32 %v467, %v503
        %v521 = vmul.f32 %v468, %v503
        %v522 = vmul.f32 %v470, %v503
        %v523 = vmul.f32 %v471, %v503
        %v524 = vmul.f32 %v473, %v503
        %v525 = vmul.f32 %v474, %v503
        %v526 = vmul.f32 %v476, %v503
        %v527 = vmul.f32 %v477, %v503
        %v528 = vmul.f32 %v479, %v503
        %v529 = vmul.f32 %v480, %v503
        %v530 = vmul.f32 %v482, %v503
        %v531 = vmul.f32 %v483, %v503
        %v532 = vmul.f32 %v485, %v503
        %v533 = vmul.f32 %v486, %v503
        %v534 = vmul.f32 %v488, %v503
        %v535 = vmul.f32 %v489, %v503
        %v536 = vadd.f32 %v504, 0.0
        %v537 = vadd.f32 %v505, 0.0
        %v538 = vadd.f32 %v506, 0.0
        %v539 = vadd.f32 %v507, 0.0
        %v540 = vadd.f32 %v508, 0.0
        %v541 = vadd.f32 %v509, 0.0
        %v542 = vadd.f32 %v510, 0.0
        %v543 = vadd.f32 %v511, 0.0
        %v544 = vadd.f32 %v512, 0.0
        %v545 = vadd.f32 %v513, 0.0
        %v546 = vadd.f32 %v514, 0.0
        %v547 = vadd.f32 %v515, 0.0
        %v548 = vadd.f32 %v516, 0.0
        %v549 = vadd.f32 %v517, 0.0
        %v550 = vadd.f32 %v518, 0.0
        %v551 = vadd.f32 %v519, 0.0
        %v552 = vadd.f32 %v520, 0.0
        %v553 = vadd.f32 %v521, 0.0
        %v554 = vadd.f32 %v522, 0.0
        %v555 = vadd.f32 %v523, 0.0
        %v556 = vadd.f32 %v524, 0.0
        %v557 = vadd.f32 %v525, 0.0
        %v558 = vadd.f32 %v526, 0.0
        %v559 = vadd.f32 %v527, 0.0
        %v560 = vadd.f32 %v528, 0.0
        %v561 = vadd.f32 %v529, 0.0
        %v562 = vadd.f32 %v530, 0.0
        %v563 = vadd.f32 %v531, 0.0
        %v564 = vadd.f32 %v532, 0.0
        %v565 = vadd.f32 %v533, 0.0
        %v566 = vadd.f32 %v534, 0.0
        %v567 = vadd.f32 %v535, 0.0
        %v568 = vlaneseq
        %v569 = vshrl.u32 %v568, 7
        %v570 = vsub.s32 1, %v569
        %v571 = vrot.slane %v497, %v570
        %v572 = vmul.f32 %v443, %v571
        %v573 = vmul.f32 %v444, %v571
        %v574 = vmul.f32 %v445, %v571
        %v575 = vmul.f32 %v446, %v571
        %v576 = vmul.f32 %v447, %v571
        %v577 = vmul.f32 %v448, %v571
        %v578 = vmul.f32 %v449, %v571
        %v579 = vmul.f32 %v450, %v571
        %v580 = vmul.f32 %v451, %v571
        %v581 = vmul.f32 %v452, %v571
        %v582 = vmul.f32 %v453, %v571
        %v583 = vmul.f32 %v454, %v571
        %v584 = vmul.f32 %v455, %v571
        %v585 = vmul.f32 %v456, %v571
        %v586 = vmul.f32 %v457, %v571
        %v587 = vmul.f32 %v458, %v571
        %v588 = vmul.f32 %v459, %v571
        %v589 = vmul.f32 %v460, %v571
        %v590 = vmul.f32 %v461, %v571
        %v591 = vmul.f32 %v462, %v571
        %v592 = vmul.f32 %v463, %v571
        %v593 = vmul.f32 %v464, %v571
        %v594 = vmul.f32 %v465, %v571
        %v595 = vmul.f32 %v466, %v571
        %v596 = vmul.f32 %v467, %v571
        %v597 = vmul.f32 %v468, %v571
        %v598 = vmul.f32 %v469, %v571
        %v599 = vmul.f32 %v470, %v571
        %v600 = vmul.f32 %v471, %v571
        %v601 = vmul.f32 %v472, %v571
        %v602 = vmul.f32 %v473, %v571
        %v603 = vmul.f32 %v474, %v571
        %v604 = vmul.f32 %v475, %v571
        %v605 = vmul.f32 %v476, %v571
        %v606 = vmul.f32 %v477, %v571
        %v607 = vmul.f32 %v478, %v571
        %v608 = vmul.f32 %v479, %v571
        %v609 = vmul.f32 %v480, %v571
        %v610 = vmul.f32 %v481, %v571
        %v611 = vmul.f32 %v482, %v571
        %v612 = vmul.f32 %v483, %v571
        %v613 = vmul.f32 %v484, %v571
        %v614 = vmul.f32 %v485, %v571
        %v615 = vmul.f32 %v486, %v571
        %v616 = vmul.f32 %v487, %v571
        %v617 = vmul.f32 %v488, %v571
        %v618 = vmul.f32 %v489, %v571
        %v619 = vmul.f32 %v490, %v571
        %vm668 = vcmask 1046528
        %v669 = vrot.slane %v572, 1
        %v670 = vrot.slane %v573, 1
        %v671 = vsel %vm668, %v669, %v670
        %v672 = vrot.slane %v574, 1
        %v673 = vsel %vm668, %v670, %v672
        %v674 = vrot.slane %v575, 1
        %v675 = vrot.slane %v576, 1
        %v676 = vsel %vm668, %v674, %v675
        %v677 = vrot.slane %v577, 1
        %v678 = vsel %vm668, %v675, %v677
        %v679 = vrot.slane %v578, 1
        %v680 = vrot.slane %v579, 1
        %v681 = vsel %vm668, %v679, %v680
        %v682 = vrot.slane %v580, 1
        %v683 = vsel %vm668, %v680, %v682
        %v684 = vrot.slane %v581, 1
        %v685 = vrot.slane %v582, 1
        %v686 = vsel %vm668, %v684, %v685
        %v687 = vrot.slane %v583, 1
        %v688 = vsel %vm668, %v685, %v687
        %v689 = vrot.slane %v584, 1
        %v690 = vrot.slane %v585, 1
        %v691 = vsel %vm668, %v689, %v690
        %v692 = vrot.slane %v586, 1
        %v693 = vsel %vm668, %v690, %v692
        %v694 = vrot.slane %v587, 1
        %v695 = vrot.slane %v588, 1
        %v696 = vsel %vm668, %v694, %v695
        %v697 = vrot.slane %v589, 1
        %v698 = vsel %vm668, %v695, %v697
        %v699 = vrot.slane %v590, 1
        %v700 = vrot.slane %v591, 1
        %v701 = vsel %vm668, %v699, %v700
        %v702 = vrot.slane %v592, 1
        %v703 = vsel %vm668, %v700, %v702
        %v704 = vrot.slane %v593, 1
        %v705 = vrot.slane %v594, 1
        %v706 = vsel %vm668, %v704, %v705
        %v707 = vrot.slane %v595, 1
        %v708 = vsel %vm668, %v705, %v707
        %v709 = vrot.slane %v596, 1
        %v710 = vrot.slane %v597, 1
        %v711 = vsel %vm668, %v709, %v710
        %v712 = vrot.slane %v598, 1
        %v713 = vsel %vm668, %v710, %v712
        %v714 = vrot.slane %v599, 1
        %v715 = vrot.slane %v600, 1
        %v716 = vsel %vm668, %v714, %v715
        %v717 = vrot.slane %v601, 1
        %v718 = vsel %vm668, %v715, %v717
        %v719 = vrot.slane %v602, 1
        %v720 = vrot.slane %v603, 1
        %v721 = vsel %vm668, %v719, %v720
        %v722 = vrot.slane %v604, 1
        %v723 = vsel %vm668, %v720, %v722
        %v724 = vrot.slane %v605, 1
        %v725 = vrot.slane %v606, 1
        %v726 = vsel %vm668, %v724, %v725
        %v727 = vrot.slane %v607, 1
        %v728 = vsel %vm668, %v725, %v727
        %v729 = vrot.slane %v608, 1
        %v730 = vrot.slane %v609, 1
        %v731 = vsel %vm668, %v729, %v730
        %v732 = vrot.slane %v610, 1
        %v733 = vsel %vm668, %v730, %v732
        %v734 = vrot.slane %v611, 1
        %v735 = vrot.slane %v612, 1
        %v736 = vsel %vm668, %v734, %v735
        %v737 = vrot.slane %v613, 1
        %v738 = vsel %vm668, %v735, %v737
        %v739 = vrot.slane %v614, 1
        %v740 = vrot.slane %v615, 1
        %v741 = vsel %vm668, %v739, %v740
        %v742 = vrot.slane %v616, 1
        %v743 = vsel %vm668, %v740, %v742
        %v744 = vrot.slane %v617, 1
        %v745 = vrot.slane %v618, 1
        %v746 = vsel %vm668, %v744, %v745
        %v747 = vrot.slane %v619, 1
        %v748 = vsel %vm668, %v745, %v747
        %v781 = vadd.f32 %v536, %v671
        %v782 = vadd.f32 %v537, %v673
        %v783 = vadd.f32 %v538, %v676
        %v784 = vadd.f32 %v539, %v678
        %v785 = vadd.f32 %v540, %v681
        %v786 = vadd.f32 %v541, %v683
        %v787 = vadd.f32 %v542, %v686
        %v788 = vadd.f32 %v543, %v688
        %v789 = vadd.f32 %v544, %v691
        %v790 = vadd.f32 %v545, %v693
        %v791 = vadd.f32 %v546, %v696
        %v792 = vadd.f32 %v547, %v698
        %v793 = vadd.f32 %v548, %v701
        %v794 = vadd.f32 %v549, %v703
        %v795 = vadd.f32 %v550, %v706
        %v796 = vadd.f32 %v551, %v708
        %v797 = vadd.f32 %v552, %v711
        %v798 = vadd.f32 %v553, %v713
        %v799 = vadd.f32 %v554, %v716
        %v800 = vadd.f32 %v555, %v718
        %v801 = vadd.f32 %v556, %v721
        %v802 = vadd.f32 %v557, %v723
        %v803 = vadd.f32 %v558, %v726
        %v804 = vadd.f32 %v559, %v728
        %v805 = vadd.f32 %v560, %v731
        %v806 = vadd.f32 %v561, %v733
        %v807 = vadd.f32 %v562, %v736
        %v808 = vadd.f32 %v563, %v738
        %v809 = vadd.f32 %v564, %v741
        %v810 = vadd.f32 %v565, %v743
        %v811 = vadd.f32 %v566, %v746
        %v812 = vadd.f32 %v567, %v748
        %v813 = vlaneseq
        %v814 = vshrl.u32 %v813, 7
        %v815 = vsub.s32 2, %v814
        %v816 = vrot.slane %v497, %v815
        %v817 = vmul.f32 %v443, %v816
        %v818 = vmul.f32 %v444, %v816
        %v819 = vmul.f32 %v445, %v816
        %v820 = vmul.f32 %v446, %v816
        %v821 = vmul.f32 %v447, %v816
        %v822 = vmul.f32 %v448, %v816
        %v823 = vmul.f32 %v449, %v816
        %v824 = vmul.f32 %v450, %v816
        %v825 = vmul.f32 %v451, %v816
        %v826 = vmul.f32 %v452, %v816
        %v827 = vmul.f32 %v453, %v816
        %v828 = vmul.f32 %v454, %v816
        %v829 = vmul.f32 %v455, %v816
        %v830 = vmul.f32 %v456, %v816
        %v831 = vmul.f32 %v457, %v816
        %v832 = vmul.f32 %v458, %v816
        %v833 = vmul.f32 %v459, %v816
        %v834 = vmul.f32 %v460, %v816
        %v835 = vmul.f32 %v461, %v816
        %v836 = vmul.f32 %v462, %v816
        %v837 = vmul.f32 %v463, %v816
        %v838 = vmul.f32 %v464, %v816
        %v839 = vmul.f32 %v465, %v816
        %v840 = vmul.f32 %v466, %v816
        %v841 = vmul.f32 %v467, %v816
        %v842 = vmul.f32 %v468, %v816
        %v843 = vmul.f32 %v469, %v816
        %v844 = vmul.f32 %v470, %v816
        %v845 = vmul.f32 %v471, %v816
        %v846 = vmul.f32 %v472, %v816
        %v847 = vmul.f32 %v473, %v816
        %v848 = vmul.f32 %v474, %v816
        %v849 = vmul.f32 %v475, %v816
        %v850 = vmul.f32 %v476, %v816
        %v851 = vmul.f32 %v477, %v816
        %v852 = vmul.f32 %v478, %v816
        %v853 = vmul.f32 %v479, %v816
        %v854 = vmul.f32 %v480, %v816
        %v855 = vmul.f32 %v481, %v816
        %v856 = vmul.f32 %v482, %v816
        %v857 = vmul.f32 %v483, %v816
        %v858 = vmul.f32 %v484, %v816
        %v859 = vmul.f32 %v485, %v816
        %v860 = vmul.f32 %v486, %v816
        %v861 = vmul.f32 %v487, %v816
        %v862 = vmul.f32 %v488, %v816
        %v863 = vmul.f32 %v489, %v816
        %v864 = vmul.f32 %v490, %v816
        %vm913 = vcmask 1045504
        %v914 = vrot.slane %v817, 2
        %v915 = vrot.slane %v818, 2
        %v916 = vsel %vm913, %v914, %v915
        %v917 = vrot.slane %v819, 2
        %v918 = vsel %vm913, %v915, %v917
        %v919 = vrot.slane %v820, 2
        %v920 = vrot.slane %v821, 2
        %v921 = vsel %vm913, %v919, %v920
        %v922 = vrot.slane %v822, 2
        %v923 = vsel %vm913, %v920, %v922
        %v924 = vrot.slane %v823, 2
        %v925 = vrot.slane %v824, 2
        %v926 = vsel %vm913, %v924, %v925
        %v927 = vrot.slane %v825, 2
        %v928 = vsel %vm913, %v925, %v927
        %v929 = vrot.slane %v826, 2
        %v930 = vrot.slane %v827, 2
        %v931 = vsel %vm913, %v929, %v930
        %v932 = vrot.slane %v828, 2
        %v933 = vsel %vm913, %v930, %v932
        %v934 = vrot.slane %v829, 2
        %v935 = vrot.slane %v830, 2
        %v936 = vsel %vm913, %v934, %v935
        %v937 = vrot.slane %v831, 2
        %v938 = vsel %vm913, %v935, %v937
        %v939 = vrot.slane %v832, 2
        %v940 = vrot.slane %v833, 2
        %v941 = vsel %vm913, %v939, %v940
        %v942 = vrot.slane %v834, 2
        %v943 = vsel %vm913, %v940, %v942
        %v944 = vrot.slane %v835, 2
        %v945 = vrot.slane %v836, 2
        %v946 = vsel %vm913, %v944, %v945
        %v947 = vrot.slane %v837, 2
        %v948 = vsel %vm913, %v945, %v947
        %v949 = vrot.slane %v838, 2
        %v950 = vrot.slane %v839, 2
        %v951 = vsel %vm913, %v949, %v950
        %v952 = vrot.slane %v840, 2
        %v953 = vsel %vm913, %v950, %v952
        %v954 = vrot.slane %v841, 2
        %v955 = vrot.slane %v842, 2
        %v956 = vsel %vm913, %v954, %v955
        %v957 = vrot.slane %v843, 2
        %v958 = vsel %vm913, %v955, %v957
        %v959 = vrot.slane %v844, 2
        %v960 = vrot.slane %v845, 2
        %v961 = vsel %vm913, %v959, %v960
        %v962 = vrot.slane %v846, 2
        %v963 = vsel %vm913, %v960, %v962
        %v964 = vrot.slane %v847, 2
        %v965 = vrot.slane %v848, 2
        %v966 = vsel %vm913, %v964, %v965
        %v967 = vrot.slane %v849, 2
        %v968 = vsel %vm913, %v965, %v967
        %v969 = vrot.slane %v850, 2
        %v970 = vrot.slane %v851, 2
        %v971 = vsel %vm913, %v969, %v970
        %v972 = vrot.slane %v852, 2
        %v973 = vsel %vm913, %v970, %v972
        %v974 = vrot.slane %v853, 2
        %v975 = vrot.slane %v854, 2
        %v976 = vsel %vm913, %v974, %v975
        %v977 = vrot.slane %v855, 2
        %v978 = vsel %vm913, %v975, %v977
        %v979 = vrot.slane %v856, 2
        %v980 = vrot.slane %v857, 2
        %v981 = vsel %vm913, %v979, %v980
        %v982 = vrot.slane %v858, 2
        %v983 = vsel %vm913, %v980, %v982
        %v984 = vrot.slane %v859, 2
        %v985 = vrot.slane %v860, 2
        %v986 = vsel %vm913, %v984, %v985
        %v987 = vrot.slane %v861, 2
        %v988 = vsel %vm913, %v985, %v987
        %v989 = vrot.slane %v862, 2
        %v990 = vrot.slane %v863, 2
        %v991 = vsel %vm913, %v989, %v990
        %v992 = vrot.slane %v864, 2
        %v993 = vsel %vm913, %v990, %v992
        %v1026 = vadd.f32 %v781, %v916
        %v1027 = vadd.f32 %v782, %v918
        %v1028 = vadd.f32 %v783, %v921
        %v1029 = vadd.f32 %v784, %v923
        %v1030 = vadd.f32 %v785, %v926
        %v1031 = vadd.f32 %v786, %v928
        %v1032 = vadd.f32 %v787, %v931
        %v1033 = vadd.f32 %v788, %v933
        %v1034 = vadd.f32 %v789, %v936
        %v1035 = vadd.f32 %v790, %v938
        %v1036 = vadd.f32 %v791, %v941
        %v1037 = vadd.f32 %v792, %v943
        %v1038 = vadd.f32 %v793, %v946
        %v1039 = vadd.f32 %v794, %v948
        %v1040 = vadd.f32 %v795, %v951
        %v1041 = vadd.f32 %v796, %v953
        %v1042 = vadd.f32 %v797, %v956
        %v1043 = vadd.f32 %v798, %v958
        %v1044 = vadd.f32 %v799, %v961
        %v1045 = vadd.f32 %v800, %v963
        %v1046 = vadd.f32 %v801, %v966
        %v1047 = vadd.f32 %v802, %v968
        %v1048 = vadd.f32 %v803, %v971
        %v1049 = vadd.f32 %v804, %v973
        %v1050 = vadd.f32 %v805, %v976
        %v1051 = vadd.f32 %v806, %v978
        %v1052 = vadd.f32 %v807, %v981
        %v1053 = vadd.f32 %v808, %v983
        %v1054 = vadd.f32 %v809, %v986
        %v1055 = vadd.f32 %v810, %v988
        %v1056 = vadd.f32 %v811, %v991
        %v1057 = vadd.f32 %v812, %v993
        %v1058 = vlaneseq
        %v1059 = vshrl.u32 %v1058, 7
        %v1060 = vsub.s32 0, %v1059
        %v1061 = vrot.slane %v498, %v1060
        %v1062 = vmul.f32 %v446, %v1061
        %v1063 = vmul.f32 %v447, %v1061
        %v1064 = vmul.f32 %v449, %v1061
        %v1065 = vmul.f32 %v450, %v1061
        %v1066 = vmul.f32 %v452, %v1061
        %v1067 = vmul.f32 %v453, %v1061
        %v1068 = vmul.f32 %v455, %v1061
        %v1069 = vmul.f32 %v456, %v1061
        %v1070 = vmul.f32 %v458, %v1061
        %v1071 = vmul.f32 %v459, %v1061
        %v1072 = vmul.f32 %v461, %v1061
        %v1073 = vmul.f32 %v462, %v1061
        %v1074 = vmul.f32 %v464, %v1061
        %v1075 = vmul.f32 %v465, %v1061
        %v1076 = vmul.f32 %v467, %v1061
        %v1077 = vmul.f32 %v468, %v1061
        %v1078 = vmul.f32 %v470, %v1061
        %v1079 = vmul.f32 %v471, %v1061
        %v1080 = vmul.f32 %v473, %v1061
        %v1081 = vmul.f32 %v474, %v1061
        %v1082 = vmul.f32 %v476, %v1061
        %v1083 = vmul.f32 %v477, %v1061
        %v1084 = vmul.f32 %v479, %v1061
        %v1085 = vmul.f32 %v480, %v1061
        %v1086 = vmul.f32 %v482, %v1061
        %v1087 = vmul.f32 %v483, %v1061
        %v1088 = vmul.f32 %v485, %v1061
        %v1089 = vmul.f32 %v486, %v1061
        %v1090 = vmul.f32 %v488, %v1061
        %v1091 = vmul.f32 %v489, %v1061
        %v1092 = vmul.f32 %v491, %v1061
        %v1093 = vmul.f32 %v492, %v1061
        %v1094 = vadd.f32 %v1026, %v1062
        %v1095 = vadd.f32 %v1027, %v1063
        %v1096 = vadd.f32 %v1028, %v1064
        %v1097 = vadd.f32 %v1029, %v1065
        %v1098 = vadd.f32 %v1030, %v1066
        %v1099 = vadd.f32 %v1031, %v1067
        %v1100 = vadd.f32 %v1032, %v1068
        %v1101 = vadd.f32 %v1033, %v1069
        %v1102 = vadd.f32 %v1034, %v1070
        %v1103 = vadd.f32 %v1035, %v1071
        %v1104 = vadd.f32 %v1036, %v1072
        %v1105 = vadd.f32 %v1037, %v1073
        %v1106 = vadd.f32 %v1038, %v1074
        %v1107 = vadd.f32 %v1039, %v1075
        %v1108 = vadd.f32 %v1040, %v1076
        %v1109 = vadd.f32 %v1041, %v1077
        %v1110 = vadd.f32 %v1042, %v1078
        %v1111 = vadd.f32 %v1043, %v1079
        %v1112 = vadd.f32 %v1044, %v1080
        %v1113 = vadd.f32 %v1045, %v1081
        %v1114 = vadd.f32 %v1046, %v1082
        %v1115 = vadd.f32 %v1047, %v1083
        %v1116 = vadd.f32 %v1048, %v1084
        %v1117 = vadd.f32 %v1049, %v1085
        %v1118 = vadd.f32 %v1050, %v1086
        %v1119 = vadd.f32 %v1051, %v1087
        %v1120 = vadd.f32 %v1052, %v1088
        %v1121 = vadd.f32 %v1053, %v1089
        %v1122 = vadd.f32 %v1054, %v1090
        %v1123 = vadd.f32 %v1055, %v1091
        %v1124 = vadd.f32 %v1056, %v1092
        %v1125 = vadd.f32 %v1057, %v1093
        %v1126 = vlaneseq
        %v1127 = vshrl.u32 %v1126, 7
        %v1128 = vsub.s32 1, %v1127
        %v1129 = vrot.slane %v498, %v1128
        %v1130 = vmul.f32 %v446, %v1129
        %v1131 = vmul.f32 %v447, %v1129
        %v1132 = vmul.f32 %v448, %v1129
        %v1133 = vmul.f32 %v449, %v1129
        %v1134 = vmul.f32 %v450, %v1129
        %v1135 = vmul.f32 %v451, %v1129
        %v1136 = vmul.f32 %v452, %v1129
        %v1137 = vmul.f32 %v453, %v1129
        %v1138 = vmul.f32 %v454, %v1129
        %v1139 = vmul.f32 %v455, %v1129
        %v1140 = vmul.f32 %v456, %v1129
        %v1141 = vmul.f32 %v457, %v1129
        %v1142 = vmul.f32 %v458, %v1129
        %v1143 = vmul.f32 %v459, %v1129
        %v1144 = vmul.f32 %v460, %v1129
        %v1145 = vmul.f32 %v461, %v1129
        %v1146 = vmul.f32 %v462, %v1129
        %v1147 = vmul.f32 %v463, %v1129
        %v1148 = vmul.f32 %v464, %v1129
        %v1149 = vmul.f32 %v465, %v1129
        %v1150 = vmul.f32 %v466, %v1129
        %v1151 = vmul.f32 %v467, %v1129
        %v1152 = vmul.f32 %v468, %v1129
        %v1153 = vmul.f32 %v469, %v1129
        %v1154 = vmul.f32 %v470, %v1129
        %v1155 = vmul.f32 %v471, %v1129
        %v1156 = vmul.f32 %v472, %v1129
        %v1157 = vmul.f32 %v473, %v1129
        %v1158 = vmul.f32 %v474, %v1129
        %v1159 = vmul.f32 %v475, %v1129
        %v1160 = vmul.f32 %v476, %v1129
        %v1161 = vmul.f32 %v477, %v1129
        %v1162 = vmul.f32 %v478, %v1129
        %v1163 = vmul.f32 %v479, %v1129
        %v1164 = vmul.f32 %v480, %v1129
        %v1165 = vmul.f32 %v481, %v1129
        %v1166 = vmul.f32 %v482, %v1129
        %v1167 = vmul.f32 %v483, %v1129
        %v1168 = vmul.f32 %v484, %v1129
        %v1169 = vmul.f32 %v485, %v1129
        %v1170 = vmul.f32 %v486, %v1129
        %v1171 = vmul.f32 %v487, %v1129
        %v1172 = vmul.f32 %v488, %v1129
        %v1173 = vmul.f32 %v489, %v1129
        %v1174 = vmul.f32 %v490, %v1129
        %v1175 = vmul.f32 %v491, %v1129
        %v1176 = vmul.f32 %v492, %v1129
        %v1177 = vmul.f32 %v493, %v1129
        %v1226 = vrot.slane %v1130, 1
        %v1227 = vrot.slane %v1131, 1
        %v1228 = vsel %vm668, %v1226, %v1227
        %v1229 = vrot.slane %v1132, 1
        %v1230 = vsel %vm668, %v1227, %v1229
        %v1231 = vrot.slane %v1133, 1
        %v1232 = vrot.slane %v1134, 1
        %v1233 = vsel %vm668, %v1231, %v1232
        %v1234 = vrot.slane %v1135, 1
        %v1235 = vsel %vm668, %v1232, %v1234
        %v1236 = vrot.slane %v1136, 1
        %v1237 = vrot.slane %v1137, 1
        %v1238 = vsel %vm668, %v1236, %v1237
        %v1239 = vrot.slane %v1138, 1
        %v1240 = vsel %vm668, %v1237, %v1239
        %v1241 = vrot.slane %v1139, 1
        %v1242 = vrot.slane %v1140, 1
        %v1243 = vsel %vm668, %v1241, %v1242
        %v1244 = vrot.slane %v1141, 1
        %v1245 = vsel %vm668, %v1242, %v1244
        %v1246 = vrot.slane %v1142, 1
        %v1247 = vrot.slane %v1143, 1
        %v1248 = vsel %vm668, %v1246, %v1247
        %v1249 = vrot.slane %v1144, 1
        %v1250 = vsel %vm668, %v1247, %v1249
        %v1251 = vrot.slane %v1145, 1
        %v1252 = vrot.slane %v1146, 1
        %v1253 = vsel %vm668, %v1251, %v1252
        %v1254 = vrot.slane %v1147, 1
        %v1255 = vsel %vm668, %v1252, %v1254
        %v1256 = vrot.slane %v1148, 1
        %v1257 = vrot.slane %v1149, 1
        %v1258 = vsel %vm668, %v1256, %v1257
        %v1259 = vrot.slane %v1150, 1
        %v1260 = vsel %vm668, %v1257, %v1259
        %v1261 = vrot.slane %v1151, 1
        %v1262 = vrot.slane %v1152, 1
        %v1263 = vsel %vm668, %v1261, %v1262
        %v1264 = vrot.slane %v1153, 1
        %v1265 = vsel %vm668, %v1262, %v1264
        %v1266 = vrot.slane %v1154, 1
        %v1267 = vrot.slane %v1155, 1
        %v1268 = vsel %vm668, %v1266, %v1267
        %v1269 = vrot.slane %v1156, 1
        %v1270 = vsel %vm668, %v1267, %v1269
        %v1271 = vrot.slane %v1157, 1
        %v1272 = vrot.slane %v1158, 1
        %v1273 = vsel %vm668, %v1271, %v1272
        %v1274 = vrot.slane %v1159, 1
        %v1275 = vsel %vm668, %v1272, %v1274
        %v1276 = vrot.slane %v1160, 1
        %v1277 = vrot.slane %v1161, 1
        %v1278 = vsel %vm668, %v1276, %v1277
        %v1279 = vrot.slane %v1162, 1
        %v1280 = vsel %vm668, %v1277, %v1279
        %v1281 = vrot.slane %v1163, 1
        %v1282 = vrot.slane %v1164, 1
        %v1283 = vsel %vm668, %v1281, %v1282
        %v1284 = vrot.slane %v1165, 1
        %v1285 = vsel %vm668, %v1282, %v1284
        %v1286 = vrot.slane %v1166, 1
        %v1287 = vrot.slane %v1167, 1
        %v1288 = vsel %vm668, %v1286, %v1287
        %v1289 = vrot.slane %v1168, 1
        %v1290 = vsel %vm668, %v1287, %v1289
        %v1291 = vrot.slane %v1169, 1
        %v1292 = vrot.slane %v1170, 1
        %v1293 = vsel %vm668, %v1291, %v1292
        %v1294 = vrot.slane %v1171, 1
        %v1295 = vsel %vm668, %v1292, %v1294
        %v1296 = vrot.slane %v1172, 1
        %v1297 = vrot.slane %v1173, 1
        %v1298 = vsel %vm668, %v1296, %v1297
        %v1299 = vrot.slane %v1174, 1
        %v1300 = vsel %vm668, %v1297, %v1299
        %v1301 = vrot.slane %v1175, 1
        %v1302 = vrot.slane %v1176, 1
        %v1303 = vsel %vm668, %v1301, %v1302
        %v1304 = vrot.slane %v1177, 1
        %v1305 = vsel %vm668, %v1302, %v1304
        %v1338 = vadd.f32 %v1094, %v1228
        %v1339 = vadd.f32 %v1095, %v1230
        %v1340 = vadd.f32 %v1096, %v1233
        %v1341 = vadd.f32 %v1097, %v1235
        %v1342 = vadd.f32 %v1098, %v1238
        %v1343 = vadd.f32 %v1099, %v1240
        %v1344 = vadd.f32 %v1100, %v1243
        %v1345 = vadd.f32 %v1101, %v1245
        %v1346 = vadd.f32 %v1102, %v1248
        %v1347 = vadd.f32 %v1103, %v1250
        %v1348 = vadd.f32 %v1104, %v1253
        %v1349 = vadd.f32 %v1105, %v1255
        %v1350 = vadd.f32 %v1106, %v1258
        %v1351 = vadd.f32 %v1107, %v1260
        %v1352 = vadd.f32 %v1108, %v1263
        %v1353 = vadd.f32 %v1109, %v1265
        %v1354 = vadd.f32 %v1110, %v1268
        %v1355 = vadd.f32 %v1111, %v1270
        %v1356 = vadd.f32 %v1112, %v1273
        %v1357 = vadd.f32 %v1113, %v1275
        %v1358 = vadd.f32 %v1114, %v1278
        %v1359 = vadd.f32 %v1115, %v1280
        %v1360 = vadd.f32 %v1116, %v1283
        %v1361 = vadd.f32 %v1117, %v1285
        %v1362 = vadd.f32 %v1118, %v1288
        %v1363 = vadd.f32 %v1119, %v1290
        %v1364 = vadd.f32 %v1120, %v1293
        %v1365 = vadd.f32 %v1121, %v1295
        %v1366 = vadd.f32 %v1122, %v1298
        %v1367 = vadd.f32 %v1123, %v1300
        %v1368 = vadd.f32 %v1124, %v1303
        %v1369 = vadd.f32 %v1125, %v1305
        %v1370 = vlaneseq
        %v1371 = vshrl.u32 %v1370, 7
        %v1372 = vsub.s32 2, %v1371
        %v1373 = vrot.slane %v498, %v1372
        %v1374 = vmul.f32 %v446, %v1373
        %v1375 = vmul.f32 %v447, %v1373
        %v1376 = vmul.f32 %v448, %v1373
        %v1377 = vmul.f32 %v449, %v1373
        %v1378 = vmul.f32 %v450, %v1373
        %v1379 = vmul.f32 %v451, %v1373
        %v1380 = vmul.f32 %v452, %v1373
        %v1381 = vmul.f32 %v453, %v1373
        %v1382 = vmul.f32 %v454, %v1373
        %v1383 = vmul.f32 %v455, %v1373
        %v1384 = vmul.f32 %v456, %v1373
        %v1385 = vmul.f32 %v457, %v1373
        %v1386 = vmul.f32 %v458, %v1373
        %v1387 = vmul.f32 %v459, %v1373
        %v1388 = vmul.f32 %v460, %v1373
        %v1389 = vmul.f32 %v461, %v1373
        %v1390 = vmul.f32 %v462, %v1373
        %v1391 = vmul.f32 %v463, %v1373
        %v1392 = vmul.f32 %v464, %v1373
        %v1393 = vmul.f32 %v465, %v1373
        %v1394 = vmul.f32 %v466, %v1373
        %v1395 = vmul.f32 %v467, %v1373
        %v1396 = vmul.f32 %v468, %v1373
        %v1397 = vmul.f32 %v469, %v1373
        %v1398 = vmul.f32 %v470, %v1373
        %v1399 = vmul.f32 %v471, %v1373
        %v1400 = vmul.f32 %v472, %v1373
        %v1401 = vmul.f32 %v473, %v1373
        %v1402 = vmul.f32 %v474, %v1373
        %v1403 = vmul.f32 %v475, %v1373
        %v1404 = vmul.f32 %v476, %v1373
        %v1405 = vmul.f32 %v477, %v1373
        %v1406 = vmul.f32 %v478, %v1373
        %v1407 = vmul.f32 %v479, %v1373
        %v1408 = vmul.f32 %v480, %v1373
        %v1409 = vmul.f32 %v481, %v1373
        %v1410 = vmul.f32 %v482, %v1373
        %v1411 = vmul.f32 %v483, %v1373
        %v1412 = vmul.f32 %v484, %v1373
        %v1413 = vmul.f32 %v485, %v1373
        %v1414 = vmul.f32 %v486, %v1373
        %v1415 = vmul.f32 %v487, %v1373
        %v1416 = vmul.f32 %v488, %v1373
        %v1417 = vmul.f32 %v489, %v1373
        %v1418 = vmul.f32 %v490, %v1373
        %v1419 = vmul.f32 %v491, %v1373
        %v1420 = vmul.f32 %v492, %v1373
        %v1421 = vmul.f32 %v493, %v1373
        %v1470 = vrot.slane %v1374, 2
        %v1471 = vrot.slane %v1375, 2
        %v1472 = vsel %vm913, %v1470, %v1471
        %v1473 = vrot.slane %v1376, 2
        %v1474 = vsel %vm913, %v1471, %v1473
        %v1475 = vrot.slane %v1377, 2
        %v1476 = vrot.slane %v1378, 2
        %v1477 = vsel %vm913, %v1475, %v1476
        %v1478 = vrot.slane %v1379, 2
        %v1479 = vsel %vm913, %v1476, %v1478
        %v1480 = vrot.slane %v1380, 2
        %v1481 = vrot.slane %v1381, 2
        %v1482 = vsel %vm913, %v1480, %v1481
        %v1483 = vrot.slane %v1382, 2
        %v1484 = vsel %vm913, %v1481, %v1483
        %v1485 = vrot.slane %v1383, 2
        %v1486 = vrot.slane %v1384, 2
        %v1487 = vsel %vm913, %v1485, %v1486
        %v1488 = vrot.slane %v1385, 2
        %v1489 = vsel %vm913, %v1486, %v1488
        %v1490 = vrot.slane %v1386, 2
        %v1491 = vrot.slane %v1387, 2
        %v1492 = vsel %vm913, %v1490, %v1491
        %v1493 = vrot.slane %v1388, 2
        %v1494 = vsel %vm913, %v1491, %v1493
        %v1495 = vrot.slane %v1389, 2
        %v1496 = vrot.slane %v1390, 2
        %v1497 = vsel %vm913, %v1495, %v1496
        %v1498 = vrot.slane %v1391, 2
        %v1499 = vsel %vm913, %v1496, %v1498
        %v1500 = vrot.slane %v1392, 2
        %v1501 = vrot.slane %v1393, 2
        %v1502 = vsel %vm913, %v1500, %v1501
        %v1503 = vrot.slane %v1394, 2
        %v1504 = vsel %vm913, %v1501, %v1503
        %v1505 = vrot.slane %v1395, 2
        %v1506 = vrot.slane %v1396, 2
        %v1507 = vsel %vm913, %v1505, %v1506
        %v1508 = vrot.slane %v1397, 2
        %v1509 = vsel %vm913, %v1506, %v1508
        %v1510 = vrot.slane %v1398, 2
        %v1511 = vrot.slane %v1399, 2
        %v1512 = vsel %vm913, %v1510, %v1511
        %v1513 = vrot.slane %v1400, 2
        %v1514 = vsel %vm913, %v1511, %v1513
        %v1515 = vrot.slane %v1401, 2
        %v1516 = vrot.slane %v1402, 2
        %v1517 = vsel %vm913, %v1515, %v1516
        %v1518 = vrot.slane %v1403, 2
        %v1519 = vsel %vm913, %v1516, %v1518
        %v1520 = vrot.slane %v1404, 2
        %v1521 = vrot.slane %v1405, 2
        %v1522 = vsel %vm913, %v1520, %v1521
        %v1523 = vrot.slane %v1406, 2
        %v1524 = vsel %vm913, %v1521, %v1523
        %v1525 = vrot.slane %v1407, 2
        %v1526 = vrot.slane %v1408, 2
        %v1527 = vsel %vm913, %v1525, %v1526
        %v1528 = vrot.slane %v1409, 2
        %v1529 = vsel %vm913, %v1526, %v1528
        %v1530 = vrot.slane %v1410, 2
        %v1531 = vrot.slane %v1411, 2
        %v1532 = vsel %vm913, %v1530, %v1531
        %v1533 = vrot.slane %v1412, 2
        %v1534 = vsel %vm913, %v1531, %v1533
        %v1535 = vrot.slane %v1413, 2
        %v1536 = vrot.slane %v1414, 2
        %v1537 = vsel %vm913, %v1535, %v1536
        %v1538 = vrot.slane %v1415, 2
        %v1539 = vsel %vm913, %v1536, %v1538
        %v1540 = vrot.slane %v1416, 2
        %v1541 = vrot.slane %v1417, 2
        %v1542 = vsel %vm913, %v1540, %v1541
        %v1543 = vrot.slane %v1418, 2
        %v1544 = vsel %vm913, %v1541, %v1543
        %v1545 = vrot.slane %v1419, 2
        %v1546 = vrot.slane %v1420, 2
        %v1547 = vsel %vm913, %v1545, %v1546
        %v1548 = vrot.slane %v1421, 2
        %v1549 = vsel %vm913, %v1546, %v1548
        %v1582 = vadd.f32 %v1338, %v1472
        %v1583 = vadd.f32 %v1339, %v1474
        %v1584 = vadd.f32 %v1340, %v1477
        %v1585 = vadd.f32 %v1341, %v1479
        %v1586 = vadd.f32 %v1342, %v1482
        %v1587 = vadd.f32 %v1343, %v1484
        %v1588 = vadd.f32 %v1344, %v1487
        %v1589 = vadd.f32 %v1345, %v1489
        %v1590 = vadd.f32 %v1346, %v1492
        %v1591 = vadd.f32 %v1347, %v1494
        %v1592 = vadd.f32 %v1348, %v1497
        %v1593 = vadd.f32 %v1349, %v1499
        %v1594 = vadd.f32 %v1350, %v1502
        %v1595 = vadd.f32 %v1351, %v1504
        %v1596 = vadd.f32 %v1352, %v1507
        %v1597 = vadd.f32 %v1353, %v1509
        %v1598 = vadd.f32 %v1354, %v1512
        %v1599 = vadd.f32 %v1355, %v1514
        %v1600 = vadd.f32 %v1356, %v1517
        %v1601 = vadd.f32 %v1357, %v1519
        %v1602 = vadd.f32 %v1358, %v1522
        %v1603 = vadd.f32 %v1359, %v1524
        %v1604 = vadd.f32 %v1360, %v1527
        %v1605 = vadd.f32 %v1361, %v1529
        %v1606 = vadd.f32 %v1362, %v1532
        %v1607 = vadd.f32 %v1363, %v1534
        %v1608 = vadd.f32 %v1364, %v1537
        %v1609 = vadd.f32 %v1365, %v1539
        %v1610 = vadd.f32 %v1366, %v1542
        %v1611 = vadd.f32 %v1367, %v1544
        %v1612 = vadd.f32 %v1368, %v1547
        %v1613 = vadd.f32 %v1369, %v1549
        %v1614 = vlaneseq
        %v1615 = vshrl.u32 %v1614, 7
        %v1616 = vsub.s32 0, %v1615
        %v1617 = vrot.slane %v499, %v1616
        %v1618 = vmul.f32 %v449, %v1617
        %v1619 = vmul.f32 %v450, %v1617
        %v1620 = vmul.f32 %v452, %v1617
        %v1621 = vmul.f32 %v453, %v1617
        %v1622 = vmul.f32 %v455, %v1617
        %v1623 = vmul.f32 %v456, %v1617
        %v1624 = vmul.f32 %v458, %v1617
        %v1625 = vmul.f32 %v459, %v1617
        %v1626 = vmul.f32 %v461, %v1617
        %v1627 = vmul.f32 %v462, %v1617
        %v1628 = vmul.f32 %v464, %v1617
        %v1629 = vmul.f32 %v465, %v1617
        %v1630 = vmul.f32 %v467, %v1617
        %v1631 = vmul.f32 %v468, %v1617
        %v1632 = vmul.f32 %v470, %v1617
        %v1633 = vmul.f32 %v471, %v1617
        %v1634 = vmul.f32 %v473, %v1617
        %v1635 = vmul.f32 %v474, %v1617
        %v1636 = vmul.f32 %v476, %v1617
        %v1637 = vmul.f32 %v477, %v1617
        %v1638 = vmul.f32 %v479, %v1617
        %v1639 = vmul.f32 %v480, %v1617
        %v1640 = vmul.f32 %v482, %v1617
        %v1641 = vmul.f32 %v483, %v1617
        %v1642 = vmul.f32 %v485, %v1617
        %v1643 = vmul.f32 %v486, %v1617
        %v1644 = vmul.f32 %v488, %v1617
        %v1645 = vmul.f32 %v489, %v1617
        %v1646 = vmul.f32 %v491, %v1617
        %v1647 = vmul.f32 %v492, %v1617
        %v1648 = vmul.f32 %v494, %v1617
        %v1649 = vmul.f32 %v495, %v1617
        %v1650 = vadd.f32 %v1582, %v1618
        %v1651 = vadd.f32 %v1583, %v1619
        %v1652 = vadd.f32 %v1584, %v1620
        %v1653 = vadd.f32 %v1585, %v1621
        %v1654 = vadd.f32 %v1586, %v1622
        %v1655 = vadd.f32 %v1587, %v1623
        %v1656 = vadd.f32 %v1588, %v1624
        %v1657 = vadd.f32 %v1589, %v1625
        %v1658 = vadd.f32 %v1590, %v1626
        %v1659 = vadd.f32 %v1591, %v1627
        %v1660 = vadd.f32 %v1592, %v1628
        %v1661 = vadd.f32 %v1593, %v1629
        %v1662 = vadd.f32 %v1594, %v1630
        %v1663 = vadd.f32 %v1595, %v1631
        %v1664 = vadd.f32 %v1596, %v1632
        %v1665 = vadd.f32 %v1597, %v1633
        %v1666 = vadd.f32 %v1598, %v1634
        %v1667 = vadd.f32 %v1599, %v1635
        %v1668 = vadd.f32 %v1600, %v1636
        %v1669 = vadd.f32 %v1601, %v1637
        %v1670 = vadd.f32 %v1602, %v1638
        %v1671 = vadd.f32 %v1603, %v1639
        %v1672 = vadd.f32 %v1604, %v1640
        %v1673 = vadd.f32 %v1605, %v1641
        %v1674 = vadd.f32 %v1606, %v1642
        %v1675 = vadd.f32 %v1607, %v1643
        %v1676 = vadd.f32 %v1608, %v1644
        %v1677 = vadd.f32 %v1609, %v1645
        %v1678 = vadd.f32 %v1610, %v1646
        %v1679 = vadd.f32 %v1611, %v1647
        %v1680 = vadd.f32 %v1612, %v1648
        %v1681 = vadd.f32 %v1613, %v1649
        %v1682 = vlaneseq
        %v1683 = vshrl.u32 %v1682, 7
        %v1684 = vsub.s32 1, %v1683
        %v1685 = vrot.slane %v499, %v1684
        %v1686 = vmul.f32 %v449, %v1685
        %v1687 = vmul.f32 %v450, %v1685
        %v1688 = vmul.f32 %v451, %v1685
        %v1689 = vmul.f32 %v452, %v1685
        %v1690 = vmul.f32 %v453, %v1685
        %v1691 = vmul.f32 %v454, %v1685
        %v1692 = vmul.f32 %v455, %v1685
        %v1693 = vmul.f32 %v456, %v1685
        %v1694 = vmul.f32 %v457, %v1685
        %v1695 = vmul.f32 %v458, %v1685
        %v1696 = vmul.f32 %v459, %v1685
        %v1697 = vmul.f32 %v460, %v1685
        %v1698 = vmul.f32 %v461, %v1685
        %v1699 = vmul.f32 %v462, %v1685
        %v1700 = vmul.f32 %v463, %v1685
        %v1701 = vmul.f32 %v464, %v1685
        %v1702 = vmul.f32 %v465, %v1685
        %v1703 = vmul.f32 %v466, %v1685
        %v1704 = vmul.f32 %v467, %v1685
        %v1705 = vmul.f32 %v468, %v1685
        %v1706 = vmul.f32 %v469, %v1685
        %v1707 = vmul.f32 %v470, %v1685
        %v1708 = vmul.f32 %v471, %v1685
        %v1709 = vmul.f32 %v472, %v1685
        %v1710 = vmul.f32 %v473, %v1685
        %v1711 = vmul.f32 %v474, %v1685
        %v1712 = vmul.f32 %v475, %v1685
        %v1713 = vmul.f32 %v476, %v1685
        %v1714 = vmul.f32 %v477, %v1685
        %v1715 = vmul.f32 %v478, %v1685
        %v1716 = vmul.f32 %v479, %v1685
        %v1717 = vmul.f32 %v480, %v1685
        %v1718 = vmul.f32 %v481, %v1685
        %v1719 = vmul.f32 %v482, %v1685
        %v1720 = vmul.f32 %v483, %v1685
        %v1721 = vmul.f32 %v484, %v1685
        %v1722 = vmul.f32 %v485, %v1685
        %v1723 = vmul.f32 %v486, %v1685
        %v1724 = vmul.f32 %v487, %v1685
        %v1725 = vmul.f32 %v488, %v1685
        %v1726 = vmul.f32 %v489, %v1685
        %v1727 = vmul.f32 %v490, %v1685
        %v1728 = vmul.f32 %v491, %v1685
        %v1729 = vmul.f32 %v492, %v1685
        %v1730 = vmul.f32 %v493, %v1685
        %v1731 = vmul.f32 %v494, %v1685
        %v1732 = vmul.f32 %v495, %v1685
        %v1733 = vmul.f32 %v496, %v1685
        %v1782 = vrot.slane %v1686, 1
        %v1783 = vrot.slane %v1687, 1
        %v1784 = vsel %vm668, %v1782, %v1783
        %v1785 = vrot.slane %v1688, 1
        %v1786 = vsel %vm668, %v1783, %v1785
        %v1787 = vrot.slane %v1689, 1
        %v1788 = vrot.slane %v1690, 1
        %v1789 = vsel %vm668, %v1787, %v1788
        %v1790 = vrot.slane %v1691, 1
        %v1791 = vsel %vm668, %v1788, %v1790
        %v1792 = vrot.slane %v1692, 1
        %v1793 = vrot.slane %v1693, 1
        %v1794 = vsel %vm668, %v1792, %v1793
        %v1795 = vrot.slane %v1694, 1
        %v1796 = vsel %vm668, %v1793, %v1795
        %v1797 = vrot.slane %v1695, 1
        %v1798 = vrot.slane %v1696, 1
        %v1799 = vsel %vm668, %v1797, %v1798
        %v1800 = vrot.slane %v1697, 1
        %v1801 = vsel %vm668, %v1798, %v1800
        %v1802 = vrot.slane %v1698, 1
        %v1803 = vrot.slane %v1699, 1
        %v1804 = vsel %vm668, %v1802, %v1803
        %v1805 = vrot.slane %v1700, 1
        %v1806 = vsel %vm668, %v1803, %v1805
        %v1807 = vrot.slane %v1701, 1
        %v1808 = vrot.slane %v1702, 1
        %v1809 = vsel %vm668, %v1807, %v1808
        %v1810 = vrot.slane %v1703, 1
        %v1811 = vsel %vm668, %v1808, %v1810
        %v1812 = vrot.slane %v1704, 1
        %v1813 = vrot.slane %v1705, 1
        %v1814 = vsel %vm668, %v1812, %v1813
        %v1815 = vrot.slane %v1706, 1
        %v1816 = vsel %vm668, %v1813, %v1815
        %v1817 = vrot.slane %v1707, 1
        %v1818 = vrot.slane %v1708, 1
        %v1819 = vsel %vm668, %v1817, %v1818
        %v1820 = vrot.slane %v1709, 1
        %v1821 = vsel %vm668, %v1818, %v1820
        %v1822 = vrot.slane %v1710, 1
        %v1823 = vrot.slane %v1711, 1
        %v1824 = vsel %vm668, %v1822, %v1823
        %v1825 = vrot.slane %v1712, 1
        %v1826 = vsel %vm668, %v1823, %v1825
        %v1827 = vrot.slane %v1713, 1
        %v1828 = vrot.slane %v1714, 1
        %v1829 = vsel %vm668, %v1827, %v1828
        %v1830 = vrot.slane %v1715, 1
        %v1831 = vsel %vm668, %v1828, %v1830
        %v1832 = vrot.slane %v1716, 1
        %v1833 = vrot.slane %v1717, 1
        %v1834 = vsel %vm668, %v1832, %v1833
        %v1835 = vrot.slane %v1718, 1
        %v1836 = vsel %vm668, %v1833, %v1835
        %v1837 = vrot.slane %v1719, 1
        %v1838 = vrot.slane %v1720, 1
        %v1839 = vsel %vm668, %v1837, %v1838
        %v1840 = vrot.slane %v1721, 1
        %v1841 = vsel %vm668, %v1838, %v1840
        %v1842 = vrot.slane %v1722, 1
        %v1843 = vrot.slane %v1723, 1
        %v1844 = vsel %vm668, %v1842, %v1843
        %v1845 = vrot.slane %v1724, 1
        %v1846 = vsel %vm668, %v1843, %v1845
        %v1847 = vrot.slane %v1725, 1
        %v1848 = vrot.slane %v1726, 1
        %v1849 = vsel %vm668, %v1847, %v1848
        %v1850 = vrot.slane %v1727, 1
        %v1851 = vsel %vm668, %v1848, %v1850
        %v1852 = vrot.slane %v1728, 1
        %v1853 = vrot.slane %v1729, 1
        %v1854 = vsel %vm668, %v1852, %v1853
        %v1855 = vrot.slane %v1730, 1
        %v1856 = vsel %vm668, %v1853, %v1855
        %v1857 = vrot.slane %v1731, 1
        %v1858 = vrot.slane %v1732, 1
        %v1859 = vsel %vm668, %v1857, %v1858
        %v1860 = vrot.slane %v1733, 1
        %v1861 = vsel %vm668, %v1858, %v1860
        %v1894 = vadd.f32 %v1650, %v1784
        %v1895 = vadd.f32 %v1651, %v1786
        %v1896 = vadd.f32 %v1652, %v1789
        %v1897 = vadd.f32 %v1653, %v1791
        %v1898 = vadd.f32 %v1654, %v1794
        %v1899 = vadd.f32 %v1655, %v1796
        %v1900 = vadd.f32 %v1656, %v1799
        %v1901 = vadd.f32 %v1657, %v1801
        %v1902 = vadd.f32 %v1658, %v1804
        %v1903 = vadd.f32 %v1659, %v1806
        %v1904 = vadd.f32 %v1660, %v1809
        %v1905 = vadd.f32 %v1661, %v1811
        %v1906 = vadd.f32 %v1662, %v1814
        %v1907 = vadd.f32 %v1663, %v1816
        %v1908 = vadd.f32 %v1664, %v1819
        %v1909 = vadd.f32 %v1665, %v1821
        %v1910 = vadd.f32 %v1666, %v1824
        %v1911 = vadd.f32 %v1667, %v1826
        %v1912 = vadd.f32 %v1668, %v1829
        %v1913 = vadd.f32 %v1669, %v1831
        %v1914 = vadd.f32 %v1670, %v1834
        %v1915 = vadd.f32 %v1671, %v1836
        %v1916 = vadd.f32 %v1672, %v1839
        %v1917 = vadd.f32 %v1673, %v1841
        %v1918 = vadd.f32 %v1674, %v1844
        %v1919 = vadd.f32 %v1675, %v1846
        %v1920 = vadd.f32 %v1676, %v1849
        %v1921 = vadd.f32 %v1677, %v1851
        %v1922 = vadd.f32 %v1678, %v1854
        %v1923 = vadd.f32 %v1679, %v1856
        %v1924 = vadd.f32 %v1680, %v1859
        %v1925 = vadd.f32 %v1681, %v1861
        %v1926 = vlaneseq
        %v1927 = vshrl.u32 %v1926, 7
        %v1928 = vsub.s32 2, %v1927
        %v1929 = vrot.slane %v499, %v1928
        %v1930 = vmul.f32 %v449, %v1929
        %v1931 = vmul.f32 %v450, %v1929
        %v1932 = vmul.f32 %v451, %v1929
        %v1933 = vmul.f32 %v452, %v1929
        %v1934 = vmul.f32 %v453, %v1929
        %v1935 = vmul.f32 %v454, %v1929
        %v1936 = vmul.f32 %v455, %v1929
        %v1937 = vmul.f32 %v456, %v1929
        %v1938 = vmul.f32 %v457, %v1929
        %v1939 = vmul.f32 %v458, %v1929
        %v1940 = vmul.f32 %v459, %v1929
        %v1941 = vmul.f32 %v460, %v1929
        %v1942 = vmul.f32 %v461, %v1929
        %v1943 = vmul.f32 %v462, %v1929
        %v1944 = vmul.f32 %v463, %v1929
        %v1945 = vmul.f32 %v464, %v1929
        %v1946 = vmul.f32 %v465, %v1929
        %v1947 = vmul.f32 %v466, %v1929
        %v1948 = vmul.f32 %v467, %v1929
        %v1949 = vmul.f32 %v468, %v1929
        %v1950 = vmul.f32 %v469, %v1929
        %v1951 = vmul.f32 %v470, %v1929
        %v1952 = vmul.f32 %v471, %v1929
        %v1953 = vmul.f32 %v472, %v1929
        %v1954 = vmul.f32 %v473, %v1929
        %v1955 = vmul.f32 %v474, %v1929
        %v1956 = vmul.f32 %v475, %v1929
        %v1957 = vmul.f32 %v476, %v1929
        %v1958 = vmul.f32 %v477, %v1929
        %v1959 = vmul.f32 %v478, %v1929
        %v1960 = vmul.f32 %v479, %v1929
        %v1961 = vmul.f32 %v480, %v1929
        %v1962 = vmul.f32 %v481, %v1929
        %v1963 = vmul.f32 %v482, %v1929
        %v1964 = vmul.f32 %v483, %v1929
        %v1965 = vmul.f32 %v484, %v1929
        %v1966 = vmul.f32 %v485, %v1929
        %v1967 = vmul.f32 %v486, %v1929
        %v1968 = vmul.f32 %v487, %v1929
        %v1969 = vmul.f32 %v488, %v1929
        %v1970 = vmul.f32 %v489, %v1929
        %v1971 = vmul.f32 %v490, %v1929
        %v1972 = vmul.f32 %v491, %v1929
        %v1973 = vmul.f32 %v492, %v1929
        %v1974 = vmul.f32 %v493, %v1929
        %v1975 = vmul.f32 %v494, %v1929
        %v1976 = vmul.f32 %v495, %v1929
        %v1977 = vmul.f32 %v496, %v1929
        %v2026 = vrot.slane %v1930, 2
        %v2027 = vrot.slane %v1931, 2
        %v2028 = vsel %vm913, %v2026, %v2027
        %v2029 = vrot.slane %v1932, 2
        %v2030 = vsel %vm913, %v2027, %v2029
        %v2031 = vrot.slane %v1933, 2
        %v2032 = vrot.slane %v1934, 2
        %v2033 = vsel %vm913, %v2031, %v2032
        %v2034 = vrot.slane %v1935, 2
        %v2035 = vsel %vm913, %v2032, %v2034
        %v2036 = vrot.slane %v1936, 2
        %v2037 = vrot.slane %v1937, 2
        %v2038 = vsel %vm913, %v2036, %v2037
        %v2039 = vrot.slane %v1938, 2
        %v2040 = vsel %vm913, %v2037, %v2039
        %v2041 = vrot.slane %v1939, 2
        %v2042 = vrot.slane %v1940, 2
        %v2043 = vsel %vm913, %v2041, %v2042
        %v2044 = vrot.slane %v1941, 2
        %v2045 = vsel %vm913, %v2042, %v2044
        %v2046 = vrot.slane %v1942, 2
        %v2047 = vrot.slane %v1943, 2
        %v2048 = vsel %vm913, %v2046, %v2047
        %v2049 = vrot.slane %v1944, 2
        %v2050 = vsel %vm913, %v2047, %v2049
        %v2051 = vrot.slane %v1945, 2
        %v2052 = vrot.slane %v1946, 2
        %v2053 = vsel %vm913, %v2051, %v2052
        %v2054 = vrot.slane %v1947, 2
        %v2055 = vsel %vm913, %v2052, %v2054
        %v2056 = vrot.slane %v1948, 2
        %v2057 = vrot.slane %v1949, 2
        %v2058 = vsel %vm913, %v2056, %v2057
        %v2059 = vrot.slane %v1950, 2
        %v2060 = vsel %vm913, %v2057, %v2059
        %v2061 = vrot.slane %v1951, 2
        %v2062 = vrot.slane %v1952, 2
        %v2063 = vsel %vm913, %v2061, %v2062
        %v2064 = vrot.slane %v1953, 2
        %v2065 = vsel %vm913, %v2062, %v2064
        %v2066 = vrot.slane %v1954, 2
        %v2067 = vrot.slane %v1955, 2
        %v2068 = vsel %vm913, %v2066, %v2067
        %v2069 = vrot.slane %v1956, 2
        %v2070 = vsel %vm913, %v2067, %v2069
        %v2071 = vrot.slane %v1957, 2
        %v2072 = vrot.slane %v1958, 2
        %v2073 = vsel %vm913, %v2071, %v2072
        %v2074 = vrot.slane %v1959, 2
        %v2075 = vsel %vm913, %v2072, %v2074
        %v2076 = vrot.slane %v1960, 2
        %v2077 = vrot.slane %v1961, 2
        %v2078 = vsel %vm913, %v2076, %v2077
        %v2079 = vrot.slane %v1962, 2
        %v2080 = vsel %vm913, %v2077, %v2079
        %v2081 = vrot.slane %v1963, 2
        %v2082 = vrot.slane %v1964, 2
        %v2083 = vsel %vm913, %v2081, %v2082
        %v2084 = vrot.slane %v1965, 2
        %v2085 = vsel %vm913, %v2082, %v2084
        %v2086 = vrot.slane %v1966, 2
        %v2087 = vrot.slane %v1967, 2
        %v2088 = vsel %vm913, %v2086, %v2087
        %v2089 = vrot.slane %v1968, 2
        %v2090 = vsel %vm913, %v2087, %v2089
        %v2091 = vrot.slane %v1969, 2
        %v2092 = vrot.slane %v1970, 2
        %v2093 = vsel %vm913, %v2091, %v2092
        %v2094 = vrot.slane %v1971, 2
        %v2095 = vsel %vm913, %v2092, %v2094
        %v2096 = vrot.slane %v1972, 2
        %v2097 = vrot.slane %v1973, 2
        %v2098 = vsel %vm913, %v2096, %v2097
        %v2099 = vrot.slane %v1974, 2
        %v2100 = vsel %vm913, %v2097, %v2099
        %v2101 = vrot.slane %v1975, 2
        %v2102 = vrot.slane %v1976, 2
        %v2103 = vsel %vm913, %v2101, %v2102
        %v2104 = vrot.slane %v1977, 2
        %v2105 = vsel %vm913, %v2102, %v2104
        %v2138 = vadd.f32 %v1894, %v2028
        %v2139 = vadd.f32 %v1895, %v2030
        %v2140 = vadd.f32 %v1896, %v2033
        %v2141 = vadd.f32 %v1897, %v2035
        %v2142 = vadd.f32 %v1898, %v2038
        %v2143 = vadd.f32 %v1899, %v2040
        %v2144 = vadd.f32 %v1900, %v2043
        %v2145 = vadd.f32 %v1901, %v2045
        %v2146 = vadd.f32 %v1902, %v2048
        %v2147 = vadd.f32 %v1903, %v2050
        %v2148 = vadd.f32 %v1904, %v2053
        %v2149 = vadd.f32 %v1905, %v2055
        %v2150 = vadd.f32 %v1906, %v2058
        %v2151 = vadd.f32 %v1907, %v2060
        %v2152 = vadd.f32 %v1908, %v2063
        %v2153 = vadd.f32 %v1909, %v2065
        %v2154 = vadd.f32 %v1910, %v2068
        %v2155 = vadd.f32 %v1911, %v2070
        %v2156 = vadd.f32 %v1912, %v2073
        %v2157 = vadd.f32 %v1913, %v2075
        %v2158 = vadd.f32 %v1914, %v2078
        %v2159 = vadd.f32 %v1915, %v2080
        %v2160 = vadd.f32 %v1916, %v2083
        %v2161 = vadd.f32 %v1917, %v2085
        %v2162 = vadd.f32 %v1918, %v2088
        %v2163 = vadd.f32 %v1919, %v2090
        %v2164 = vadd.f32 %v1920, %v2093
        %v2165 = vadd.f32 %v1921, %v2095
        %v2166 = vadd.f32 %v1922, %v2098
        %v2167 = vadd.f32 %v1923, %v2100
        %v2168 = vadd.f32 %v1924, %v2103
        %v2169 = vadd.f32 %v1925, %v2105
        %v2170 = vsel %vm387, %v2138, 0.0
        %2171 = vadd.xlane.f32.xlu0 %v2170
        %v2172 = vpop.xlane.xlu0 %2171
        %v2173 = vsel %vm387, %v2139, 0.0
        %2174 = vadd.xlane.f32.xlu0 %v2173
        %v2175 = vpop.xlane.xlu0 %2174
        %v2176 = vsel %vm387, %v2140, 0.0
        %2177 = vadd.xlane.f32.xlu0 %v2176
        %v2178 = vpop.xlane.xlu0 %2177
        %v2179 = vsel %vm387, %v2141, 0.0
        %2180 = vadd.xlane.f32.xlu0 %v2179
        %v2181 = vpop.xlane.xlu0 %2180
        %v2182 = vsel %vm387, %v2142, 0.0
        %2183 = vadd.xlane.f32.xlu0 %v2182
        %v2184 = vpop.xlane.xlu0 %2183
        %v2185 = vsel %vm387, %v2143, 0.0
        %2186 = vadd.xlane.f32.xlu0 %v2185
        %v2187 = vpop.xlane.xlu0 %2186
        %v2188 = vsel %vm387, %v2144, 0.0
        %2189 = vadd.xlane.f32.xlu0 %v2188
        %v2190 = vpop.xlane.xlu0 %2189
        %v2191 = vsel %vm387, %v2145, 0.0
        %2192 = vadd.xlane.f32.xlu0 %v2191
        %v2193 = vpop.xlane.xlu0 %2192
        %v2194 = vsel %vm387, %v2146, 0.0
        %2195 = vadd.xlane.f32.xlu0 %v2194
        %v2196 = vpop.xlane.xlu0 %2195
        %v2197 = vsel %vm387, %v2147, 0.0
        %2198 = vadd.xlane.f32.xlu0 %v2197
        %v2199 = vpop.xlane.xlu0 %2198
        %v2200 = vsel %vm387, %v2148, 0.0
        %2201 = vadd.xlane.f32.xlu0 %v2200
        %v2202 = vpop.xlane.xlu0 %2201
        %v2203 = vsel %vm387, %v2149, 0.0
        %2204 = vadd.xlane.f32.xlu0 %v2203
        %v2205 = vpop.xlane.xlu0 %2204
        %v2206 = vsel %vm387, %v2150, 0.0
        %2207 = vadd.xlane.f32.xlu0 %v2206
        %v2208 = vpop.xlane.xlu0 %2207
        %v2209 = vsel %vm387, %v2151, 0.0
        %2210 = vadd.xlane.f32.xlu0 %v2209
        %v2211 = vpop.xlane.xlu0 %2210
        %v2212 = vsel %vm387, %v2152, 0.0
        %2213 = vadd.xlane.f32.xlu0 %v2212
        %v2214 = vpop.xlane.xlu0 %2213
        %v2215 = vsel %vm387, %v2153, 0.0
        %2216 = vadd.xlane.f32.xlu0 %v2215
        %v2217 = vpop.xlane.xlu0 %2216
        %v2218 = vsel %vm387, %v2154, 0.0
        %2219 = vadd.xlane.f32.xlu0 %v2218
        %v2220 = vpop.xlane.xlu0 %2219
        %v2221 = vsel %vm387, %v2155, 0.0
        %2222 = vadd.xlane.f32.xlu0 %v2221
        %v2223 = vpop.xlane.xlu0 %2222
        %v2224 = vsel %vm387, %v2156, 0.0
        %2225 = vadd.xlane.f32.xlu0 %v2224
        %v2226 = vpop.xlane.xlu0 %2225
        %v2227 = vsel %vm387, %v2157, 0.0
        %2228 = vadd.xlane.f32.xlu0 %v2227
        %v2229 = vpop.xlane.xlu0 %2228
        %v2230 = vsel %vm387, %v2158, 0.0
        %2231 = vadd.xlane.f32.xlu0 %v2230
        %v2232 = vpop.xlane.xlu0 %2231
        %v2233 = vsel %vm387, %v2159, 0.0
        %2234 = vadd.xlane.f32.xlu0 %v2233
        %v2235 = vpop.xlane.xlu0 %2234
        %v2236 = vsel %vm387, %v2160, 0.0
        %2237 = vadd.xlane.f32.xlu0 %v2236
        %v2238 = vpop.xlane.xlu0 %2237
        %v2239 = vsel %vm387, %v2161, 0.0
        %2240 = vadd.xlane.f32.xlu0 %v2239
        %v2241 = vpop.xlane.xlu0 %2240
        %v2242 = vsel %vm387, %v2162, 0.0
        %2243 = vadd.xlane.f32.xlu0 %v2242
        %v2244 = vpop.xlane.xlu0 %2243
        %v2245 = vsel %vm387, %v2163, 0.0
        %2246 = vadd.xlane.f32.xlu0 %v2245
        %v2247 = vpop.xlane.xlu0 %2246
        %v2248 = vsel %vm387, %v2164, 0.0
        %2249 = vadd.xlane.f32.xlu0 %v2248
        %v2250 = vpop.xlane.xlu0 %2249
        %v2251 = vsel %vm387, %v2165, 0.0
        %2252 = vadd.xlane.f32.xlu0 %v2251
        %v2253 = vpop.xlane.xlu0 %2252
        %v2254 = vsel %vm387, %v2166, 0.0
        %2255 = vadd.xlane.f32.xlu0 %v2254
        %v2256 = vpop.xlane.xlu0 %2255
        %v2257 = vsel %vm387, %v2167, 0.0
        %2258 = vadd.xlane.f32.xlu0 %v2257
        %v2259 = vpop.xlane.xlu0 %2258
        %v2260 = vsel %vm387, %v2168, 0.0
        %2261 = vadd.xlane.f32.xlu0 %v2260
        %v2262 = vpop.xlane.xlu0 %2261
        %v2263 = vsel %vm387, %v2169, 0.0
        %2264 = vadd.xlane.f32.xlu0 %v2263
        %v2265 = vpop.xlane.xlu0 %2264
        %vm2266 = vcmask 7168
        %2267 = vst.msk [vmem:[#allocation2] sm:$0xff] %vm2266, %v2172
        %2268 = vst.msk [vmem:[#allocation2 + $0x8] sm:$0xff] %vm2266, %v2175
        %2269 = vst.msk [vmem:[#allocation2 + $0x10] sm:$0xff] %vm2266, %v2178
        %2270 = vst.msk [vmem:[#allocation2 + $0x18] sm:$0xff] %vm2266, %v2181
        %2271 = vst.msk [vmem:[#allocation2 + $0x20] sm:$0xff] %vm2266, %v2184
        %2272 = vst.msk [vmem:[#allocation2 + $0x28] sm:$0xff] %vm2266, %v2187
        %2273 = vst.msk [vmem:[#allocation2 + $0x30] sm:$0xff] %vm2266, %v2190
        %2274 = vst.msk [vmem:[#allocation2 + $0x38] sm:$0xff] %vm2266, %v2193
        %2275 = vst.msk [vmem:[#allocation2 + $0x40] sm:$0xff] %vm2266, %v2196
        %2276 = vst.msk [vmem:[#allocation2 + $0x48] sm:$0xff] %vm2266, %v2199
        %2277 = vst.msk [vmem:[#allocation2 + $0x50] sm:$0xff] %vm2266, %v2202
        %2278 = vst.msk [vmem:[#allocation2 + $0x58] sm:$0xff] %vm2266, %v2205
        %2279 = vst.msk [vmem:[#allocation2 + $0x60] sm:$0xff] %vm2266, %v2208
        %2280 = vst.msk [vmem:[#allocation2 + $0x68] sm:$0xff] %vm2266, %v2211
        %2281 = vst.msk [vmem:[#allocation2 + $0x70] sm:$0xff] %vm2266, %v2214
        %2282 = vst.msk [vmem:[#allocation2 + $0x78] sm:$0xff] %vm2266, %v2217
        %2283 = vst.msk [vmem:[#allocation2 + $0x80] sm:$0xff] %vm2266, %v2220
        %2284 = vst.msk [vmem:[#allocation2 + $0x88] sm:$0xff] %vm2266, %v2223
        %2285 = vst.msk [vmem:[#allocation2 + $0x90] sm:$0xff] %vm2266, %v2226
        %2286 = vst.msk [vmem:[#allocation2 + $0x98] sm:$0xff] %vm2266, %v2229
        %2287 = vst.msk [vmem:[#allocation2 + $0xa0] sm:$0xff] %vm2266, %v2232
        %2288 = vst.msk [vmem:[#allocation2 + $0xa8] sm:$0xff] %vm2266, %v2235
        %2289 = vst.msk [vmem:[#allocation2 + $0xb0] sm:$0xff] %vm2266, %v2238
        %2290 = vst.msk [vmem:[#allocation2 + $0xb8] sm:$0xff] %vm2266, %v2241
        %2291 = vst.msk [vmem:[#allocation2 + $0xc0] sm:$0xff] %vm2266, %v2244
        %2292 = vst.msk [vmem:[#allocation2 + $0xc8] sm:$0xff] %vm2266, %v2247
        %2293 = vst.msk [vmem:[#allocation2 + $0xd0] sm:$0xff] %vm2266, %v2250
        %2294 = vst.msk [vmem:[#allocation2 + $0xd8] sm:$0xff] %vm2266, %v2253
        %2295 = vst.msk [vmem:[#allocation2 + $0xe0] sm:$0xff] %vm2266, %v2256
        %2296 = vst.msk [vmem:[#allocation2 + $0xe8] sm:$0xff] %vm2266, %v2259
        %2297 = vst.msk [vmem:[#allocation2 + $0xf0] sm:$0xff] %vm2266, %v2262
        %2298 = vst.msk [vmem:[#allocation2 + $0xf8] sm:$0xff] %vm2266, %v2265
      $region52: #{tpu_custom_call.1} parent=47 // pred_fallthru
        _
      %v2299 = vlaneseq
      %v2300 = vshrl.u32 %v2299, 7
      %v2301 = vsub.s32 0, %v2300
      %v2302 = vrot.slane %v380, %v2301
      %v2303 = vmul.f32 %v326, %v2302
      %v2304 = vmul.f32 %v327, %v2302
      %v2305 = vmul.f32 %v329, %v2302
      %v2306 = vmul.f32 %v330, %v2302
      %v2307 = vmul.f32 %v332, %v2302
      %v2308 = vmul.f32 %v333, %v2302
      %v2309 = vmul.f32 %v335, %v2302
      %v2310 = vmul.f32 %v336, %v2302
      %v2311 = vmul.f32 %v338, %v2302
      %v2312 = vmul.f32 %v339, %v2302
      %v2313 = vmul.f32 %v341, %v2302
      %v2314 = vmul.f32 %v342, %v2302
      %v2315 = vmul.f32 %v344, %v2302
      %v2316 = vmul.f32 %v345, %v2302
      %v2317 = vmul.f32 %v347, %v2302
      %v2318 = vmul.f32 %v348, %v2302
      %v2319 = vmul.f32 %v350, %v2302
      %v2320 = vmul.f32 %v351, %v2302
      %v2321 = vmul.f32 %v353, %v2302
      %v2322 = vmul.f32 %v354, %v2302
      %v2323 = vmul.f32 %v356, %v2302
      %v2324 = vmul.f32 %v357, %v2302
      %v2325 = vmul.f32 %v359, %v2302
      %v2326 = vmul.f32 %v360, %v2302
      %v2327 = vmul.f32 %v362, %v2302
      %v2328 = vmul.f32 %v363, %v2302
      %v2329 = vmul.f32 %v365, %v2302
      %v2330 = vmul.f32 %v366, %v2302
      %v2331 = vmul.f32 %v368, %v2302
      %v2332 = vmul.f32 %v369, %v2302
      %v2333 = vmul.f32 %v371, %v2302
      %v2334 = vmul.f32 %v372, %v2302
      %v2335 = vadd.f32 %v2303, 0.0
      %v2336 = vadd.f32 %v2304, 0.0
      %v2337 = vadd.f32 %v2305, 0.0
      %v2338 = vadd.f32 %v2306, 0.0
      %v2339 = vadd.f32 %v2307, 0.0
      %v2340 = vadd.f32 %v2308, 0.0
      %v2341 = vadd.f32 %v2309, 0.0
      %v2342 = vadd.f32 %v2310, 0.0
      %v2343 = vadd.f32 %v2311, 0.0
      %v2344 = vadd.f32 %v2312, 0.0
      %v2345 = vadd.f32 %v2313, 0.0
      %v2346 = vadd.f32 %v2314, 0.0
      %v2347 = vadd.f32 %v2315, 0.0
      %v2348 = vadd.f32 %v2316, 0.0
      %v2349 = vadd.f32 %v2317, 0.0
      %v2350 = vadd.f32 %v2318, 0.0
      %v2351 = vadd.f32 %v2319, 0.0
      %v2352 = vadd.f32 %v2320, 0.0
      %v2353 = vadd.f32 %v2321, 0.0
      %v2354 = vadd.f32 %v2322, 0.0
      %v2355 = vadd.f32 %v2323, 0.0
      %v2356 = vadd.f32 %v2324, 0.0
      %v2357 = vadd.f32 %v2325, 0.0
      %v2358 = vadd.f32 %v2326, 0.0
      %v2359 = vadd.f32 %v2327, 0.0
      %v2360 = vadd.f32 %v2328, 0.0
      %v2361 = vadd.f32 %v2329, 0.0
      %v2362 = vadd.f32 %v2330, 0.0
      %v2363 = vadd.f32 %v2331, 0.0
      %v2364 = vadd.f32 %v2332, 0.0
      %v2365 = vadd.f32 %v2333, 0.0
      %v2366 = vadd.f32 %v2334, 0.0
      %v2367 = vlaneseq
      %v2368 = vshrl.u32 %v2367, 7
      %v2369 = vsub.s32 1, %v2368
      %v2370 = vrot.slane %v380, %v2369
      %v2371 = vmul.f32 %v326, %v2370
      %v2372 = vmul.f32 %v327, %v2370
      %v2373 = vmul.f32 %v328, %v2370
      %v2374 = vmul.f32 %v329, %v2370
      %v2375 = vmul.f32 %v330, %v2370
      %v2376 = vmul.f32 %v331, %v2370
      %v2377 = vmul.f32 %v332, %v2370
      %v2378 = vmul.f32 %v333, %v2370
      %v2379 = vmul.f32 %v334, %v2370
      %v2380 = vmul.f32 %v335, %v2370
      %v2381 = vmul.f32 %v336, %v2370
      %v2382 = vmul.f32 %v337, %v2370
      %v2383 = vmul.f32 %v338, %v2370
      %v2384 = vmul.f32 %v339, %v2370
      %v2385 = vmul.f32 %v340, %v2370
      %v2386 = vmul.f32 %v341, %v2370
      %v2387 = vmul.f32 %v342, %v2370
      %v2388 = vmul.f32 %v343, %v2370
      %v2389 = vmul.f32 %v344, %v2370
      %v2390 = vmul.f32 %v345, %v2370
      %v2391 = vmul.f32 %v346, %v2370
      %v2392 = vmul.f32 %v347, %v2370
      %v2393 = vmul.f32 %v348, %v2370
      %v2394 = vmul.f32 %v349, %v2370
      %v2395 = vmul.f32 %v350, %v2370
      %v2396 = vmul.f32 %v351, %v2370
      %v2397 = vmul.f32 %v352, %v2370
      %v2398 = vmul.f32 %v353, %v2370
      %v2399 = vmul.f32 %v354, %v2370
      %v2400 = vmul.f32 %v355, %v2370
      %v2401 = vmul.f32 %v356, %v2370
      %v2402 = vmul.f32 %v357, %v2370
      %v2403 = vmul.f32 %v358, %v2370
      %v2404 = vmul.f32 %v359, %v2370
      %v2405 = vmul.f32 %v360, %v2370
      %v2406 = vmul.f32 %v361, %v2370
      %v2407 = vmul.f32 %v362, %v2370
      %v2408 = vmul.f32 %v363, %v2370
      %v2409 = vmul.f32 %v364, %v2370
      %v2410 = vmul.f32 %v365, %v2370
      %v2411 = vmul.f32 %v366, %v2370
      %v2412 = vmul.f32 %v367, %v2370
      %v2413 = vmul.f32 %v368, %v2370
      %v2414 = vmul.f32 %v369, %v2370
      %v2415 = vmul.f32 %v370, %v2370
      %v2416 = vmul.f32 %v371, %v2370
      %v2417 = vmul.f32 %v372, %v2370
      %v2418 = vmul.f32 %v373, %v2370
      %vm2467 = vcmask 1046528
      %v2468 = vrot.slane %v2371, 1
      %v2469 = vrot.slane %v2372, 1
      %v2470 = vsel %vm2467, %v2468, %v2469
      %v2471 = vrot.slane %v2373, 1
      %v2472 = vsel %vm2467, %v2469, %v2471
      %v2473 = vrot.slane %v2374, 1
      %v2474 = vrot.slane %v2375, 1
      %v2475 = vsel %vm2467, %v2473, %v2474
      %v2476 = vrot.slane %v2376, 1
      %v2477 = vsel %vm2467, %v2474, %v2476
      %v2478 = vrot.slane %v2377, 1
      %v2479 = vrot.slane %v2378, 1
      %v2480 = vsel %vm2467, %v2478, %v2479
      %v2481 = vrot.slane %v2379, 1
      %v2482 = vsel %vm2467, %v2479, %v2481
      %v2483 = vrot.slane %v2380, 1
      %v2484 = vrot.slane %v2381, 1
      %v2485 = vsel %vm2467, %v2483, %v2484
      %v2486 = vrot.slane %v2382, 1
      %v2487 = vsel %vm2467, %v2484, %v2486
      %v2488 = vrot.slane %v2383, 1
      %v2489 = vrot.slane %v2384, 1
      %v2490 = vsel %vm2467, %v2488, %v2489
      %v2491 = vrot.slane %v2385, 1
      %v2492 = vsel %vm2467, %v2489, %v2491
      %v2493 = vrot.slane %v2386, 1
      %v2494 = vrot.slane %v2387, 1
      %v2495 = vsel %vm2467, %v2493, %v2494
      %v2496 = vrot.slane %v2388, 1
      %v2497 = vsel %vm2467, %v2494, %v2496
      %v2498 = vrot.slane %v2389, 1
      %v2499 = vrot.slane %v2390, 1
      %v2500 = vsel %vm2467, %v2498, %v2499
      %v2501 = vrot.slane %v2391, 1
      %v2502 = vsel %vm2467, %v2499, %v2501
      %v2503 = vrot.slane %v2392, 1
      %v2504 = vrot.slane %v2393, 1
      %v2505 = vsel %vm2467, %v2503, %v2504
      %v2506 = vrot.slane %v2394, 1
      %v2507 = vsel %vm2467, %v2504, %v2506
      %v2508 = vrot.slane %v2395, 1
      %v2509 = vrot.slane %v2396, 1
      %v2510 = vsel %vm2467, %v2508, %v2509
      %v2511 = vrot.slane %v2397, 1
      %v2512 = vsel %vm2467, %v2509, %v2511
      %v2513 = vrot.slane %v2398, 1
      %v2514 = vrot.slane %v2399, 1
      %v2515 = vsel %vm2467, %v2513, %v2514
      %v2516 = vrot.slane %v2400, 1
      %v2517 = vsel %vm2467, %v2514, %v2516
      %v2518 = vrot.slane %v2401, 1
      %v2519 = vrot.slane %v2402, 1
      %v2520 = vsel %vm2467, %v2518, %v2519
      %v2521 = vrot.slane %v2403, 1
      %v2522 = vsel %vm2467, %v2519, %v2521
      %v2523 = vrot.slane %v2404, 1
      %v2524 = vrot.slane %v2405, 1
      %v2525 = vsel %vm2467, %v2523, %v2524
      %v2526 = vrot.slane %v2406, 1
      %v2527 = vsel %vm2467, %v2524, %v2526
      %v2528 = vrot.slane %v2407, 1
      %v2529 = vrot.slane %v2408, 1
      %v2530 = vsel %vm2467, %v2528, %v2529
      %v2531 = vrot.slane %v2409, 1
      %v2532 = vsel %vm2467, %v2529, %v2531
      %v2533 = vrot.slane %v2410, 1
      %v2534 = vrot.slane %v2411, 1
      %v2535 = vsel %vm2467, %v2533, %v2534
      %v2536 = vrot.slane %v2412, 1
      %v2537 = vsel %vm2467, %v2534, %v2536
      %v2538 = vrot.slane %v2413, 1
      %v2539 = vrot.slane %v2414, 1
      %v2540 = vsel %vm2467, %v2538, %v2539
      %v2541 = vrot.slane %v2415, 1
      %v2542 = vsel %vm2467, %v2539, %v2541
      %v2543 = vrot.slane %v2416, 1
      %v2544 = vrot.slane %v2417, 1
      %v2545 = vsel %vm2467, %v2543, %v2544
      %v2546 = vrot.slane %v2418, 1
      %v2547 = vsel %vm2467, %v2544, %v2546
      %v2580 = vadd.f32 %v2335, %v2470
      %v2581 = vadd.f32 %v2336, %v2472
      %v2582 = vadd.f32 %v2337, %v2475
      %v2583 = vadd.f32 %v2338, %v2477
      %v2584 = vadd.f32 %v2339, %v2480
      %v2585 = vadd.f32 %v2340, %v2482
      %v2586 = vadd.f32 %v2341, %v2485
      %v2587 = vadd.f32 %v2342, %v2487
      %v2588 = vadd.f32 %v2343, %v2490
      %v2589 = vadd.f32 %v2344, %v2492
      %v2590 = vadd.f32 %v2345, %v2495
      %v2591 = vadd.f32 %v2346, %v2497
      %v2592 = vadd.f32 %v2347, %v2500
      %v2593 = vadd.f32 %v2348, %v2502
      %v2594 = vadd.f32 %v2349, %v2505
      %v2595 = vadd.f32 %v2350, %v2507
      %v2596 = vadd.f32 %v2351, %v2510
      %v2597 = vadd.f32 %v2352, %v2512
      %v2598 = vadd.f32 %v2353, %v2515
      %v2599 = vadd.f32 %v2354, %v2517
      %v2600 = vadd.f32 %v2355, %v2520
      %v2601 = vadd.f32 %v2356, %v2522
      %v2602 = vadd.f32 %v2357, %v2525
      %v2603 = vadd.f32 %v2358, %v2527
      %v2604 = vadd.f32 %v2359, %v2530
      %v2605 = vadd.f32 %v2360, %v2532
      %v2606 = vadd.f32 %v2361, %v2535
      %v2607 = vadd.f32 %v2362, %v2537
      %v2608 = vadd.f32 %v2363, %v2540
      %v2609 = vadd.f32 %v2364, %v2542
      %v2610 = vadd.f32 %v2365, %v2545
      %v2611 = vadd.f32 %v2366, %v2547
      %v2612 = vlaneseq
      %v2613 = vshrl.u32 %v2612, 7
      %v2614 = vsub.s32 2, %v2613
      %v2615 = vrot.slane %v380, %v2614
      %v2616 = vmul.f32 %v326, %v2615
      %v2617 = vmul.f32 %v327, %v2615
      %v2618 = vmul.f32 %v328, %v2615
      %v2619 = vmul.f32 %v329, %v2615
      %v2620 = vmul.f32 %v330, %v2615
      %v2621 = vmul.f32 %v331, %v2615
      %v2622 = vmul.f32 %v332, %v2615
      %v2623 = vmul.f32 %v333, %v2615
      %v2624 = vmul.f32 %v334, %v2615
      %v2625 = vmul.f32 %v335, %v2615
      %v2626 = vmul.f32 %v336, %v2615
      %v2627 = vmul.f32 %v337, %v2615
      %v2628 = vmul.f32 %v338, %v2615
      %v2629 = vmul.f32 %v339, %v2615
      %v2630 = vmul.f32 %v340, %v2615
      %v2631 = vmul.f32 %v341, %v2615
      %v2632 = vmul.f32 %v342, %v2615
      %v2633 = vmul.f32 %v343, %v2615
      %v2634 = vmul.f32 %v344, %v2615
      %v2635 = vmul.f32 %v345, %v2615
      %v2636 = vmul.f32 %v346, %v2615
      %v2637 = vmul.f32 %v347, %v2615
      %v2638 = vmul.f32 %v348, %v2615
      %v2639 = vmul.f32 %v349, %v2615
      %v2640 = vmul.f32 %v350, %v2615
      %v2641 = vmul.f32 %v351, %v2615
      %v2642 = vmul.f32 %v352, %v2615
      %v2643 = vmul.f32 %v353, %v2615
      %v2644 = vmul.f32 %v354, %v2615
      %v2645 = vmul.f32 %v355, %v2615
      %v2646 = vmul.f32 %v356, %v2615
      %v2647 = vmul.f32 %v357, %v2615
      %v2648 = vmul.f32 %v358, %v2615
      %v2649 = vmul.f32 %v359, %v2615
      %v2650 = vmul.f32 %v360, %v2615
      %v2651 = vmul.f32 %v361, %v2615
      %v2652 = vmul.f32 %v362, %v2615
      %v2653 = vmul.f32 %v363, %v2615
      %v2654 = vmul.f32 %v364, %v2615
      %v2655 = vmul.f32 %v365, %v2615
      %v2656 = vmul.f32 %v366, %v2615
      %v2657 = vmul.f32 %v367, %v2615
      %v2658 = vmul.f32 %v368, %v2615
      %v2659 = vmul.f32 %v369, %v2615
      %v2660 = vmul.f32 %v370, %v2615
      %v2661 = vmul.f32 %v371, %v2615
      %v2662 = vmul.f32 %v372, %v2615
      %v2663 = vmul.f32 %v373, %v2615
      %vm2712 = vcmask 1045504
      %v2713 = vrot.slane %v2616, 2
      %v2714 = vrot.slane %v2617, 2
      %v2715 = vsel %vm2712, %v2713, %v2714
      %v2716 = vrot.slane %v2618, 2
      %v2717 = vsel %vm2712, %v2714, %v2716
      %v2718 = vrot.slane %v2619, 2
      %v2719 = vrot.slane %v2620, 2
      %v2720 = vsel %vm2712, %v2718, %v2719
      %v2721 = vrot.slane %v2621, 2
      %v2722 = vsel %vm2712, %v2719, %v2721
      %v2723 = vrot.slane %v2622, 2
      %v2724 = vrot.slane %v2623, 2
      %v2725 = vsel %vm2712, %v2723, %v2724
      %v2726 = vrot.slane %v2624, 2
      %v2727 = vsel %vm2712, %v2724, %v2726
      %v2728 = vrot.slane %v2625, 2
      %v2729 = vrot.slane %v2626, 2
      %v2730 = vsel %vm2712, %v2728, %v2729
      %v2731 = vrot.slane %v2627, 2
      %v2732 = vsel %vm2712, %v2729, %v2731
      %v2733 = vrot.slane %v2628, 2
      %v2734 = vrot.slane %v2629, 2
      %v2735 = vsel %vm2712, %v2733, %v2734
      %v2736 = vrot.slane %v2630, 2
      %v2737 = vsel %vm2712, %v2734, %v2736
      %v2738 = vrot.slane %v2631, 2
      %v2739 = vrot.slane %v2632, 2
      %v2740 = vsel %vm2712, %v2738, %v2739
      %v2741 = vrot.slane %v2633, 2
      %v2742 = vsel %vm2712, %v2739, %v2741
      %v2743 = vrot.slane %v2634, 2
      %v2744 = vrot.slane %v2635, 2
      %v2745 = vsel %vm2712, %v2743, %v2744
      %v2746 = vrot.slane %v2636, 2
      %v2747 = vsel %vm2712, %v2744, %v2746
      %v2748 = vrot.slane %v2637, 2
      %v2749 = vrot.slane %v2638, 2
      %v2750 = vsel %vm2712, %v2748, %v2749
      %v2751 = vrot.slane %v2639, 2
      %v2752 = vsel %vm2712, %v2749, %v2751
      %v2753 = vrot.slane %v2640, 2
      %v2754 = vrot.slane %v2641, 2
      %v2755 = vsel %vm2712, %v2753, %v2754
      %v2756 = vrot.slane %v2642, 2
      %v2757 = vsel %vm2712, %v2754, %v2756
      %v2758 = vrot.slane %v2643, 2
      %v2759 = vrot.slane %v2644, 2
      %v2760 = vsel %vm2712, %v2758, %v2759
      %v2761 = vrot.slane %v2645, 2
      %v2762 = vsel %vm2712, %v2759, %v2761
      %v2763 = vrot.slane %v2646, 2
      %v2764 = vrot.slane %v2647, 2
      %v2765 = vsel %vm2712, %v2763, %v2764
      %v2766 = vrot.slane %v2648, 2
      %v2767 = vsel %vm2712, %v2764, %v2766
      %v2768 = vrot.slane %v2649, 2
      %v2769 = vrot.slane %v2650, 2
      %v2770 = vsel %vm2712, %v2768, %v2769
      %v2771 = vrot.slane %v2651, 2
      %v2772 = vsel %vm2712, %v2769, %v2771
      %v2773 = vrot.slane %v2652, 2
      %v2774 = vrot.slane %v2653, 2
      %v2775 = vsel %vm2712, %v2773, %v2774
      %v2776 = vrot.slane %v2654, 2
      %v2777 = vsel %vm2712, %v2774, %v2776
      %v2778 = vrot.slane %v2655, 2
      %v2779 = vrot.slane %v2656, 2
      %v2780 = vsel %vm2712, %v2778, %v2779
      %v2781 = vrot.slane %v2657, 2
      %v2782 = vsel %vm2712, %v2779, %v2781
      %v2783 = vrot.slane %v2658, 2
      %v2784 = vrot.slane %v2659, 2
      %v2785 = vsel %vm2712, %v2783, %v2784
      %v2786 = vrot.slane %v2660, 2
      %v2787 = vsel %vm2712, %v2784, %v2786
      %v2788 = vrot.slane %v2661, 2
      %v2789 = vrot.slane %v2662, 2
      %v2790 = vsel %vm2712, %v2788, %v2789
      %v2791 = vrot.slane %v2663, 2
      %v2792 = vsel %vm2712, %v2789, %v2791
      %v2825 = vadd.f32 %v2580, %v2715
      %v2826 = vadd.f32 %v2581, %v2717
      %v2827 = vadd.f32 %v2582, %v2720
      %v2828 = vadd.f32 %v2583, %v2722
      %v2829 = vadd.f32 %v2584, %v2725
      %v2830 = vadd.f32 %v2585, %v2727
      %v2831 = vadd.f32 %v2586, %v2730
      %v2832 = vadd.f32 %v2587, %v2732
      %v2833 = vadd.f32 %v2588, %v2735
      %v2834 = vadd.f32 %v2589, %v2737
      %v2835 = vadd.f32 %v2590, %v2740
      %v2836 = vadd.f32 %v2591, %v2742
      %v2837 = vadd.f32 %v2592, %v2745
      %v2838 = vadd.f32 %v2593, %v2747
      %v2839 = vadd.f32 %v2594, %v2750
      %v2840 = vadd.f32 %v2595, %v2752
      %v2841 = vadd.f32 %v2596, %v2755
      %v2842 = vadd.f32 %v2597, %v2757
      %v2843 = vadd.f32 %v2598, %v2760
      %v2844 = vadd.f32 %v2599, %v2762
      %v2845 = vadd.f32 %v2600, %v2765
      %v2846 = vadd.f32 %v2601, %v2767
      %v2847 = vadd.f32 %v2602, %v2770
      %v2848 = vadd.f32 %v2603, %v2772
      %v2849 = vadd.f32 %v2604, %v2775
      %v2850 = vadd.f32 %v2605, %v2777
      %v2851 = vadd.f32 %v2606, %v2780
      %v2852 = vadd.f32 %v2607, %v2782
      %v2853 = vadd.f32 %v2608, %v2785
      %v2854 = vadd.f32 %v2609, %v2787
      %v2855 = vadd.f32 %v2610, %v2790
      %v2856 = vadd.f32 %v2611, %v2792
      %v2857 = vlaneseq
      %v2858 = vshrl.u32 %v2857, 7
      %v2859 = vsub.s32 0, %v2858
      %v2860 = vrot.slane %v381, %v2859
      %v2861 = vmul.f32 %v329, %v2860
      %v2862 = vmul.f32 %v330, %v2860
      %v2863 = vmul.f32 %v332, %v2860
      %v2864 = vmul.f32 %v333, %v2860
      %v2865 = vmul.f32 %v335, %v2860
      %v2866 = vmul.f32 %v336, %v2860
      %v2867 = vmul.f32 %v338, %v2860
      %v2868 = vmul.f32 %v339, %v2860
      %v2869 = vmul.f32 %v341, %v2860
      %v2870 = vmul.f32 %v342, %v2860
      %v2871 = vmul.f32 %v344, %v2860
      %v2872 = vmul.f32 %v345, %v2860
      %v2873 = vmul.f32 %v347, %v2860
      %v2874 = vmul.f32 %v348, %v2860
      %v2875 = vmul.f32 %v350, %v2860
      %v2876 = vmul.f32 %v351, %v2860
      %v2877 = vmul.f32 %v353, %v2860
      %v2878 = vmul.f32 %v354, %v2860
      %v2879 = vmul.f32 %v356, %v2860
      %v2880 = vmul.f32 %v357, %v2860
      %v2881 = vmul.f32 %v359, %v2860
      %v2882 = vmul.f32 %v360, %v2860
      %v2883 = vmul.f32 %v362, %v2860
      %v2884 = vmul.f32 %v363, %v2860
      %v2885 = vmul.f32 %v365, %v2860
      %v2886 = vmul.f32 %v366, %v2860
      %v2887 = vmul.f32 %v368, %v2860
      %v2888 = vmul.f32 %v369, %v2860
      %v2889 = vmul.f32 %v371, %v2860
      %v2890 = vmul.f32 %v372, %v2860
      %v2891 = vmul.f32 %v374, %v2860
      %v2892 = vmul.f32 %v375, %v2860
      %v2893 = vadd.f32 %v2825, %v2861
      %v2894 = vadd.f32 %v2826, %v2862
      %v2895 = vadd.f32 %v2827, %v2863
      %v2896 = vadd.f32 %v2828, %v2864
      %v2897 = vadd.f32 %v2829, %v2865
      %v2898 = vadd.f32 %v2830, %v2866
      %v2899 = vadd.f32 %v2831, %v2867
      %v2900 = vadd.f32 %v2832, %v2868
      %v2901 = vadd.f32 %v2833, %v2869
      %v2902 = vadd.f32 %v2834, %v2870
      %v2903 = vadd.f32 %v2835, %v2871
      %v2904 = vadd.f32 %v2836, %v2872
      %v2905 = vadd.f32 %v2837, %v2873
      %v2906 = vadd.f32 %v2838, %v2874
      %v2907 = vadd.f32 %v2839, %v2875
      %v2908 = vadd.f32 %v2840, %v2876
      %v2909 = vadd.f32 %v2841, %v2877
      %v2910 = vadd.f32 %v2842, %v2878
      %v2911 = vadd.f32 %v2843, %v2879
      %v2912 = vadd.f32 %v2844, %v2880
      %v2913 = vadd.f32 %v2845, %v2881
      %v2914 = vadd.f32 %v2846, %v2882
      %v2915 = vadd.f32 %v2847, %v2883
      %v2916 = vadd.f32 %v2848, %v2884
      %v2917 = vadd.f32 %v2849, %v2885
      %v2918 = vadd.f32 %v2850, %v2886
      %v2919 = vadd.f32 %v2851, %v2887
      %v2920 = vadd.f32 %v2852, %v2888
      %v2921 = vadd.f32 %v2853, %v2889
      %v2922 = vadd.f32 %v2854, %v2890
      %v2923 = vadd.f32 %v2855, %v2891
      %v2924 = vadd.f32 %v2856, %v2892
      %v2925 = vlaneseq
      %v2926 = vshrl.u32 %v2925, 7
      %v2927 = vsub.s32 1, %v2926
      %v2928 = vrot.slane %v381, %v2927
      %v2929 = vmul.f32 %v329, %v2928
      %v2930 = vmul.f32 %v330, %v2928
      %v2931 = vmul.f32 %v331, %v2928
      %v2932 = vmul.f32 %v332, %v2928
      %v2933 = vmul.f32 %v333, %v2928
      %v2934 = vmul.f32 %v334, %v2928
      %v2935 = vmul.f32 %v335, %v2928
      %v2936 = vmul.f32 %v336, %v2928
      %v2937 = vmul.f32 %v337, %v2928
      %v2938 = vmul.f32 %v338, %v2928
      %v2939 = vmul.f32 %v339, %v2928
      %v2940 = vmul.f32 %v340, %v2928
      %v2941 = vmul.f32 %v341, %v2928
      %v2942 = vmul.f32 %v342, %v2928
      %v2943 = vmul.f32 %v343, %v2928
      %v2944 = vmul.f32 %v344, %v2928
      %v2945 = vmul.f32 %v345, %v2928
      %v2946 = vmul.f32 %v346, %v2928
      %v2947 = vmul.f32 %v347, %v2928
      %v2948 = vmul.f32 %v348, %v2928
      %v2949 = vmul.f32 %v349, %v2928
      %v2950 = vmul.f32 %v350, %v2928
      %v2951 = vmul.f32 %v351, %v2928
      %v2952 = vmul.f32 %v352, %v2928
      %v2953 = vmul.f32 %v353, %v2928
      %v2954 = vmul.f32 %v354, %v2928
      %v2955 = vmul.f32 %v355, %v2928
      %v2956 = vmul.f32 %v356, %v2928
      %v2957 = vmul.f32 %v357, %v2928
      %v2958 = vmul.f32 %v358, %v2928
      %v2959 = vmul.f32 %v359, %v2928
      %v2960 = vmul.f32 %v360, %v2928
      %v2961 = vmul.f32 %v361, %v2928
      %v2962 = vmul.f32 %v362, %v2928
      %v2963 = vmul.f32 %v363, %v2928
      %v2964 = vmul.f32 %v364, %v2928
      %v2965 = vmul.f32 %v365, %v2928
      %v2966 = vmul.f32 %v366, %v2928
      %v2967 = vmul.f32 %v367, %v2928
      %v2968 = vmul.f32 %v368, %v2928
      %v2969 = vmul.f32 %v369, %v2928
      %v2970 = vmul.f32 %v370, %v2928
      %v2971 = vmul.f32 %v371, %v2928
      %v2972 = vmul.f32 %v372, %v2928
      %v2973 = vmul.f32 %v373, %v2928
      %v2974 = vmul.f32 %v374, %v2928
      %v2975 = vmul.f32 %v375, %v2928
      %v2976 = vmul.f32 %v376, %v2928
      %v3025 = vrot.slane %v2929, 1
      %v3026 = vrot.slane %v2930, 1
      %v3027 = vsel %vm2467, %v3025, %v3026
      %v3028 = vrot.slane %v2931, 1
      %v3029 = vsel %vm2467, %v3026, %v3028
      %v3030 = vrot.slane %v2932, 1
      %v3031 = vrot.slane %v2933, 1
      %v3032 = vsel %vm2467, %v3030, %v3031
      %v3033 = vrot.slane %v2934, 1
      %v3034 = vsel %vm2467, %v3031, %v3033
      %v3035 = vrot.slane %v2935, 1
      %v3036 = vrot.slane %v2936, 1
      %v3037 = vsel %vm2467, %v3035, %v3036
      %v3038 = vrot.slane %v2937, 1
      %v3039 = vsel %vm2467, %v3036, %v3038
      %v3040 = vrot.slane %v2938, 1
      %v3041 = vrot.slane %v2939, 1
      %v3042 = vsel %vm2467, %v3040, %v3041
      %v3043 = vrot.slane %v2940, 1
      %v3044 = vsel %vm2467, %v3041, %v3043
      %v3045 = vrot.slane %v2941, 1
      %v3046 = vrot.slane %v2942, 1
      %v3047 = vsel %vm2467, %v3045, %v3046
      %v3048 = vrot.slane %v2943, 1
      %v3049 = vsel %vm2467, %v3046, %v3048
      %v3050 = vrot.slane %v2944, 1
      %v3051 = vrot.slane %v2945, 1
      %v3052 = vsel %vm2467, %v3050, %v3051
      %v3053 = vrot.slane %v2946, 1
      %v3054 = vsel %vm2467, %v3051, %v3053
      %v3055 = vrot.slane %v2947, 1
      %v3056 = vrot.slane %v2948, 1
      %v3057 = vsel %vm2467, %v3055, %v3056
      %v3058 = vrot.slane %v2949, 1
      %v3059 = vsel %vm2467, %v3056, %v3058
      %v3060 = vrot.slane %v2950, 1
      %v3061 = vrot.slane %v2951, 1
      %v3062 = vsel %vm2467, %v3060, %v3061
      %v3063 = vrot.slane %v2952, 1
      %v3064 = vsel %vm2467, %v3061, %v3063
      %v3065 = vrot.slane %v2953, 1
      %v3066 = vrot.slane %v2954, 1
      %v3067 = vsel %vm2467, %v3065, %v3066
      %v3068 = vrot.slane %v2955, 1
      %v3069 = vsel %vm2467, %v3066, %v3068
      %v3070 = vrot.slane %v2956, 1
      %v3071 = vrot.slane %v2957, 1
      %v3072 = vsel %vm2467, %v3070, %v3071
      %v3073 = vrot.slane %v2958, 1
      %v3074 = vsel %vm2467, %v3071, %v3073
      %v3075 = vrot.slane %v2959, 1
      %v3076 = vrot.slane %v2960, 1
      %v3077 = vsel %vm2467, %v3075, %v3076
      %v3078 = vrot.slane %v2961, 1
      %v3079 = vsel %vm2467, %v3076, %v3078
      %v3080 = vrot.slane %v2962, 1
      %v3081 = vrot.slane %v2963, 1
      %v3082 = vsel %vm2467, %v3080, %v3081
      %v3083 = vrot.slane %v2964, 1
      %v3084 = vsel %vm2467, %v3081, %v3083
      %v3085 = vrot.slane %v2965, 1
      %v3086 = vrot.slane %v2966, 1
      %v3087 = vsel %vm2467, %v3085, %v3086
      %v3088 = vrot.slane %v2967, 1
      %v3089 = vsel %vm2467, %v3086, %v3088
      %v3090 = vrot.slane %v2968, 1
      %v3091 = vrot.slane %v2969, 1
      %v3092 = vsel %vm2467, %v3090, %v3091
      %v3093 = vrot.slane %v2970, 1
      %v3094 = vsel %vm2467, %v3091, %v3093
      %v3095 = vrot.slane %v2971, 1
      %v3096 = vrot.slane %v2972, 1
      %v3097 = vsel %vm2467, %v3095, %v3096
      %v3098 = vrot.slane %v2973, 1
      %v3099 = vsel %vm2467, %v3096, %v3098
      %v3100 = vrot.slane %v2974, 1
      %v3101 = vrot.slane %v2975, 1
      %v3102 = vsel %vm2467, %v3100, %v3101
      %v3103 = vrot.slane %v2976, 1
      %v3104 = vsel %vm2467, %v3101, %v3103
      %v3137 = vadd.f32 %v2893, %v3027
      %v3138 = vadd.f32 %v2894, %v3029
      %v3139 = vadd.f32 %v2895, %v3032
      %v3140 = vadd.f32 %v2896, %v3034
      %v3141 = vadd.f32 %v2897, %v3037
      %v3142 = vadd.f32 %v2898, %v3039
      %v3143 = vadd.f32 %v2899, %v3042
      %v3144 = vadd.f32 %v2900, %v3044
      %v3145 = vadd.f32 %v2901, %v3047
      %v3146 = vadd.f32 %v2902, %v3049
      %v3147 = vadd.f32 %v2903, %v3052
      %v3148 = vadd.f32 %v2904, %v3054
      %v3149 = vadd.f32 %v2905, %v3057
      %v3150 = vadd.f32 %v2906, %v3059
      %v3151 = vadd.f32 %v2907, %v3062
      %v3152 = vadd.f32 %v2908, %v3064
      %v3153 = vadd.f32 %v2909, %v3067
      %v3154 = vadd.f32 %v2910, %v3069
      %v3155 = vadd.f32 %v2911, %v3072
      %v3156 = vadd.f32 %v2912, %v3074
      %v3157 = vadd.f32 %v2913, %v3077
      %v3158 = vadd.f32 %v2914, %v3079
      %v3159 = vadd.f32 %v2915, %v3082
      %v3160 = vadd.f32 %v2916, %v3084
      %v3161 = vadd.f32 %v2917, %v3087
      %v3162 = vadd.f32 %v2918, %v3089
      %v3163 = vadd.f32 %v2919, %v3092
      %v3164 = vadd.f32 %v2920, %v3094
      %v3165 = vadd.f32 %v2921, %v3097
      %v3166 = vadd.f32 %v2922, %v3099
      %v3167 = vadd.f32 %v2923, %v3102
      %v3168 = vadd.f32 %v2924, %v3104
      %v3169 = vlaneseq
      %v3170 = vshrl.u32 %v3169, 7
      %v3171 = vsub.s32 2, %v3170
      %v3172 = vrot.slane %v381, %v3171
      %v3173 = vmul.f32 %v329, %v3172
      %v3174 = vmul.f32 %v330, %v3172
      %v3175 = vmul.f32 %v331, %v3172
      %v3176 = vmul.f32 %v332, %v3172
      %v3177 = vmul.f32 %v333, %v3172
      %v3178 = vmul.f32 %v334, %v3172
      %v3179 = vmul.f32 %v335, %v3172
      %v3180 = vmul.f32 %v336, %v3172
      %v3181 = vmul.f32 %v337, %v3172
      %v3182 = vmul.f32 %v338, %v3172
      %v3183 = vmul.f32 %v339, %v3172
      %v3184 = vmul.f32 %v340, %v3172
      %v3185 = vmul.f32 %v341, %v3172
      %v3186 = vmul.f32 %v342, %v3172
      %v3187 = vmul.f32 %v343, %v3172
      %v3188 = vmul.f32 %v344, %v3172
      %v3189 = vmul.f32 %v345, %v3172
      %v3190 = vmul.f32 %v346, %v3172
      %v3191 = vmul.f32 %v347, %v3172
      %v3192 = vmul.f32 %v348, %v3172
      %v3193 = vmul.f32 %v349, %v3172
      %v3194 = vmul.f32 %v350, %v3172
      %v3195 = vmul.f32 %v351, %v3172
      %v3196 = vmul.f32 %v352, %v3172
      %v3197 = vmul.f32 %v353, %v3172
      %v3198 = vmul.f32 %v354, %v3172
      %v3199 = vmul.f32 %v355, %v3172
      %v3200 = vmul.f32 %v356, %v3172
      %v3201 = vmul.f32 %v357, %v3172
      %v3202 = vmul.f32 %v358, %v3172
      %v3203 = vmul.f32 %v359, %v3172
      %v3204 = vmul.f32 %v360, %v3172
      %v3205 = vmul.f32 %v361, %v3172
      %v3206 = vmul.f32 %v362, %v3172
      %v3207 = vmul.f32 %v363, %v3172
      %v3208 = vmul.f32 %v364, %v3172
      %v3209 = vmul.f32 %v365, %v3172
      %v3210 = vmul.f32 %v366, %v3172
      %v3211 = vmul.f32 %v367, %v3172
      %v3212 = vmul.f32 %v368, %v3172
      %v3213 = vmul.f32 %v369, %v3172
      %v3214 = vmul.f32 %v370, %v3172
      %v3215 = vmul.f32 %v371, %v3172
      %v3216 = vmul.f32 %v372, %v3172
      %v3217 = vmul.f32 %v373, %v3172
      %v3218 = vmul.f32 %v374, %v3172
      %v3219 = vmul.f32 %v375, %v3172
      %v3220 = vmul.f32 %v376, %v3172
      %v3269 = vrot.slane %v3173, 2
      %v3270 = vrot.slane %v3174, 2
      %v3271 = vsel %vm2712, %v3269, %v3270
      %v3272 = vrot.slane %v3175, 2
      %v3273 = vsel %vm2712, %v3270, %v3272
      %v3274 = vrot.slane %v3176, 2
      %v3275 = vrot.slane %v3177, 2
      %v3276 = vsel %vm2712, %v3274, %v3275
      %v3277 = vrot.slane %v3178, 2
      %v3278 = vsel %vm2712, %v3275, %v3277
      %v3279 = vrot.slane %v3179, 2
      %v3280 = vrot.slane %v3180, 2
      %v3281 = vsel %vm2712, %v3279, %v3280
      %v3282 = vrot.slane %v3181, 2
      %v3283 = vsel %vm2712, %v3280, %v3282
      %v3284 = vrot.slane %v3182, 2
      %v3285 = vrot.slane %v3183, 2
      %v3286 = vsel %vm2712, %v3284, %v3285
      %v3287 = vrot.slane %v3184, 2
      %v3288 = vsel %vm2712, %v3285, %v3287
      %v3289 = vrot.slane %v3185, 2
      %v3290 = vrot.slane %v3186, 2
      %v3291 = vsel %vm2712, %v3289, %v3290
      %v3292 = vrot.slane %v3187, 2
      %v3293 = vsel %vm2712, %v3290, %v3292
      %v3294 = vrot.slane %v3188, 2
      %v3295 = vrot.slane %v3189, 2
      %v3296 = vsel %vm2712, %v3294, %v3295
      %v3297 = vrot.slane %v3190, 2
      %v3298 = vsel %vm2712, %v3295, %v3297
      %v3299 = vrot.slane %v3191, 2
      %v3300 = vrot.slane %v3192, 2
      %v3301 = vsel %vm2712, %v3299, %v3300
      %v3302 = vrot.slane %v3193, 2
      %v3303 = vsel %vm2712, %v3300, %v3302
      %v3304 = vrot.slane %v3194, 2
      %v3305 = vrot.slane %v3195, 2
      %v3306 = vsel %vm2712, %v3304, %v3305
      %v3307 = vrot.slane %v3196, 2
      %v3308 = vsel %vm2712, %v3305, %v3307
      %v3309 = vrot.slane %v3197, 2
      %v3310 = vrot.slane %v3198, 2
      %v3311 = vsel %vm2712, %v3309, %v3310
      %v3312 = vrot.slane %v3199, 2
      %v3313 = vsel %vm2712, %v3310, %v3312
      %v3314 = vrot.slane %v3200, 2
      %v3315 = vrot.slane %v3201, 2
      %v3316 = vsel %vm2712, %v3314, %v3315
      %v3317 = vrot.slane %v3202, 2
      %v3318 = vsel %vm2712, %v3315, %v3317
      %v3319 = vrot.slane %v3203, 2
      %v3320 = vrot.slane %v3204, 2
      %v3321 = vsel %vm2712, %v3319, %v3320
      %v3322 = vrot.slane %v3205, 2
      %v3323 = vsel %vm2712, %v3320, %v3322
      %v3324 = vrot.slane %v3206, 2
      %v3325 = vrot.slane %v3207, 2
      %v3326 = vsel %vm2712, %v3324, %v3325
      %v3327 = vrot.slane %v3208, 2
      %v3328 = vsel %vm2712, %v3325, %v3327
      %v3329 = vrot.slane %v3209, 2
      %v3330 = vrot.slane %v3210, 2
      %v3331 = vsel %vm2712, %v3329, %v3330
      %v3332 = vrot.slane %v3211, 2
      %v3333 = vsel %vm2712, %v3330, %v3332
      %v3334 = vrot.slane %v3212, 2
      %v3335 = vrot.slane %v3213, 2
      %v3336 = vsel %vm2712, %v3334, %v3335
      %v3337 = vrot.slane %v3214, 2
      %v3338 = vsel %vm2712, %v3335, %v3337
      %v3339 = vrot.slane %v3215, 2
      %v3340 = vrot.slane %v3216, 2
      %v3341 = vsel %vm2712, %v3339, %v3340
      %v3342 = vrot.slane %v3217, 2
      %v3343 = vsel %vm2712, %v3340, %v3342
      %v3344 = vrot.slane %v3218, 2
      %v3345 = vrot.slane %v3219, 2
      %v3346 = vsel %vm2712, %v3344, %v3345
      %v3347 = vrot.slane %v3220, 2
      %v3348 = vsel %vm2712, %v3345, %v3347
      %v3381 = vadd.f32 %v3137, %v3271
      %v3382 = vadd.f32 %v3138, %v3273
      %v3383 = vadd.f32 %v3139, %v3276
      %v3384 = vadd.f32 %v3140, %v3278
      %v3385 = vadd.f32 %v3141, %v3281
      %v3386 = vadd.f32 %v3142, %v3283
      %v3387 = vadd.f32 %v3143, %v3286
      %v3388 = vadd.f32 %v3144, %v3288
      %v3389 = vadd.f32 %v3145, %v3291
      %v3390 = vadd.f32 %v3146, %v3293
      %v3391 = vadd.f32 %v3147, %v3296
      %v3392 = vadd.f32 %v3148, %v3298
      %v3393 = vadd.f32 %v3149, %v3301
      %v3394 = vadd.f32 %v3150, %v3303
      %v3395 = vadd.f32 %v3151, %v3306
      %v3396 = vadd.f32 %v3152, %v3308
      %v3397 = vadd.f32 %v3153, %v3311
      %v3398 = vadd.f32 %v3154, %v3313
      %v3399 = vadd.f32 %v3155, %v3316
      %v3400 = vadd.f32 %v3156, %v3318
      %v3401 = vadd.f32 %v3157, %v3321
      %v3402 = vadd.f32 %v3158, %v3323
      %v3403 = vadd.f32 %v3159, %v3326
      %v3404 = vadd.f32 %v3160, %v3328
      %v3405 = vadd.f32 %v3161, %v3331
      %v3406 = vadd.f32 %v3162, %v3333
      %v3407 = vadd.f32 %v3163, %v3336
      %v3408 = vadd.f32 %v3164, %v3338
      %v3409 = vadd.f32 %v3165, %v3341
      %v3410 = vadd.f32 %v3166, %v3343
      %v3411 = vadd.f32 %v3167, %v3346
      %v3412 = vadd.f32 %v3168, %v3348
      %v3413 = vlaneseq
      %v3414 = vshrl.u32 %v3413, 7
      %v3415 = vsub.s32 0, %v3414
      %v3416 = vrot.slane %v382, %v3415
      %v3417 = vmul.f32 %v332, %v3416
      %v3418 = vmul.f32 %v333, %v3416
      %v3419 = vmul.f32 %v335, %v3416
      %v3420 = vmul.f32 %v336, %v3416
      %v3421 = vmul.f32 %v338, %v3416
      %v3422 = vmul.f32 %v339, %v3416
      %v3423 = vmul.f32 %v341, %v3416
      %v3424 = vmul.f32 %v342, %v3416
      %v3425 = vmul.f32 %v344, %v3416
      %v3426 = vmul.f32 %v345, %v3416
      %v3427 = vmul.f32 %v347, %v3416
      %v3428 = vmul.f32 %v348, %v3416
      %v3429 = vmul.f32 %v350, %v3416
      %v3430 = vmul.f32 %v351, %v3416
      %v3431 = vmul.f32 %v353, %v3416
      %v3432 = vmul.f32 %v354, %v3416
      %v3433 = vmul.f32 %v356, %v3416
      %v3434 = vmul.f32 %v357, %v3416
      %v3435 = vmul.f32 %v359, %v3416
      %v3436 = vmul.f32 %v360, %v3416
      %v3437 = vmul.f32 %v362, %v3416
      %v3438 = vmul.f32 %v363, %v3416
      %v3439 = vmul.f32 %v365, %v3416
      %v3440 = vmul.f32 %v366, %v3416
      %v3441 = vmul.f32 %v368, %v3416
      %v3442 = vmul.f32 %v369, %v3416
      %v3443 = vmul.f32 %v371, %v3416
      %v3444 = vmul.f32 %v372, %v3416
      %v3445 = vmul.f32 %v374, %v3416
      %v3446 = vmul.f32 %v375, %v3416
      %v3447 = vmul.f32 %v377, %v3416
      %v3448 = vmul.f32 %v378, %v3416
      %v3449 = vadd.f32 %v3381, %v3417
      %v3450 = vadd.f32 %v3382, %v3418
      %v3451 = vadd.f32 %v3383, %v3419
      %v3452 = vadd.f32 %v3384, %v3420
      %v3453 = vadd.f32 %v3385, %v3421
      %v3454 = vadd.f32 %v3386, %v3422
      %v3455 = vadd.f32 %v3387, %v3423
      %v3456 = vadd.f32 %v3388, %v3424
      %v3457 = vadd.f32 %v3389, %v3425
      %v3458 = vadd.f32 %v3390, %v3426
      %v3459 = vadd.f32 %v3391, %v3427
      %v3460 = vadd.f32 %v3392, %v3428
      %v3461 = vadd.f32 %v3393, %v3429
      %v3462 = vadd.f32 %v3394, %v3430
      %v3463 = vadd.f32 %v3395, %v3431
      %v3464 = vadd.f32 %v3396, %v3432
      %v3465 = vadd.f32 %v3397, %v3433
      %v3466 = vadd.f32 %v3398, %v3434
      %v3467 = vadd.f32 %v3399, %v3435
      %v3468 = vadd.f32 %v3400, %v3436
      %v3469 = vadd.f32 %v3401, %v3437
      %v3470 = vadd.f32 %v3402, %v3438
      %v3471 = vadd.f32 %v3403, %v3439
      %v3472 = vadd.f32 %v3404, %v3440
      %v3473 = vadd.f32 %v3405, %v3441
      %v3474 = vadd.f32 %v3406, %v3442
      %v3475 = vadd.f32 %v3407, %v3443
      %v3476 = vadd.f32 %v3408, %v3444
      %v3477 = vadd.f32 %v3409, %v3445
      %v3478 = vadd.f32 %v3410, %v3446
      %v3479 = vadd.f32 %v3411, %v3447
      %v3480 = vadd.f32 %v3412, %v3448
      %v3481 = vlaneseq
      %v3482 = vshrl.u32 %v3481, 7
      %v3483 = vsub.s32 1, %v3482
      %v3484 = vrot.slane %v382, %v3483
      %v3485 = vmul.f32 %v332, %v3484
      %v3486 = vmul.f32 %v333, %v3484
      %v3487 = vmul.f32 %v334, %v3484
      %v3488 = vmul.f32 %v335, %v3484
      %v3489 = vmul.f32 %v336, %v3484
      %v3490 = vmul.f32 %v337, %v3484
      %v3491 = vmul.f32 %v338, %v3484
      %v3492 = vmul.f32 %v339, %v3484
      %v3493 = vmul.f32 %v340, %v3484
      %v3494 = vmul.f32 %v341, %v3484
      %v3495 = vmul.f32 %v342, %v3484
      %v3496 = vmul.f32 %v343, %v3484
      %v3497 = vmul.f32 %v344, %v3484
      %v3498 = vmul.f32 %v345, %v3484
      %v3499 = vmul.f32 %v346, %v3484
      %v3500 = vmul.f32 %v347, %v3484
      %v3501 = vmul.f32 %v348, %v3484
      %v3502 = vmul.f32 %v349, %v3484
      %v3503 = vmul.f32 %v350, %v3484
      %v3504 = vmul.f32 %v351, %v3484
      %v3505 = vmul.f32 %v352, %v3484
      %v3506 = vmul.f32 %v353, %v3484
      %v3507 = vmul.f32 %v354, %v3484
      %v3508 = vmul.f32 %v355, %v3484
      %v3509 = vmul.f32 %v356, %v3484
      %v3510 = vmul.f32 %v357, %v3484
      %v3511 = vmul.f32 %v358, %v3484
      %v3512 = vmul.f32 %v359, %v3484
      %v3513 = vmul.f32 %v360, %v3484
      %v3514 = vmul.f32 %v361, %v3484
      %v3515 = vmul.f32 %v362, %v3484
      %v3516 = vmul.f32 %v363, %v3484
      %v3517 = vmul.f32 %v364, %v3484
      %v3518 = vmul.f32 %v365, %v3484
      %v3519 = vmul.f32 %v366, %v3484
      %v3520 = vmul.f32 %v367, %v3484
      %v3521 = vmul.f32 %v368, %v3484
      %v3522 = vmul.f32 %v369, %v3484
      %v3523 = vmul.f32 %v370, %v3484
      %v3524 = vmul.f32 %v371, %v3484
      %v3525 = vmul.f32 %v372, %v3484
      %v3526 = vmul.f32 %v373, %v3484
      %v3527 = vmul.f32 %v374, %v3484
      %v3528 = vmul.f32 %v375, %v3484
      %v3529 = vmul.f32 %v376, %v3484
      %v3530 = vmul.f32 %v377, %v3484
      %v3531 = vmul.f32 %v378, %v3484
      %v3532 = vmul.f32 %v379, %v3484
      %v3581 = vrot.slane %v3485, 1
      %v3582 = vrot.slane %v3486, 1
      %v3583 = vsel %vm2467, %v3581, %v3582
      %v3584 = vrot.slane %v3487, 1
      %v3585 = vsel %vm2467, %v3582, %v3584
      %v3586 = vrot.slane %v3488, 1
      %v3587 = vrot.slane %v3489, 1
      %v3588 = vsel %vm2467, %v3586, %v3587
      %v3589 = vrot.slane %v3490, 1
      %v3590 = vsel %vm2467, %v3587, %v3589
      %v3591 = vrot.slane %v3491, 1
      %v3592 = vrot.slane %v3492, 1
      %v3593 = vsel %vm2467, %v3591, %v3592
      %v3594 = vrot.slane %v3493, 1
      %v3595 = vsel %vm2467, %v3592, %v3594
      %v3596 = vrot.slane %v3494, 1
      %v3597 = vrot.slane %v3495, 1
      %v3598 = vsel %vm2467, %v3596, %v3597
      %v3599 = vrot.slane %v3496, 1
      %v3600 = vsel %vm2467, %v3597, %v3599
      %v3601 = vrot.slane %v3497, 1
      %v3602 = vrot.slane %v3498, 1
      %v3603 = vsel %vm2467, %v3601, %v3602
      %v3604 = vrot.slane %v3499, 1
      %v3605 = vsel %vm2467, %v3602, %v3604
      %v3606 = vrot.slane %v3500, 1
      %v3607 = vrot.slane %v3501, 1
      %v3608 = vsel %vm2467, %v3606, %v3607
      %v3609 = vrot.slane %v3502, 1
      %v3610 = vsel %vm2467, %v3607, %v3609
      %v3611 = vrot.slane %v3503, 1
      %v3612 = vrot.slane %v3504, 1
      %v3613 = vsel %vm2467, %v3611, %v3612
      %v3614 = vrot.slane %v3505, 1
      %v3615 = vsel %vm2467, %v3612, %v3614
      %v3616 = vrot.slane %v3506, 1
      %v3617 = vrot.slane %v3507, 1
      %v3618 = vsel %vm2467, %v3616, %v3617
      %v3619 = vrot.slane %v3508, 1
      %v3620 = vsel %vm2467, %v3617, %v3619
      %v3621 = vrot.slane %v3509, 1
      %v3622 = vrot.slane %v3510, 1
      %v3623 = vsel %vm2467, %v3621, %v3622
      %v3624 = vrot.slane %v3511, 1
      %v3625 = vsel %vm2467, %v3622, %v3624
      %v3626 = vrot.slane %v3512, 1
      %v3627 = vrot.slane %v3513, 1
      %v3628 = vsel %vm2467, %v3626, %v3627
      %v3629 = vrot.slane %v3514, 1
      %v3630 = vsel %vm2467, %v3627, %v3629
      %v3631 = vrot.slane %v3515, 1
      %v3632 = vrot.slane %v3516, 1
      %v3633 = vsel %vm2467, %v3631, %v3632
      %v3634 = vrot.slane %v3517, 1
      %v3635 = vsel %vm2467, %v3632, %v3634
      %v3636 = vrot.slane %v3518, 1
      %v3637 = vrot.slane %v3519, 1
      %v3638 = vsel %vm2467, %v3636, %v3637
      %v3639 = vrot.slane %v3520, 1
      %v3640 = vsel %vm2467, %v3637, %v3639
      %v3641 = vrot.slane %v3521, 1
      %v3642 = vrot.slane %v3522, 1
      %v3643 = vsel %vm2467, %v3641, %v3642
      %v3644 = vrot.slane %v3523, 1
      %v3645 = vsel %vm2467, %v3642, %v3644
      %v3646 = vrot.slane %v3524, 1
      %v3647 = vrot.slane %v3525, 1
      %v3648 = vsel %vm2467, %v3646, %v3647
      %v3649 = vrot.slane %v3526, 1
      %v3650 = vsel %vm2467, %v3647, %v3649
      %v3651 = vrot.slane %v3527, 1
      %v3652 = vrot.slane %v3528, 1
      %v3653 = vsel %vm2467, %v3651, %v3652
      %v3654 = vrot.slane %v3529, 1
      %v3655 = vsel %vm2467, %v3652, %v3654
      %v3656 = vrot.slane %v3530, 1
      %v3657 = vrot.slane %v3531, 1
      %v3658 = vsel %vm2467, %v3656, %v3657
      %v3659 = vrot.slane %v3532, 1
      %v3660 = vsel %vm2467, %v3657, %v3659
      %v3693 = vadd.f32 %v3449, %v3583
      %v3694 = vadd.f32 %v3450, %v3585
      %v3695 = vadd.f32 %v3451, %v3588
      %v3696 = vadd.f32 %v3452, %v3590
      %v3697 = vadd.f32 %v3453, %v3593
      %v3698 = vadd.f32 %v3454, %v3595
      %v3699 = vadd.f32 %v3455, %v3598
      %v3700 = vadd.f32 %v3456, %v3600
      %v3701 = vadd.f32 %v3457, %v3603
      %v3702 = vadd.f32 %v3458, %v3605
      %v3703 = vadd.f32 %v3459, %v3608
      %v3704 = vadd.f32 %v3460, %v3610
      %v3705 = vadd.f32 %v3461, %v3613
      %v3706 = vadd.f32 %v3462, %v3615
      %v3707 = vadd.f32 %v3463, %v3618
      %v3708 = vadd.f32 %v3464, %v3620
      %v3709 = vadd.f32 %v3465, %v3623
      %v3710 = vadd.f32 %v3466, %v3625
      %v3711 = vadd.f32 %v3467, %v3628
      %v3712 = vadd.f32 %v3468, %v3630
      %v3713 = vadd.f32 %v3469, %v3633
      %v3714 = vadd.f32 %v3470, %v3635
      %v3715 = vadd.f32 %v3471, %v3638
      %v3716 = vadd.f32 %v3472, %v3640
      %v3717 = vadd.f32 %v3473, %v3643
      %v3718 = vadd.f32 %v3474, %v3645
      %v3719 = vadd.f32 %v3475, %v3648
      %v3720 = vadd.f32 %v3476, %v3650
      %v3721 = vadd.f32 %v3477, %v3653
      %v3722 = vadd.f32 %v3478, %v3655
      %v3723 = vadd.f32 %v3479, %v3658
      %v3724 = vadd.f32 %v3480, %v3660
      %v3725 = vlaneseq
      %v3726 = vshrl.u32 %v3725, 7
      %v3727 = vsub.s32 2, %v3726
      %v3728 = vrot.slane %v382, %v3727
      %v3729 = vmul.f32 %v332, %v3728
      %v3730 = vmul.f32 %v333, %v3728
      %v3731 = vmul.f32 %v334, %v3728
      %v3732 = vmul.f32 %v335, %v3728
      %v3733 = vmul.f32 %v336, %v3728
      %v3734 = vmul.f32 %v337, %v3728
      %v3735 = vmul.f32 %v338, %v3728
      %v3736 = vmul.f32 %v339, %v3728
      %v3737 = vmul.f32 %v340, %v3728
      %v3738 = vmul.f32 %v341, %v3728
      %v3739 = vmul.f32 %v342, %v3728
      %v3740 = vmul.f32 %v343, %v3728
      %v3741 = vmul.f32 %v344, %v3728
      %v3742 = vmul.f32 %v345, %v3728
      %v3743 = vmul.f32 %v346, %v3728
      %v3744 = vmul.f32 %v347, %v3728
      %v3745 = vmul.f32 %v348, %v3728
      %v3746 = vmul.f32 %v349, %v3728
      %v3747 = vmul.f32 %v350, %v3728
      %v3748 = vmul.f32 %v351, %v3728
      %v3749 = vmul.f32 %v352, %v3728
      %v3750 = vmul.f32 %v353, %v3728
      %v3751 = vmul.f32 %v354, %v3728
      %v3752 = vmul.f32 %v355, %v3728
      %v3753 = vmul.f32 %v356, %v3728
      %v3754 = vmul.f32 %v357, %v3728
      %v3755 = vmul.f32 %v358, %v3728
      %v3756 = vmul.f32 %v359, %v3728
      %v3757 = vmul.f32 %v360, %v3728
      %v3758 = vmul.f32 %v361, %v3728
      %v3759 = vmul.f32 %v362, %v3728
      %v3760 = vmul.f32 %v363, %v3728
      %v3761 = vmul.f32 %v364, %v3728
      %v3762 = vmul.f32 %v365, %v3728
      %v3763 = vmul.f32 %v366, %v3728
      %v3764 = vmul.f32 %v367, %v3728
      %v3765 = vmul.f32 %v368, %v3728
      %v3766 = vmul.f32 %v369, %v3728
      %v3767 = vmul.f32 %v370, %v3728
      %v3768 = vmul.f32 %v371, %v3728
      %v3769 = vmul.f32 %v372, %v3728
      %v3770 = vmul.f32 %v373, %v3728
      %v3771 = vmul.f32 %v374, %v3728
      %v3772 = vmul.f32 %v375, %v3728
      %v3773 = vmul.f32 %v376, %v3728
      %v3774 = vmul.f32 %v377, %v3728
      %v3775 = vmul.f32 %v378, %v3728
      %v3776 = vmul.f32 %v379, %v3728
      %v3825 = vrot.slane %v3729, 2
      %v3826 = vrot.slane %v3730, 2
      %v3827 = vsel %vm2712, %v3825, %v3826
      %v3828 = vrot.slane %v3731, 2
      %v3829 = vsel %vm2712, %v3826, %v3828
      %v3830 = vrot.slane %v3732, 2
      %v3831 = vrot.slane %v3733, 2
      %v3832 = vsel %vm2712, %v3830, %v3831
      %v3833 = vrot.slane %v3734, 2
      %v3834 = vsel %vm2712, %v3831, %v3833
      %v3835 = vrot.slane %v3735, 2
      %v3836 = vrot.slane %v3736, 2
      %v3837 = vsel %vm2712, %v3835, %v3836
      %v3838 = vrot.slane %v3737, 2
      %v3839 = vsel %vm2712, %v3836, %v3838
      %v3840 = vrot.slane %v3738, 2
      %v3841 = vrot.slane %v3739, 2
      %v3842 = vsel %vm2712, %v3840, %v3841
      %v3843 = vrot.slane %v3740, 2
      %v3844 = vsel %vm2712, %v3841, %v3843
      %v3845 = vrot.slane %v3741, 2
      %v3846 = vrot.slane %v3742, 2
      %v3847 = vsel %vm2712, %v3845, %v3846
      %v3848 = vrot.slane %v3743, 2
      %v3849 = vsel %vm2712, %v3846, %v3848
      %v3850 = vrot.slane %v3744, 2
      %v3851 = vrot.slane %v3745, 2
      %v3852 = vsel %vm2712, %v3850, %v3851
      %v3853 = vrot.slane %v3746, 2
      %v3854 = vsel %vm2712, %v3851, %v3853
      %v3855 = vrot.slane %v3747, 2
      %v3856 = vrot.slane %v3748, 2
      %v3857 = vsel %vm2712, %v3855, %v3856
      %v3858 = vrot.slane %v3749, 2
      %v3859 = vsel %vm2712, %v3856, %v3858
      %v3860 = vrot.slane %v3750, 2
      %v3861 = vrot.slane %v3751, 2
      %v3862 = vsel %vm2712, %v3860, %v3861
      %v3863 = vrot.slane %v3752, 2
      %v3864 = vsel %vm2712, %v3861, %v3863
      %v3865 = vrot.slane %v3753, 2
      %v3866 = vrot.slane %v3754, 2
      %v3867 = vsel %vm2712, %v3865, %v3866
      %v3868 = vrot.slane %v3755, 2
      %v3869 = vsel %vm2712, %v3866, %v3868
      %v3870 = vrot.slane %v3756, 2
      %v3871 = vrot.slane %v3757, 2
      %v3872 = vsel %vm2712, %v3870, %v3871
      %v3873 = vrot.slane %v3758, 2
      %v3874 = vsel %vm2712, %v3871, %v3873
      %v3875 = vrot.slane %v3759, 2
      %v3876 = vrot.slane %v3760, 2
      %v3877 = vsel %vm2712, %v3875, %v3876
      %v3878 = vrot.slane %v3761, 2
      %v3879 = vsel %vm2712, %v3876, %v3878
      %v3880 = vrot.slane %v3762, 2
      %v3881 = vrot.slane %v3763, 2
      %v3882 = vsel %vm2712, %v3880, %v3881
      %v3883 = vrot.slane %v3764, 2
      %v3884 = vsel %vm2712, %v3881, %v3883
      %v3885 = vrot.slane %v3765, 2
      %v3886 = vrot.slane %v3766, 2
      %v3887 = vsel %vm2712, %v3885, %v3886
      %v3888 = vrot.slane %v3767, 2
      %v3889 = vsel %vm2712, %v3886, %v3888
      %v3890 = vrot.slane %v3768, 2
      %v3891 = vrot.slane %v3769, 2
      %v3892 = vsel %vm2712, %v3890, %v3891
      %v3893 = vrot.slane %v3770, 2
      %v3894 = vsel %vm2712, %v3891, %v3893
      %v3895 = vrot.slane %v3771, 2
      %v3896 = vrot.slane %v3772, 2
      %v3897 = vsel %vm2712, %v3895, %v3896
      %v3898 = vrot.slane %v3773, 2
      %v3899 = vsel %vm2712, %v3896, %v3898
      %v3900 = vrot.slane %v3774, 2
      %v3901 = vrot.slane %v3775, 2
      %v3902 = vsel %vm2712, %v3900, %v3901
      %v3903 = vrot.slane %v3776, 2
      %v3904 = vsel %vm2712, %v3901, %v3903
      %v3937 = vadd.f32 %v3693, %v3827
      %v3938 = vadd.f32 %v3694, %v3829
      %v3939 = vadd.f32 %v3695, %v3832
      %v3940 = vadd.f32 %v3696, %v3834
      %v3941 = vadd.f32 %v3697, %v3837
      %v3942 = vadd.f32 %v3698, %v3839
      %v3943 = vadd.f32 %v3699, %v3842
      %v3944 = vadd.f32 %v3700, %v3844
      %v3945 = vadd.f32 %v3701, %v3847
      %v3946 = vadd.f32 %v3702, %v3849
      %v3947 = vadd.f32 %v3703, %v3852
      %v3948 = vadd.f32 %v3704, %v3854
      %v3949 = vadd.f32 %v3705, %v3857
      %v3950 = vadd.f32 %v3706, %v3859
      %v3951 = vadd.f32 %v3707, %v3862
      %v3952 = vadd.f32 %v3708, %v3864
      %v3953 = vadd.f32 %v3709, %v3867
      %v3954 = vadd.f32 %v3710, %v3869
      %v3955 = vadd.f32 %v3711, %v3872
      %v3956 = vadd.f32 %v3712, %v3874
      %v3957 = vadd.f32 %v3713, %v3877
      %v3958 = vadd.f32 %v3714, %v3879
      %v3959 = vadd.f32 %v3715, %v3882
      %v3960 = vadd.f32 %v3716, %v3884
      %v3961 = vadd.f32 %v3717, %v3887
      %v3962 = vadd.f32 %v3718, %v3889
      %v3963 = vadd.f32 %v3719, %v3892
      %v3964 = vadd.f32 %v3720, %v3894
      %v3965 = vadd.f32 %v3721, %v3897
      %v3966 = vadd.f32 %v3722, %v3899
      %v3967 = vadd.f32 %v3723, %v3902
      %v3968 = vadd.f32 %v3724, %v3904
      %v3969 = vld [vmem:[#allocation2] sm:$0xff]
      %v3970 = vld [vmem:[#allocation2 + $0x8] sm:$0xff]
      %v3971 = vld [vmem:[#allocation2 + $0x10] sm:$0xff]
      %v3972 = vld [vmem:[#allocation2 + $0x18] sm:$0xff]
      %v3973 = vld [vmem:[#allocation2 + $0x20] sm:$0xff]
      %v3974 = vld [vmem:[#allocation2 + $0x28] sm:$0xff]
      %v3975 = vld [vmem:[#allocation2 + $0x30] sm:$0xff]
      %v3976 = vld [vmem:[#allocation2 + $0x38] sm:$0xff]
      %v3977 = vld [vmem:[#allocation2 + $0x40] sm:$0xff]
      %v3978 = vld [vmem:[#allocation2 + $0x48] sm:$0xff]
      %v3979 = vld [vmem:[#allocation2 + $0x50] sm:$0xff]
      %v3980 = vld [vmem:[#allocation2 + $0x58] sm:$0xff]
      %v3981 = vld [vmem:[#allocation2 + $0x60] sm:$0xff]
      %v3982 = vld [vmem:[#allocation2 + $0x68] sm:$0xff]
      %v3983 = vld [vmem:[#allocation2 + $0x70] sm:$0xff]
      %v3984 = vld [vmem:[#allocation2 + $0x78] sm:$0xff]
      %v3985 = vld [vmem:[#allocation2 + $0x80] sm:$0xff]
      %v3986 = vld [vmem:[#allocation2 + $0x88] sm:$0xff]
      %v3987 = vld [vmem:[#allocation2 + $0x90] sm:$0xff]
      %v3988 = vld [vmem:[#allocation2 + $0x98] sm:$0xff]
      %v3989 = vld [vmem:[#allocation2 + $0xa0] sm:$0xff]
      %v3990 = vld [vmem:[#allocation2 + $0xa8] sm:$0xff]
      %v3991 = vld [vmem:[#allocation2 + $0xb0] sm:$0xff]
      %v3992 = vld [vmem:[#allocation2 + $0xb8] sm:$0xff]
      %v3993 = vld [vmem:[#allocation2 + $0xc0] sm:$0xff]
      %v3994 = vld [vmem:[#allocation2 + $0xc8] sm:$0xff]
      %v3995 = vld [vmem:[#allocation2 + $0xd0] sm:$0xff]
      %v3996 = vld [vmem:[#allocation2 + $0xd8] sm:$0xff]
      %v3997 = vld [vmem:[#allocation2 + $0xe0] sm:$0xff]
      %v3998 = vld [vmem:[#allocation2 + $0xe8] sm:$0xff]
      %v3999 = vld [vmem:[#allocation2 + $0xf0] sm:$0xff]
      %v4000 = vld [vmem:[#allocation2 + $0xf8] sm:$0xff]
      %vm4001 = vcmask 31744
      %v4002 = vsel %vm4001, %v3937, 0.0
      %4003 = vadd.xlane.f32.xlu0 %v4002
      %v4004 = vpop.xlane.xlu0 %4003
      %v4005 = vsel %vm4001, %v3938, 0.0
      %4006 = vadd.xlane.f32.xlu0 %v4005
      %v4007 = vpop.xlane.xlu0 %4006
      %v4008 = vsel %vm4001, %v3939, 0.0
      %4009 = vadd.xlane.f32.xlu0 %v4008
      %v4010 = vpop.xlane.xlu0 %4009
      %v4011 = vsel %vm4001, %v3940, 0.0
      %4012 = vadd.xlane.f32.xlu0 %v4011
      %v4013 = vpop.xlane.xlu0 %4012
      %v4014 = vsel %vm4001, %v3941, 0.0
      %4015 = vadd.xlane.f32.xlu0 %v4014
      %v4016 = vpop.xlane.xlu0 %4015
      %v4017 = vsel %vm4001, %v3942, 0.0
      %4018 = vadd.xlane.f32.xlu0 %v4017
      %v4019 = vpop.xlane.xlu0 %4018
      %v4020 = vsel %vm4001, %v3943, 0.0
      %4021 = vadd.xlane.f32.xlu0 %v4020
      %v4022 = vpop.xlane.xlu0 %4021
      %v4023 = vsel %vm4001, %v3944, 0.0
      %4024 = vadd.xlane.f32.xlu0 %v4023
      %v4025 = vpop.xlane.xlu0 %4024
      %v4026 = vsel %vm4001, %v3945, 0.0
      %4027 = vadd.xlane.f32.xlu0 %v4026
      %v4028 = vpop.xlane.xlu0 %4027
      %v4029 = vsel %vm4001, %v3946, 0.0
      %4030 = vadd.xlane.f32.xlu0 %v4029
      %v4031 = vpop.xlane.xlu0 %4030
      %v4032 = vsel %vm4001, %v3947, 0.0
      %4033 = vadd.xlane.f32.xlu0 %v4032
      %v4034 = vpop.xlane.xlu0 %4033
      %v4035 = vsel %vm4001, %v3948, 0.0
      %4036 = vadd.xlane.f32.xlu0 %v4035
      %v4037 = vpop.xlane.xlu0 %4036
      %v4038 = vsel %vm4001, %v3949, 0.0
      %4039 = vadd.xlane.f32.xlu0 %v4038
      %v4040 = vpop.xlane.xlu0 %4039
      %v4041 = vsel %vm4001, %v3950, 0.0
      %4042 = vadd.xlane.f32.xlu0 %v4041
      %v4043 = vpop.xlane.xlu0 %4042
      %v4044 = vsel %vm4001, %v3951, 0.0
      %4045 = vadd.xlane.f32.xlu0 %v4044
      %v4046 = vpop.xlane.xlu0 %4045
      %v4047 = vsel %vm4001, %v3952, 0.0
      %4048 = vadd.xlane.f32.xlu0 %v4047
      %v4049 = vpop.xlane.xlu0 %4048
      %v4050 = vsel %vm4001, %v3953, 0.0
      %4051 = vadd.xlane.f32.xlu0 %v4050
      %v4052 = vpop.xlane.xlu0 %4051
      %v4053 = vsel %vm4001, %v3954, 0.0
      %4054 = vadd.xlane.f32.xlu0 %v4053
      %v4055 = vpop.xlane.xlu0 %4054
      %v4056 = vsel %vm4001, %v3955, 0.0
      %4057 = vadd.xlane.f32.xlu0 %v4056
      %v4058 = vpop.xlane.xlu0 %4057
      %v4059 = vsel %vm4001, %v3956, 0.0
      %4060 = vadd.xlane.f32.xlu0 %v4059
      %v4061 = vpop.xlane.xlu0 %4060
      %v4062 = vsel %vm4001, %v3957, 0.0
      %4063 = vadd.xlane.f32.xlu0 %v4062
      %v4064 = vpop.xlane.xlu0 %4063
      %v4065 = vsel %vm4001, %v3958, 0.0
      %4066 = vadd.xlane.f32.xlu0 %v4065
      %v4067 = vpop.xlane.xlu0 %4066
      %v4068 = vsel %vm4001, %v3959, 0.0
      %4069 = vadd.xlane.f32.xlu0 %v4068
      %v4070 = vpop.xlane.xlu0 %4069
      %v4071 = vsel %vm4001, %v3960, 0.0
      %4072 = vadd.xlane.f32.xlu0 %v4071
      %v4073 = vpop.xlane.xlu0 %4072
      %v4074 = vsel %vm4001, %v3961, 0.0
      %4075 = vadd.xlane.f32.xlu0 %v4074
      %v4076 = vpop.xlane.xlu0 %4075
      %v4077 = vsel %vm4001, %v3962, 0.0
      %4078 = vadd.xlane.f32.xlu0 %v4077
      %v4079 = vpop.xlane.xlu0 %4078
      %v4080 = vsel %vm4001, %v3963, 0.0
      %4081 = vadd.xlane.f32.xlu0 %v4080
      %v4082 = vpop.xlane.xlu0 %4081
      %v4083 = vsel %vm4001, %v3964, 0.0
      %4084 = vadd.xlane.f32.xlu0 %v4083
      %v4085 = vpop.xlane.xlu0 %4084
      %v4086 = vsel %vm4001, %v3965, 0.0
      %4087 = vadd.xlane.f32.xlu0 %v4086
      %v4088 = vpop.xlane.xlu0 %4087
      %v4089 = vsel %vm4001, %v3966, 0.0
      %4090 = vadd.xlane.f32.xlu0 %v4089
      %v4091 = vpop.xlane.xlu0 %4090
      %v4092 = vsel %vm4001, %v3967, 0.0
      %4093 = vadd.xlane.f32.xlu0 %v4092
      %v4094 = vpop.xlane.xlu0 %4093
      %v4095 = vsel %vm4001, %v3968, 0.0
      %4096 = vadd.xlane.f32.xlu0 %v4095
      %v4097 = vpop.xlane.xlu0 %4096
      %v4098 = vadd.f32 %v3969, %v4004
      %v4099 = vadd.f32 %v3970, %v4007
      %v4100 = vadd.f32 %v3971, %v4010
      %v4101 = vadd.f32 %v3972, %v4013
      %v4102 = vadd.f32 %v3973, %v4016
      %v4103 = vadd.f32 %v3974, %v4019
      %v4104 = vadd.f32 %v3975, %v4022
      %v4105 = vadd.f32 %v3976, %v4025
      %v4106 = vadd.f32 %v3977, %v4028
      %v4107 = vadd.f32 %v3978, %v4031
      %v4108 = vadd.f32 %v3979, %v4034
      %v4109 = vadd.f32 %v3980, %v4037
      %v4110 = vadd.f32 %v3981, %v4040
      %v4111 = vadd.f32 %v3982, %v4043
      %v4112 = vadd.f32 %v3983, %v4046
      %v4113 = vadd.f32 %v3984, %v4049
      %v4114 = vadd.f32 %v3985, %v4052
      %v4115 = vadd.f32 %v3986, %v4055
      %v4116 = vadd.f32 %v3987, %v4058
      %v4117 = vadd.f32 %v3988, %v4061
      %v4118 = vadd.f32 %v3989, %v4064
      %v4119 = vadd.f32 %v3990, %v4067
      %v4120 = vadd.f32 %v3991, %v4070
      %v4121 = vadd.f32 %v3992, %v4073
      %v4122 = vadd.f32 %v3993, %v4076
      %v4123 = vadd.f32 %v3994, %v4079
      %v4124 = vadd.f32 %v3995, %v4082
      %v4125 = vadd.f32 %v3996, %v4085
      %v4126 = vadd.f32 %v3997, %v4088
      %v4127 = vadd.f32 %v3998, %v4091
      %v4128 = vadd.f32 %v3999, %v4094
      %v4129 = vadd.f32 %v4000, %v4097
      %s4130 = sld [smem:[#allocation5]]
      %v4131 = vstv %s4130
      %v4132 = vadd.f32 %v4098, %v4131
      %v4133 = vadd.f32 %v4099, %v4131
      %v4134 = vadd.f32 %v4100, %v4131
      %v4135 = vadd.f32 %v4101, %v4131
      %v4136 = vadd.f32 %v4102, %v4131
      %v4137 = vadd.f32 %v4103, %v4131
      %v4138 = vadd.f32 %v4104, %v4131
      %v4139 = vadd.f32 %v4105, %v4131
      %v4140 = vadd.f32 %v4106, %v4131
      %v4141 = vadd.f32 %v4107, %v4131
      %v4142 = vadd.f32 %v4108, %v4131
      %v4143 = vadd.f32 %v4109, %v4131
      %v4144 = vadd.f32 %v4110, %v4131
      %v4145 = vadd.f32 %v4111, %v4131
      %v4146 = vadd.f32 %v4112, %v4131
      %v4147 = vadd.f32 %v4113, %v4131
      %v4148 = vadd.f32 %v4114, %v4131
      %v4149 = vadd.f32 %v4115, %v4131
      %v4150 = vadd.f32 %v4116, %v4131
      %v4151 = vadd.f32 %v4117, %v4131
      %v4152 = vadd.f32 %v4118, %v4131
      %v4153 = vadd.f32 %v4119, %v4131
      %v4154 = vadd.f32 %v4120, %v4131
      %v4155 = vadd.f32 %v4121, %v4131
      %v4156 = vadd.f32 %v4122, %v4131
      %v4157 = vadd.f32 %v4123, %v4131
      %v4158 = vadd.f32 %v4124, %v4131
      %v4159 = vadd.f32 %v4125, %v4131
      %v4160 = vadd.f32 %v4126, %v4131
      %v4161 = vadd.f32 %v4127, %v4131
      %v4162 = vadd.f32 %v4128, %v4131
      %v4163 = vadd.f32 %v4129, %v4131
      %v4164 = vxor.u32 %v4132, 2147483648
      %v4165 = vxor.u32 %v4133, 2147483648
      %v4166 = vxor.u32 %v4134, 2147483648
      %v4167 = vxor.u32 %v4135, 2147483648
      %v4168 = vxor.u32 %v4136, 2147483648
      %v4169 = vxor.u32 %v4137, 2147483648
      %v4170 = vxor.u32 %v4138, 2147483648
      %v4171 = vxor.u32 %v4139, 2147483648
      %v4172 = vxor.u32 %v4140, 2147483648
      %v4173 = vxor.u32 %v4141, 2147483648
      %v4174 = vxor.u32 %v4142, 2147483648
      %v4175 = vxor.u32 %v4143, 2147483648
      %v4176 = vxor.u32 %v4144, 2147483648
      %v4177 = vxor.u32 %v4145, 2147483648
      %v4178 = vxor.u32 %v4146, 2147483648
      %v4179 = vxor.u32 %v4147, 2147483648
      %v4180 = vxor.u32 %v4148, 2147483648
      %v4181 = vxor.u32 %v4149, 2147483648
      %v4182 = vxor.u32 %v4150, 2147483648
      %v4183 = vxor.u32 %v4151, 2147483648
      %v4184 = vxor.u32 %v4152, 2147483648
      %v4185 = vxor.u32 %v4153, 2147483648
      %v4186 = vxor.u32 %v4154, 2147483648
      %v4187 = vxor.u32 %v4155, 2147483648
      %v4188 = vxor.u32 %v4156, 2147483648
      %v4189 = vxor.u32 %v4157, 2147483648
      %v4190 = vxor.u32 %v4158, 2147483648
      %v4191 = vxor.u32 %v4159, 2147483648
      %v4192 = vxor.u32 %v4160, 2147483648
      %v4193 = vxor.u32 %v4161, 2147483648
      %v4194 = vxor.u32 %v4162, 2147483648
      %v4195 = vxor.u32 %v4163, 2147483648
      %v4196 = vmul.f32 %v4164, 1.442695
      %v4197 = vpow.pop %v4196
      %v4198 = vmul.f32 %v4165, 1.442695
      %v4199 = vpow.pop %v4198
      %v4200 = vmul.f32 %v4166, 1.442695
      %v4201 = vpow.pop %v4200
      %v4202 = vmul.f32 %v4167, 1.442695
      %v4203 = vpow.pop %v4202
      %v4204 = vmul.f32 %v4168, 1.442695
      %v4205 = vpow.pop %v4204
      %v4206 = vmul.f32 %v4169, 1.442695
      %v4207 = vpow.pop %v4206
      %v4208 = vmul.f32 %v4170, 1.442695
      %v4209 = vpow.pop %v4208
      %v4210 = vmul.f32 %v4171, 1.442695
      %v4211 = vpow.pop %v4210
      %v4212 = vmul.f32 %v4172, 1.442695
      %v4213 = vpow.pop %v4212
      %v4214 = vmul.f32 %v4173, 1.442695
      %v4215 = vpow.pop %v4214
      %v4216 = vmul.f32 %v4174, 1.442695
      %v4217 = vpow.pop %v4216
      %v4218 = vmul.f32 %v4175, 1.442695
      %v4219 = vpow.pop %v4218
      %v4220 = vmul.f32 %v4176, 1.442695
      %v4221 = vpow.pop %v4220
      %v4222 = vmul.f32 %v4177, 1.442695
      %v4223 = vpow.pop %v4222
      %v4224 = vmul.f32 %v4178, 1.442695
      %v4225 = vpow.pop %v4224
      %v4226 = vmul.f32 %v4179, 1.442695
      %v4227 = vpow.pop %v4226
      %v4228 = vmul.f32 %v4180, 1.442695
      %v4229 = vpow.pop %v4228
      %v4230 = vmul.f32 %v4181, 1.442695
      %v4231 = vpow.pop %v4230
      %v4232 = vmul.f32 %v4182, 1.442695
      %v4233 = vpow.pop %v4232
      %v4234 = vmul.f32 %v4183, 1.442695
      %v4235 = vpow.pop %v4234
      %v4236 = vmul.f32 %v4184, 1.442695
      %v4237 = vpow.pop %v4236
      %v4238 = vmul.f32 %v4185, 1.442695
      %v4239 = vpow.pop %v4238
      %v4240 = vmul.f32 %v4186, 1.442695
      %v4241 = vpow.pop %v4240
      %v4242 = vmul.f32 %v4187, 1.442695
      %v4243 = vpow.pop %v4242
      %v4244 = vmul.f32 %v4188, 1.442695
      %v4245 = vpow.pop %v4244
      %v4246 = vmul.f32 %v4189, 1.442695
      %v4247 = vpow.pop %v4246
      %v4248 = vmul.f32 %v4190, 1.442695
      %v4249 = vpow.pop %v4248
      %v4250 = vmul.f32 %v4191, 1.442695
      %v4251 = vpow.pop %v4250
      %v4252 = vmul.f32 %v4192, 1.442695
      %v4253 = vpow.pop %v4252
      %v4254 = vmul.f32 %v4193, 1.442695
      %v4255 = vpow.pop %v4254
      %v4256 = vmul.f32 %v4194, 1.442695
      %v4257 = vpow.pop %v4256
      %v4258 = vmul.f32 %v4195, 1.442695
      %v4259 = vpow.pop %v4258
      %v4260 = vadd.f32 %v4197, 1.0
      %v4261 = vadd.f32 %v4199, 1.0
      %v4262 = vadd.f32 %v4201, 1.0
      %v4263 = vadd.f32 %v4203, 1.0
      %v4264 = vadd.f32 %v4205, 1.0
      %v4265 = vadd.f32 %v4207, 1.0
      %v4266 = vadd.f32 %v4209, 1.0
      %v4267 = vadd.f32 %v4211, 1.0
      %v4268 = vadd.f32 %v4213, 1.0
      %v4269 = vadd.f32 %v4215, 1.0
      %v4270 = vadd.f32 %v4217, 1.0
      %v4271 = vadd.f32 %v4219, 1.0
      %v4272 = vadd.f32 %v4221, 1.0
      %v4273 = vadd.f32 %v4223, 1.0
      %v4274 = vadd.f32 %v4225, 1.0
      %v4275 = vadd.f32 %v4227, 1.0
      %v4276 = vadd.f32 %v4229, 1.0
      %v4277 = vadd.f32 %v4231, 1.0
      %v4278 = vadd.f32 %v4233, 1.0
      %v4279 = vadd.f32 %v4235, 1.0
      %v4280 = vadd.f32 %v4237, 1.0
      %v4281 = vadd.f32 %v4239, 1.0
      %v4282 = vadd.f32 %v4241, 1.0
      %v4283 = vadd.f32 %v4243, 1.0
      %v4284 = vadd.f32 %v4245, 1.0
      %v4285 = vadd.f32 %v4247, 1.0
      %v4286 = vadd.f32 %v4249, 1.0
      %v4287 = vadd.f32 %v4251, 1.0
      %v4288 = vadd.f32 %v4253, 1.0
      %v4289 = vadd.f32 %v4255, 1.0
      %v4290 = vadd.f32 %v4257, 1.0
      %v4291 = vadd.f32 %v4259, 1.0
      %v4292 = vrcp.pop %v4260
      %v4293 = vmul.f32 1.0, %v4292
      %v4294 = vrcp.pop %v4261
      %v4295 = vmul.f32 1.0, %v4294
      %v4296 = vrcp.pop %v4262
      %v4297 = vmul.f32 1.0, %v4296
      %v4298 = vrcp.pop %v4263
      %v4299 = vmul.f32 1.0, %v4298
      %v4300 = vrcp.pop %v4264
      %v4301 = vmul.f32 1.0, %v4300
      %v4302 = vrcp.pop %v4265
      %v4303 = vmul.f32 1.0, %v4302
      %v4304 = vrcp.pop %v4266
      %v4305 = vmul.f32 1.0, %v4304
      %v4306 = vrcp.pop %v4267
      %v4307 = vmul.f32 1.0, %v4306
      %v4308 = vrcp.pop %v4268
      %v4309 = vmul.f32 1.0, %v4308
      %v4310 = vrcp.pop %v4269
      %v4311 = vmul.f32 1.0, %v4310
      %v4312 = vrcp.pop %v4270
      %v4313 = vmul.f32 1.0, %v4312
      %v4314 = vrcp.pop %v4271
      %v4315 = vmul.f32 1.0, %v4314
      %v4316 = vrcp.pop %v4272
      %v4317 = vmul.f32 1.0, %v4316
      %v4318 = vrcp.pop %v4273
      %v4319 = vmul.f32 1.0, %v4318
      %v4320 = vrcp.pop %v4274
      %v4321 = vmul.f32 1.0, %v4320
      %v4322 = vrcp.pop %v4275
      %v4323 = vmul.f32 1.0, %v4322
      %v4324 = vrcp.pop %v4276
      %v4325 = vmul.f32 1.0, %v4324
      %v4326 = vrcp.pop %v4277
      %v4327 = vmul.f32 1.0, %v4326
      %v4328 = vrcp.pop %v4278
      %v4329 = vmul.f32 1.0, %v4328
      %v4330 = vrcp.pop %v4279
      %v4331 = vmul.f32 1.0, %v4330
      %v4332 = vrcp.pop %v4280
      %v4333 = vmul.f32 1.0, %v4332
      %v4334 = vrcp.pop %v4281
      %v4335 = vmul.f32 1.0, %v4334
      %v4336 = vrcp.pop %v4282
      %v4337 = vmul.f32 1.0, %v4336
      %v4338 = vrcp.pop %v4283
      %v4339 = vmul.f32 1.0, %v4338
      %v4340 = vrcp.pop %v4284
      %v4341 = vmul.f32 1.0, %v4340
      %v4342 = vrcp.pop %v4285
      %v4343 = vmul.f32 1.0, %v4342
      %v4344 = vrcp.pop %v4286
      %v4345 = vmul.f32 1.0, %v4344
      %v4346 = vrcp.pop %v4287
      %v4347 = vmul.f32 1.0, %v4346
      %v4348 = vrcp.pop %v4288
      %v4349 = vmul.f32 1.0, %v4348
      %v4350 = vrcp.pop %v4289
      %v4351 = vmul.f32 1.0, %v4350
      %v4352 = vrcp.pop %v4290
      %v4353 = vmul.f32 1.0, %v4352
      %v4354 = vrcp.pop %v4291
      %v4355 = vmul.f32 1.0, %v4354
      %s4356 = scalar_lea.vmem %s311, 24
      %v4357 = vld [vmem:[%s4356 + $0x1] sm:$0xff]
      %v4358 = vld [vmem:[%s4356 + $0x9] sm:$0xff]
      %v4359 = vld [vmem:[%s4356 + $0x19] sm:$0xff]
      %v4360 = vld [vmem:[%s4356 + $0x21] sm:$0xff]
      %v4361 = vld [vmem:[%s4356 + $0x31] sm:$0xff]
      %v4362 = vld [vmem:[%s4356 + $0x39] sm:$0xff]
      %v4363 = vld [vmem:[%s4356 + $0x49] sm:$0xff]
      %v4364 = vld [vmem:[%s4356 + $0x51] sm:$0xff]
      %v4365 = vld [vmem:[%s4356 + $0x61] sm:$0xff]
      %v4366 = vld [vmem:[%s4356 + $0x69] sm:$0xff]
      %v4367 = vld [vmem:[%s4356 + $0x79] sm:$0xff]
      %v4368 = vld [vmem:[%s4356 + $0x81] sm:$0xff]
      %v4369 = vld [vmem:[%s4356 + $0x91] sm:$0xff]
      %v4370 = vld [vmem:[%s4356 + $0x99] sm:$0xff]
      %v4371 = vld [vmem:[%s4356 + $0xa9] sm:$0xff]
      %v4372 = vld [vmem:[%s4356 + $0xb1] sm:$0xff]
      %v4373 = vld [vmem:[%s4356 + $0xc1] sm:$0xff]
      %v4374 = vld [vmem:[%s4356 + $0xc9] sm:$0xff]
      %v4375 = vld [vmem:[%s4356 + $0xd9] sm:$0xff]
      %v4376 = vld [vmem:[%s4356 + $0xe1] sm:$0xff]
      %v4377 = vld [vmem:[%s4356 + $0xf1] sm:$0xff]
      %v4378 = vld [vmem:[%s4356 + $0xf9] sm:$0xff]
      %v4379 = vld [vmem:[%s4356 + $0x109] sm:$0xff]
      %v4380 = vld [vmem:[%s4356 + $0x111] sm:$0xff]
      %v4381 = vld [vmem:[%s4356 + $0x121] sm:$0xff]
      %v4382 = vld [vmem:[%s4356 + $0x129] sm:$0xff]
      %v4383 = vld [vmem:[%s4356 + $0x139] sm:$0xff]
      %v4384 = vld [vmem:[%s4356 + $0x141] sm:$0xff]
      %v4385 = vld [vmem:[%s4356 + $0x151] sm:$0xff]
      %v4386 = vld [vmem:[%s4356 + $0x159] sm:$0xff]
      %v4387 = vld [vmem:[%s4356 + $0x169] sm:$0xff]
      %v4388 = vld [vmem:[%s4356 + $0x171] sm:$0xff]
      %s4389 = scalar_lea.vmem [#allocation3], 24
      %v4390 = vld [vmem:[%s4389 + $0x1] sm:$0xff]
      %v4391 = vld [vmem:[%s4389 + $0x9] sm:$0xff]
      %v4392 = vld [vmem:[%s4389 + $0x19] sm:$0xff]
      %v4393 = vld [vmem:[%s4389 + $0x21] sm:$0xff]
      %v4394 = vld [vmem:[%s4389 + $0x31] sm:$0xff]
      %v4395 = vld [vmem:[%s4389 + $0x39] sm:$0xff]
      %v4396 = vld [vmem:[%s4389 + $0x49] sm:$0xff]
      %v4397 = vld [vmem:[%s4389 + $0x51] sm:$0xff]
      %v4398 = vld [vmem:[%s4389 + $0x61] sm:$0xff]
      %v4399 = vld [vmem:[%s4389 + $0x69] sm:$0xff]
      %v4400 = vld [vmem:[%s4389 + $0x79] sm:$0xff]
      %v4401 = vld [vmem:[%s4389 + $0x81] sm:$0xff]
      %v4402 = vld [vmem:[%s4389 + $0x91] sm:$0xff]
      %v4403 = vld [vmem:[%s4389 + $0x99] sm:$0xff]
      %v4404 = vld [vmem:[%s4389 + $0xa9] sm:$0xff]
      %v4405 = vld [vmem:[%s4389 + $0xb1] sm:$0xff]
      %v4406 = vld [vmem:[%s4389 + $0xc1] sm:$0xff]
      %v4407 = vld [vmem:[%s4389 + $0xc9] sm:$0xff]
      %v4408 = vld [vmem:[%s4389 + $0xd9] sm:$0xff]
      %v4409 = vld [vmem:[%s4389 + $0xe1] sm:$0xff]
      %v4410 = vld [vmem:[%s4389 + $0xf1] sm:$0xff]
      %v4411 = vld [vmem:[%s4389 + $0xf9] sm:$0xff]
      %v4412 = vld [vmem:[%s4389 + $0x109] sm:$0xff]
      %v4413 = vld [vmem:[%s4389 + $0x111] sm:$0xff]
      %v4414 = vld [vmem:[%s4389 + $0x121] sm:$0xff]
      %v4415 = vld [vmem:[%s4389 + $0x129] sm:$0xff]
      %v4416 = vld [vmem:[%s4389 + $0x139] sm:$0xff]
      %v4417 = vld [vmem:[%s4389 + $0x141] sm:$0xff]
      %v4418 = vld [vmem:[%s4389 + $0x151] sm:$0xff]
      %v4419 = vld [vmem:[%s4389 + $0x159] sm:$0xff]
      %v4420 = vld [vmem:[%s4389 + $0x169] sm:$0xff]
      %v4421 = vld [vmem:[%s4389 + $0x171] sm:$0xff]
      %v4470 = vrot.slane %v329, 1
      %v4471 = vrot.slane %v330, 1
      %v4472 = vsel %vm2467, %v4470, %v4471
      %v4473 = vrot.slane %v331, 1
      %v4474 = vsel %vm2467, %v4471, %v4473
      %v4475 = vrot.slane %v332, 1
      %v4476 = vrot.slane %v333, 1
      %v4477 = vsel %vm2467, %v4475, %v4476
      %v4478 = vrot.slane %v334, 1
      %v4479 = vsel %vm2467, %v4476, %v4478
      %v4480 = vrot.slane %v335, 1
      %v4481 = vrot.slane %v336, 1
      %v4482 = vsel %vm2467, %v4480, %v4481
      %v4483 = vrot.slane %v337, 1
      %v4484 = vsel %vm2467, %v4481, %v4483
      %v4485 = vrot.slane %v338, 1
      %v4486 = vrot.slane %v339, 1
      %v4487 = vsel %vm2467, %v4485, %v4486
      %v4488 = vrot.slane %v340, 1
      %v4489 = vsel %vm2467, %v4486, %v4488
      %v4490 = vrot.slane %v341, 1
      %v4491 = vrot.slane %v342, 1
      %v4492 = vsel %vm2467, %v4490, %v4491
      %v4493 = vrot.slane %v343, 1
      %v4494 = vsel %vm2467, %v4491, %v4493
      %v4495 = vrot.slane %v344, 1
      %v4496 = vrot.slane %v345, 1
      %v4497 = vsel %vm2467, %v4495, %v4496
      %v4498 = vrot.slane %v346, 1
      %v4499 = vsel %vm2467, %v4496, %v4498
      %v4500 = vrot.slane %v347, 1
      %v4501 = vrot.slane %v348, 1
      %v4502 = vsel %vm2467, %v4500, %v4501
      %v4503 = vrot.slane %v349, 1
      %v4504 = vsel %vm2467, %v4501, %v4503
      %v4505 = vrot.slane %v350, 1
      %v4506 = vrot.slane %v351, 1
      %v4507 = vsel %vm2467, %v4505, %v4506
      %v4508 = vrot.slane %v352, 1
      %v4509 = vsel %vm2467, %v4506, %v4508
      %v4510 = vrot.slane %v353, 1
      %v4511 = vrot.slane %v354, 1
      %v4512 = vsel %vm2467, %v4510, %v4511
      %v4513 = vrot.slane %v355, 1
      %v4514 = vsel %vm2467, %v4511, %v4513
      %v4515 = vrot.slane %v356, 1
      %v4516 = vrot.slane %v357, 1
      %v4517 = vsel %vm2467, %v4515, %v4516
      %v4518 = vrot.slane %v358, 1
      %v4519 = vsel %vm2467, %v4516, %v4518
      %v4520 = vrot.slane %v359, 1
      %v4521 = vrot.slane %v360, 1
      %v4522 = vsel %vm2467, %v4520, %v4521
      %v4523 = vrot.slane %v361, 1
      %v4524 = vsel %vm2467, %v4521, %v4523
      %v4525 = vrot.slane %v362, 1
      %v4526 = vrot.slane %v363, 1
      %v4527 = vsel %vm2467, %v4525, %v4526
      %v4528 = vrot.slane %v364, 1
      %v4529 = vsel %vm2467, %v4526, %v4528
      %v4530 = vrot.slane %v365, 1
      %v4531 = vrot.slane %v366, 1
      %v4532 = vsel %vm2467, %v4530, %v4531
      %v4533 = vrot.slane %v367, 1
      %v4534 = vsel %vm2467, %v4531, %v4533
      %v4535 = vrot.slane %v368, 1
      %v4536 = vrot.slane %v369, 1
      %v4537 = vsel %vm2467, %v4535, %v4536
      %v4538 = vrot.slane %v370, 1
      %v4539 = vsel %vm2467, %v4536, %v4538
      %v4540 = vrot.slane %v371, 1
      %v4541 = vrot.slane %v372, 1
      %v4542 = vsel %vm2467, %v4540, %v4541
      %v4543 = vrot.slane %v373, 1
      %v4544 = vsel %vm2467, %v4541, %v4543
      %v4545 = vrot.slane %v374, 1
      %v4546 = vrot.slane %v375, 1
      %v4547 = vsel %vm2467, %v4545, %v4546
      %v4548 = vrot.slane %v376, 1
      %v4549 = vsel %vm2467, %v4546, %v4548
      %v4582 = vsub.f32 %v4357, %v4472
      %v4583 = vsub.f32 %v4358, %v4474
      %v4584 = vsub.f32 %v4359, %v4477
      %v4585 = vsub.f32 %v4360, %v4479
      %v4586 = vsub.f32 %v4361, %v4482
      %v4587 = vsub.f32 %v4362, %v4484
      %v4588 = vsub.f32 %v4363, %v4487
      %v4589 = vsub.f32 %v4364, %v4489
      %v4590 = vsub.f32 %v4365, %v4492
      %v4591 = vsub.f32 %v4366, %v4494
      %v4592 = vsub.f32 %v4367, %v4497
      %v4593 = vsub.f32 %v4368, %v4499
      %v4594 = vsub.f32 %v4369, %v4502
      %v4595 = vsub.f32 %v4370, %v4504
      %v4596 = vsub.f32 %v4371, %v4507
      %v4597 = vsub.f32 %v4372, %v4509
      %v4598 = vsub.f32 %v4373, %v4512
      %v4599 = vsub.f32 %v4374, %v4514
      %v4600 = vsub.f32 %v4375, %v4517
      %v4601 = vsub.f32 %v4376, %v4519
      %v4602 = vsub.f32 %v4377, %v4522
      %v4603 = vsub.f32 %v4378, %v4524
      %v4604 = vsub.f32 %v4379, %v4527
      %v4605 = vsub.f32 %v4380, %v4529
      %v4606 = vsub.f32 %v4381, %v4532
      %v4607 = vsub.f32 %v4382, %v4534
      %v4608 = vsub.f32 %v4383, %v4537
      %v4609 = vsub.f32 %v4384, %v4539
      %v4610 = vsub.f32 %v4385, %v4542
      %v4611 = vsub.f32 %v4386, %v4544
      %v4612 = vsub.f32 %v4387, %v4547
      %v4613 = vsub.f32 %v4388, %v4549
      %4615 = vset.pattern.permute.xlu0 0
      %4616 = vperm.xlu0 %4615, %v4293
      %v4617 = vpop.permute.xlu0 %4616
      %4620 = vset.pattern.permute.xlu0 0
      %4621 = vperm.xlu0 %4620, %v4295
      %v4622 = vpop.permute.xlu0 %4621
      %4625 = vset.pattern.permute.xlu0 0
      %4626 = vperm.xlu0 %4625, %v4297
      %v4627 = vpop.permute.xlu0 %4626
      %4630 = vset.pattern.permute.xlu0 0
      %4631 = vperm.xlu0 %4630, %v4299
      %v4632 = vpop.permute.xlu0 %4631
      %4635 = vset.pattern.permute.xlu0 0
      %4636 = vperm.xlu0 %4635, %v4301
      %v4637 = vpop.permute.xlu0 %4636
      %4640 = vset.pattern.permute.xlu0 0
      %4641 = vperm.xlu0 %4640, %v4303
      %v4642 = vpop.permute.xlu0 %4641
      %4645 = vset.pattern.permute.xlu0 0
      %4646 = vperm.xlu0 %4645, %v4305
      %v4647 = vpop.permute.xlu0 %4646
      %4650 = vset.pattern.permute.xlu0 0
      %4651 = vperm.xlu0 %4650, %v4307
      %v4652 = vpop.permute.xlu0 %4651
      %4655 = vset.pattern.permute.xlu0 0
      %4656 = vperm.xlu0 %4655, %v4309
      %v4657 = vpop.permute.xlu0 %4656
      %4660 = vset.pattern.permute.xlu0 0
      %4661 = vperm.xlu0 %4660, %v4311
      %v4662 = vpop.permute.xlu0 %4661
      %4665 = vset.pattern.permute.xlu0 0
      %4666 = vperm.xlu0 %4665, %v4313
      %v4667 = vpop.permute.xlu0 %4666
      %4670 = vset.pattern.permute.xlu0 0
      %4671 = vperm.xlu0 %4670, %v4315
      %v4672 = vpop.permute.xlu0 %4671
      %4675 = vset.pattern.permute.xlu0 0
      %4676 = vperm.xlu0 %4675, %v4317
      %v4677 = vpop.permute.xlu0 %4676
      %4680 = vset.pattern.permute.xlu0 0
      %4681 = vperm.xlu0 %4680, %v4319
      %v4682 = vpop.permute.xlu0 %4681
      %4685 = vset.pattern.permute.xlu0 0
      %4686 = vperm.xlu0 %4685, %v4321
      %v4687 = vpop.permute.xlu0 %4686
      %4690 = vset.pattern.permute.xlu0 0
      %4691 = vperm.xlu0 %4690, %v4323
      %v4692 = vpop.permute.xlu0 %4691
      %4695 = vset.pattern.permute.xlu0 0
      %4696 = vperm.xlu0 %4695, %v4325
      %v4697 = vpop.permute.xlu0 %4696
      %4700 = vset.pattern.permute.xlu0 0
      %4701 = vperm.xlu0 %4700, %v4327
      %v4702 = vpop.permute.xlu0 %4701
      %4705 = vset.pattern.permute.xlu0 0
      %4706 = vperm.xlu0 %4705, %v4329
      %v4707 = vpop.permute.xlu0 %4706
      %4710 = vset.pattern.permute.xlu0 0
      %4711 = vperm.xlu0 %4710, %v4331
      %v4712 = vpop.permute.xlu0 %4711
      %4715 = vset.pattern.permute.xlu0 0
      %4716 = vperm.xlu0 %4715, %v4333
      %v4717 = vpop.permute.xlu0 %4716
      %4720 = vset.pattern.permute.xlu0 0
      %4721 = vperm.xlu0 %4720, %v4335
      %v4722 = vpop.permute.xlu0 %4721
      %4725 = vset.pattern.permute.xlu0 0
      %4726 = vperm.xlu0 %4725, %v4337
      %v4727 = vpop.permute.xlu0 %4726
      %4730 = vset.pattern.permute.xlu0 0
      %4731 = vperm.xlu0 %4730, %v4339
      %v4732 = vpop.permute.xlu0 %4731
      %4735 = vset.pattern.permute.xlu0 0
      %4736 = vperm.xlu0 %4735, %v4341
      %v4737 = vpop.permute.xlu0 %4736
      %4740 = vset.pattern.permute.xlu0 0
      %4741 = vperm.xlu0 %4740, %v4343
      %v4742 = vpop.permute.xlu0 %4741
      %4745 = vset.pattern.permute.xlu0 0
      %4746 = vperm.xlu0 %4745, %v4345
      %v4747 = vpop.permute.xlu0 %4746
      %4750 = vset.pattern.permute.xlu0 0
      %4751 = vperm.xlu0 %4750, %v4347
      %v4752 = vpop.permute.xlu0 %4751
      %4755 = vset.pattern.permute.xlu0 0
      %4756 = vperm.xlu0 %4755, %v4349
      %v4757 = vpop.permute.xlu0 %4756
      %4760 = vset.pattern.permute.xlu0 0
      %4761 = vperm.xlu0 %4760, %v4351
      %v4762 = vpop.permute.xlu0 %4761
      %4765 = vset.pattern.permute.xlu0 0
      %4766 = vperm.xlu0 %4765, %v4353
      %v4767 = vpop.permute.xlu0 %4766
      %4770 = vset.pattern.permute.xlu0 0
      %4771 = vperm.xlu0 %4770, %v4355
      %v4772 = vpop.permute.xlu0 %4771
      %v4774 = vmul.f32 %v4582, %v4617
      %v4775 = vmul.f32 %v4583, %v4622
      %v4776 = vmul.f32 %v4584, %v4627
      %v4777 = vmul.f32 %v4585, %v4632
      %v4778 = vmul.f32 %v4586, %v4637
      %v4779 = vmul.f32 %v4587, %v4642
      %v4780 = vmul.f32 %v4588, %v4647
      %v4781 = vmul.f32 %v4589, %v4652
      %v4782 = vmul.f32 %v4590, %v4657
      %v4783 = vmul.f32 %v4591, %v4662
      %v4784 = vmul.f32 %v4592, %v4667
      %v4785 = vmul.f32 %v4593, %v4672
      %v4786 = vmul.f32 %v4594, %v4677
      %v4787 = vmul.f32 %v4595, %v4682
      %v4788 = vmul.f32 %v4596, %v4687
      %v4789 = vmul.f32 %v4597, %v4692
      %v4790 = vmul.f32 %v4598, %v4697
      %v4791 = vmul.f32 %v4599, %v4702
      %v4792 = vmul.f32 %v4600, %v4707
      %v4793 = vmul.f32 %v4601, %v4712
      %v4794 = vmul.f32 %v4602, %v4717
      %v4795 = vmul.f32 %v4603, %v4722
      %v4796 = vmul.f32 %v4604, %v4727
      %v4797 = vmul.f32 %v4605, %v4732
      %v4798 = vmul.f32 %v4606, %v4737
      %v4799 = vmul.f32 %v4607, %v4742
      %v4800 = vmul.f32 %v4608, %v4747
      %v4801 = vmul.f32 %v4609, %v4752
      %v4802 = vmul.f32 %v4610, %v4757
      %v4803 = vmul.f32 %v4611, %v4762
      %v4804 = vmul.f32 %v4612, %v4767
      %v4805 = vmul.f32 %v4613, %v4772
      %vm4838 = vcmask 1040384
      %v4839 = vrot.slane %v4774, 7
      %v4840 = vrot.slane %v4775, 7
      %v4841 = vsel %vm4838, %v4839, %v4840
      %v4842 = vrot.slane %v4776, 7
      %v4843 = vrot.slane %v4777, 7
      %v4844 = vsel %vm4838, %v4842, %v4843
      %v4845 = vrot.slane %v4778, 7
      %v4846 = vrot.slane %v4779, 7
      %v4847 = vsel %vm4838, %v4845, %v4846
      %v4848 = vrot.slane %v4780, 7
      %v4849 = vrot.slane %v4781, 7
      %v4850 = vsel %vm4838, %v4848, %v4849
      %v4851 = vrot.slane %v4782, 7
      %v4852 = vrot.slane %v4783, 7
      %v4853 = vsel %vm4838, %v4851, %v4852
      %v4854 = vrot.slane %v4784, 7
      %v4855 = vrot.slane %v4785, 7
      %v4856 = vsel %vm4838, %v4854, %v4855
      %v4857 = vrot.slane %v4786, 7
      %v4858 = vrot.slane %v4787, 7
      %v4859 = vsel %vm4838, %v4857, %v4858
      %v4860 = vrot.slane %v4788, 7
      %v4861 = vrot.slane %v4789, 7
      %v4862 = vsel %vm4838, %v4860, %v4861
      %v4863 = vrot.slane %v4790, 7
      %v4864 = vrot.slane %v4791, 7
      %v4865 = vsel %vm4838, %v4863, %v4864
      %v4866 = vrot.slane %v4792, 7
      %v4867 = vrot.slane %v4793, 7
      %v4868 = vsel %vm4838, %v4866, %v4867
      %v4869 = vrot.slane %v4794, 7
      %v4870 = vrot.slane %v4795, 7
      %v4871 = vsel %vm4838, %v4869, %v4870
      %v4872 = vrot.slane %v4796, 7
      %v4873 = vrot.slane %v4797, 7
      %v4874 = vsel %vm4838, %v4872, %v4873
      %v4875 = vrot.slane %v4798, 7
      %v4876 = vrot.slane %v4799, 7
      %v4877 = vsel %vm4838, %v4875, %v4876
      %v4878 = vrot.slane %v4800, 7
      %v4879 = vrot.slane %v4801, 7
      %v4880 = vsel %vm4838, %v4878, %v4879
      %v4881 = vrot.slane %v4802, 7
      %v4882 = vrot.slane %v4803, 7
      %v4883 = vsel %vm4838, %v4881, %v4882
      %v4884 = vrot.slane %v4804, 7
      %v4885 = vrot.slane %v4805, 7
      %v4886 = vsel %vm4838, %v4884, %v4885
      %v4935 = vadd.f32 %v329, %v4839
      %v4936 = vadd.f32 %v330, %v4841
      %v4937 = vadd.f32 %v331, %v4840
      %v4938 = vadd.f32 %v332, %v4842
      %v4939 = vadd.f32 %v333, %v4844
      %v4940 = vadd.f32 %v334, %v4843
      %v4941 = vadd.f32 %v335, %v4845
      %v4942 = vadd.f32 %v336, %v4847
      %v4943 = vadd.f32 %v337, %v4846
      %v4944 = vadd.f32 %v338, %v4848
      %v4945 = vadd.f32 %v339, %v4850
      %v4946 = vadd.f32 %v340, %v4849
      %v4947 = vadd.f32 %v341, %v4851
      %v4948 = vadd.f32 %v342, %v4853
      %v4949 = vadd.f32 %v343, %v4852
      %v4950 = vadd.f32 %v344, %v4854
      %v4951 = vadd.f32 %v345, %v4856
      %v4952 = vadd.f32 %v346, %v4855
      %v4953 = vadd.f32 %v347, %v4857
      %v4954 = vadd.f32 %v348, %v4859
      %v4955 = vadd.f32 %v349, %v4858
      %v4956 = vadd.f32 %v350, %v4860
      %v4957 = vadd.f32 %v351, %v4862
      %v4958 = vadd.f32 %v352, %v4861
      %v4959 = vadd.f32 %v353, %v4863
      %v4960 = vadd.f32 %v354, %v4865
      %v4961 = vadd.f32 %v355, %v4864
      %v4962 = vadd.f32 %v356, %v4866
      %v4963 = vadd.f32 %v357, %v4868
      %v4964 = vadd.f32 %v358, %v4867
      %v4965 = vadd.f32 %v359, %v4869
      %v4966 = vadd.f32 %v360, %v4871
      %v4967 = vadd.f32 %v361, %v4870
      %v4968 = vadd.f32 %v362, %v4872
      %v4969 = vadd.f32 %v363, %v4874
      %v4970 = vadd.f32 %v364, %v4873
      %v4971 = vadd.f32 %v365, %v4875
      %v4972 = vadd.f32 %v366, %v4877
      %v4973 = vadd.f32 %v367, %v4876
      %v4974 = vadd.f32 %v368, %v4878
      %v4975 = vadd.f32 %v369, %v4880
      %v4976 = vadd.f32 %v370, %v4879
      %v4977 = vadd.f32 %v371, %v4881
      %v4978 = vadd.f32 %v372, %v4883
      %v4979 = vadd.f32 %v373, %v4882
      %v4980 = vadd.f32 %v374, %v4884
      %v4981 = vadd.f32 %v375, %v4886
      %v4982 = vadd.f32 %v376, %v4885
      %v5031 = vrot.slane %v4935, 1
      %v5032 = vrot.slane %v4936, 1
      %v5033 = vsel %vm2467, %v5031, %v5032
      %v5034 = vrot.slane %v4937, 1
      %v5035 = vsel %vm2467, %v5032, %v5034
      %v5036 = vrot.slane %v4938, 1
      %v5037 = vrot.slane %v4939, 1
      %v5038 = vsel %vm2467, %v5036, %v5037
      %v5039 = vrot.slane %v4940, 1
      %v5040 = vsel %vm2467, %v5037, %v5039
      %v5041 = vrot.slane %v4941, 1
      %v5042 = vrot.slane %v4942, 1
      %v5043 = vsel %vm2467, %v5041, %v5042
      %v5044 = vrot.slane %v4943, 1
      %v5045 = vsel %vm2467, %v5042, %v5044
      %v5046 = vrot.slane %v4944, 1
      %v5047 = vrot.slane %v4945, 1
      %v5048 = vsel %vm2467, %v5046, %v5047
      %v5049 = vrot.slane %v4946, 1
      %v5050 = vsel %vm2467, %v5047, %v5049
      %v5051 = vrot.slane %v4947, 1
      %v5052 = vrot.slane %v4948, 1
      %v5053 = vsel %vm2467, %v5051, %v5052
      %v5054 = vrot.slane %v4949, 1
      %v5055 = vsel %vm2467, %v5052, %v5054
      %v5056 = vrot.slane %v4950, 1
      %v5057 = vrot.slane %v4951, 1
      %v5058 = vsel %vm2467, %v5056, %v5057
      %v5059 = vrot.slane %v4952, 1
      %v5060 = vsel %vm2467, %v5057, %v5059
      %v5061 = vrot.slane %v4953, 1
      %v5062 = vrot.slane %v4954, 1
      %v5063 = vsel %vm2467, %v5061, %v5062
      %v5064 = vrot.slane %v4955, 1
      %v5065 = vsel %vm2467, %v5062, %v5064
      %v5066 = vrot.slane %v4956, 1
      %v5067 = vrot.slane %v4957, 1
      %v5068 = vsel %vm2467, %v5066, %v5067
      %v5069 = vrot.slane %v4958, 1
      %v5070 = vsel %vm2467, %v5067, %v5069
      %v5071 = vrot.slane %v4959, 1
      %v5072 = vrot.slane %v4960, 1
      %v5073 = vsel %vm2467, %v5071, %v5072
      %v5074 = vrot.slane %v4961, 1
      %v5075 = vsel %vm2467, %v5072, %v5074
      %v5076 = vrot.slane %v4962, 1
      %v5077 = vrot.slane %v4963, 1
      %v5078 = vsel %vm2467, %v5076, %v5077
      %v5079 = vrot.slane %v4964, 1
      %v5080 = vsel %vm2467, %v5077, %v5079
      %v5081 = vrot.slane %v4965, 1
      %v5082 = vrot.slane %v4966, 1
      %v5083 = vsel %vm2467, %v5081, %v5082
      %v5084 = vrot.slane %v4967, 1
      %v5085 = vsel %vm2467, %v5082, %v5084
      %v5086 = vrot.slane %v4968, 1
      %v5087 = vrot.slane %v4969, 1
      %v5088 = vsel %vm2467, %v5086, %v5087
      %v5089 = vrot.slane %v4970, 1
      %v5090 = vsel %vm2467, %v5087, %v5089
      %v5091 = vrot.slane %v4971, 1
      %v5092 = vrot.slane %v4972, 1
      %v5093 = vsel %vm2467, %v5091, %v5092
      %v5094 = vrot.slane %v4973, 1
      %v5095 = vsel %vm2467, %v5092, %v5094
      %v5096 = vrot.slane %v4974, 1
      %v5097 = vrot.slane %v4975, 1
      %v5098 = vsel %vm2467, %v5096, %v5097
      %v5099 = vrot.slane %v4976, 1
      %v5100 = vsel %vm2467, %v5097, %v5099
      %v5101 = vrot.slane %v4977, 1
      %v5102 = vrot.slane %v4978, 1
      %v5103 = vsel %vm2467, %v5101, %v5102
      %v5104 = vrot.slane %v4979, 1
      %v5105 = vsel %vm2467, %v5102, %v5104
      %v5106 = vrot.slane %v4980, 1
      %v5107 = vrot.slane %v4981, 1
      %v5108 = vsel %vm2467, %v5106, %v5107
      %v5109 = vrot.slane %v4982, 1
      %v5110 = vsel %vm2467, %v5107, %v5109
      %v5143 = vadd.f32 %v4390, %v5033
      %v5144 = vadd.f32 %v4391, %v5035
      %v5145 = vadd.f32 %v4392, %v5038
      %v5146 = vadd.f32 %v4393, %v5040
      %v5147 = vadd.f32 %v4394, %v5043
      %v5148 = vadd.f32 %v4395, %v5045
      %v5149 = vadd.f32 %v4396, %v5048
      %v5150 = vadd.f32 %v4397, %v5050
      %v5151 = vadd.f32 %v4398, %v5053
      %v5152 = vadd.f32 %v4399, %v5055
      %v5153 = vadd.f32 %v4400, %v5058
      %v5154 = vadd.f32 %v4401, %v5060
      %v5155 = vadd.f32 %v4402, %v5063
      %v5156 = vadd.f32 %v4403, %v5065
      %v5157 = vadd.f32 %v4404, %v5068
      %v5158 = vadd.f32 %v4405, %v5070
      %v5159 = vadd.f32 %v4406, %v5073
      %v5160 = vadd.f32 %v4407, %v5075
      %v5161 = vadd.f32 %v4408, %v5078
      %v5162 = vadd.f32 %v4409, %v5080
      %v5163 = vadd.f32 %v4410, %v5083
      %v5164 = vadd.f32 %v4411, %v5085
      %v5165 = vadd.f32 %v4412, %v5088
      %v5166 = vadd.f32 %v4413, %v5090
      %v5167 = vadd.f32 %v4414, %v5093
      %v5168 = vadd.f32 %v4415, %v5095
      %v5169 = vadd.f32 %v4416, %v5098
      %v5170 = vadd.f32 %v4417, %v5100
      %v5171 = vadd.f32 %v4418, %v5103
      %v5172 = vadd.f32 %v4419, %v5105
      %v5173 = vadd.f32 %v4420, %v5108
      %v5174 = vadd.f32 %v4421, %v5110
      %5175 = vst.msk [vmem:[%s4389 + $0x1] sm:$0xff] %vm4001, %v5143
      %5176 = vst.msk [vmem:[%s4389 + $0x9] sm:$0xff] %vm4001, %v5144
      %5177 = vst.msk [vmem:[%s4389 + $0x19] sm:$0xff] %vm4001, %v5145
      %5178 = vst.msk [vmem:[%s4389 + $0x21] sm:$0xff] %vm4001, %v5146
      %5179 = vst.msk [vmem:[%s4389 + $0x31] sm:$0xff] %vm4001, %v5147
      %5180 = vst.msk [vmem:[%s4389 + $0x39] sm:$0xff] %vm4001, %v5148
      %5181 = vst.msk [vmem:[%s4389 + $0x49] sm:$0xff] %vm4001, %v5149
      %5182 = vst.msk [vmem:[%s4389 + $0x51] sm:$0xff] %vm4001, %v5150
      %5183 = vst.msk [vmem:[%s4389 + $0x61] sm:$0xff] %vm4001, %v5151
      %5184 = vst.msk [vmem:[%s4389 + $0x69] sm:$0xff] %vm4001, %v5152
      %5185 = vst.msk [vmem:[%s4389 + $0x79] sm:$0xff] %vm4001, %v5153
      %5186 = vst.msk [vmem:[%s4389 + $0x81] sm:$0xff] %vm4001, %v5154
      %5187 = vst.msk [vmem:[%s4389 + $0x91] sm:$0xff] %vm4001, %v5155
      %5188 = vst.msk [vmem:[%s4389 + $0x99] sm:$0xff] %vm4001, %v5156
      %5189 = vst.msk [vmem:[%s4389 + $0xa9] sm:$0xff] %vm4001, %v5157
      %5190 = vst.msk [vmem:[%s4389 + $0xb1] sm:$0xff] %vm4001, %v5158
      %5191 = vst.msk [vmem:[%s4389 + $0xc1] sm:$0xff] %vm4001, %v5159
      %5192 = vst.msk [vmem:[%s4389 + $0xc9] sm:$0xff] %vm4001, %v5160
      %5193 = vst.msk [vmem:[%s4389 + $0xd9] sm:$0xff] %vm4001, %v5161
      %5194 = vst.msk [vmem:[%s4389 + $0xe1] sm:$0xff] %vm4001, %v5162
      %5195 = vst.msk [vmem:[%s4389 + $0xf1] sm:$0xff] %vm4001, %v5163
      %5196 = vst.msk [vmem:[%s4389 + $0xf9] sm:$0xff] %vm4001, %v5164
      %5197 = vst.msk [vmem:[%s4389 + $0x109] sm:$0xff] %vm4001, %v5165
      %5198 = vst.msk [vmem:[%s4389 + $0x111] sm:$0xff] %vm4001, %v5166
      %5199 = vst.msk [vmem:[%s4389 + $0x121] sm:$0xff] %vm4001, %v5167
      %5200 = vst.msk [vmem:[%s4389 + $0x129] sm:$0xff] %vm4001, %v5168
      %5201 = vst.msk [vmem:[%s4389 + $0x139] sm:$0xff] %vm4001, %v5169
      %5202 = vst.msk [vmem:[%s4389 + $0x141] sm:$0xff] %vm4001, %v5170
      %5203 = vst.msk [vmem:[%s4389 + $0x151] sm:$0xff] %vm4001, %v5171
      %5204 = vst.msk [vmem:[%s4389 + $0x159] sm:$0xff] %vm4001, %v5172
      %5205 = vst.msk [vmem:[%s4389 + $0x169] sm:$0xff] %vm4001, %v5173
      %5206 = vst.msk [vmem:[%s4389 + $0x171] sm:$0xff] %vm4001, %v5174
      %p5207 = scmp.eq.s32.totalorder %s24, 1
      // Predicated region
      $region53: #{tpu_custom_call.1} parent=47 // pred_check
        %p5208 = pneg %p5207
      $region54: #{tpu_custom_call.1} parent=47 // pred_check_branch
        %5210 = sbr.rel (%p5208) target = $region56
      $region55: #{tpu_custom_call.1} parent=47 // pred_region
        %v5211 = vld [vmem:[#allocation3] sm:$0xff]
        %v5212 = vld [vmem:[#allocation3 + $0x8] sm:$0xff]
        %v5213 = vld [vmem:[#allocation3 + $0x18] sm:$0xff]
        %v5214 = vld [vmem:[#allocation3 + $0x20] sm:$0xff]
        %v5215 = vld [vmem:[#allocation3 + $0x30] sm:$0xff]
        %v5216 = vld [vmem:[#allocation3 + $0x38] sm:$0xff]
        %v5217 = vld [vmem:[#allocation3 + $0x48] sm:$0xff]
        %v5218 = vld [vmem:[#allocation3 + $0x50] sm:$0xff]
        %v5219 = vld [vmem:[#allocation3 + $0x60] sm:$0xff]
        %v5220 = vld [vmem:[#allocation3 + $0x68] sm:$0xff]
        %v5221 = vld [vmem:[#allocation3 + $0x78] sm:$0xff]
        %v5222 = vld [vmem:[#allocation3 + $0x80] sm:$0xff]
        %v5223 = vld [vmem:[#allocation3 + $0x90] sm:$0xff]
        %v5224 = vld [vmem:[#allocation3 + $0x98] sm:$0xff]
        %v5225 = vld [vmem:[#allocation3 + $0xa8] sm:$0xff]
        %v5226 = vld [vmem:[#allocation3 + $0xb0] sm:$0xff]
        %v5227 = vld [vmem:[#allocation3 + $0xc0] sm:$0xff]
        %v5228 = vld [vmem:[#allocation3 + $0xc8] sm:$0xff]
        %v5229 = vld [vmem:[#allocation3 + $0xd8] sm:$0xff]
        %v5230 = vld [vmem:[#allocation3 + $0xe0] sm:$0xff]
        %v5231 = vld [vmem:[#allocation3 + $0xf0] sm:$0xff]
        %v5232 = vld [vmem:[#allocation3 + $0xf8] sm:$0xff]
        %v5233 = vld [vmem:[#allocation3 + $0x108] sm:$0xff]
        %v5234 = vld [vmem:[#allocation3 + $0x110] sm:$0xff]
        %v5235 = vld [vmem:[#allocation3 + $0x120] sm:$0xff]
        %v5236 = vld [vmem:[#allocation3 + $0x128] sm:$0xff]
        %v5237 = vld [vmem:[#allocation3 + $0x138] sm:$0xff]
        %v5238 = vld [vmem:[#allocation3 + $0x140] sm:$0xff]
        %v5239 = vld [vmem:[#allocation3 + $0x150] sm:$0xff]
        %v5240 = vld [vmem:[#allocation3 + $0x158] sm:$0xff]
        %v5241 = vld [vmem:[#allocation3 + $0x168] sm:$0xff]
        %v5242 = vld [vmem:[#allocation3 + $0x170] sm:$0xff]
        %5243 = vst.msk [vmem:[#allocation4] sm:$0xff] %vm4001, %v5211
        %5244 = vst.msk [vmem:[#allocation4 + $0x8] sm:$0xff] %vm4001, %v5212
        %5245 = vst.msk [vmem:[#allocation4 + $0x10] sm:$0xff] %vm4001, %v5213
        %5246 = vst.msk [vmem:[#allocation4 + $0x18] sm:$0xff] %vm4001, %v5214
        %5247 = vst.msk [vmem:[#allocation4 + $0x20] sm:$0xff] %vm4001, %v5215
        %5248 = vst.msk [vmem:[#allocation4 + $0x28] sm:$0xff] %vm4001, %v5216
        %5249 = vst.msk [vmem:[#allocation4 + $0x30] sm:$0xff] %vm4001, %v5217
        %5250 = vst.msk [vmem:[#allocation4 + $0x38] sm:$0xff] %vm4001, %v5218
        %5251 = vst.msk [vmem:[#allocation4 + $0x40] sm:$0xff] %vm4001, %v5219
        %5252 = vst.msk [vmem:[#allocation4 + $0x48] sm:$0xff] %vm4001, %v5220
        %5253 = vst.msk [vmem:[#allocation4 + $0x50] sm:$0xff] %vm4001, %v5221
        %5254 = vst.msk [vmem:[#allocation4 + $0x58] sm:$0xff] %vm4001, %v5222
        %5255 = vst.msk [vmem:[#allocation4 + $0x60] sm:$0xff] %vm4001, %v5223
        %5256 = vst.msk [vmem:[#allocation4 + $0x68] sm:$0xff] %vm4001, %v5224
        %5257 = vst.msk [vmem:[#allocation4 + $0x70] sm:$0xff] %vm4001, %v5225
        %5258 = vst.msk [vmem:[#allocation4 + $0x78] sm:$0xff] %vm4001, %v5226
        %5259 = vst.msk [vmem:[#allocation4 + $0x80] sm:$0xff] %vm4001, %v5227
        %5260 = vst.msk [vmem:[#allocation4 + $0x88] sm:$0xff] %vm4001, %v5228
        %5261 = vst.msk [vmem:[#allocation4 + $0x90] sm:$0xff] %vm4001, %v5229
        %5262 = vst.msk [vmem:[#allocation4 + $0x98] sm:$0xff] %vm4001, %v5230
        %5263 = vst.msk [vmem:[#allocation4 + $0xa0] sm:$0xff] %vm4001, %v5231
        %5264 = vst.msk [vmem:[#allocation4 + $0xa8] sm:$0xff] %vm4001, %v5232
        %5265 = vst.msk [vmem:[#allocation4 + $0xb0] sm:$0xff] %vm4001, %v5233
        %5266 = vst.msk [vmem:[#allocation4 + $0xb8] sm:$0xff] %vm4001, %v5234
        %5267 = vst.msk [vmem:[#allocation4 + $0xc0] sm:$0xff] %vm4001, %v5235
        %5268 = vst.msk [vmem:[#allocation4 + $0xc8] sm:$0xff] %vm4001, %v5236
        %5269 = vst.msk [vmem:[#allocation4 + $0xd0] sm:$0xff] %vm4001, %v5237
        %5270 = vst.msk [vmem:[#allocation4 + $0xd8] sm:$0xff] %vm4001, %v5238
        %5271 = vst.msk [vmem:[#allocation4 + $0xe0] sm:$0xff] %vm4001, %v5239
        %5272 = vst.msk [vmem:[#allocation4 + $0xe8] sm:$0xff] %vm4001, %v5240
        %5273 = vst.msk [vmem:[#allocation4 + $0xf0] sm:$0xff] %vm4001, %v5241
        %5274 = vst.msk [vmem:[#allocation4 + $0xf8] sm:$0xff] %vm4001, %v5242
        %v5275 = vld [vmem:[#allocation3 + $0x1] sm:$0xff]
        %v5276 = vld [vmem:[#allocation3 + $0x9] sm:$0xff]
        %v5277 = vld [vmem:[#allocation3 + $0x19] sm:$0xff]
        %v5278 = vld [vmem:[#allocation3 + $0x21] sm:$0xff]
        %v5279 = vld [vmem:[#allocation3 + $0x31] sm:$0xff]
        %v5280 = vld [vmem:[#allocation3 + $0x39] sm:$0xff]
        %v5281 = vld [vmem:[#allocation3 + $0x49] sm:$0xff]
        %v5282 = vld [vmem:[#allocation3 + $0x51] sm:$0xff]
        %v5283 = vld [vmem:[#allocation3 + $0x61] sm:$0xff]
        %v5284 = vld [vmem:[#allocation3 + $0x69] sm:$0xff]
        %v5285 = vld [vmem:[#allocation3 + $0x79] sm:$0xff]
        %v5286 = vld [vmem:[#allocation3 + $0x81] sm:$0xff]
        %v5287 = vld [vmem:[#allocation3 + $0x91] sm:$0xff]
        %v5288 = vld [vmem:[#allocation3 + $0x99] sm:$0xff]
        %v5289 = vld [vmem:[#allocation3 + $0xa9] sm:$0xff]
        %v5290 = vld [vmem:[#allocation3 + $0xb1] sm:$0xff]
        %v5291 = vld [vmem:[#allocation3 + $0xc1] sm:$0xff]
        %v5292 = vld [vmem:[#allocation3 + $0xc9] sm:$0xff]
        %v5293 = vld [vmem:[#allocation3 + $0xd9] sm:$0xff]
        %v5294 = vld [vmem:[#allocation3 + $0xe1] sm:$0xff]
        %v5295 = vld [vmem:[#allocation3 + $0xf1] sm:$0xff]
        %v5296 = vld [vmem:[#allocation3 + $0xf9] sm:$0xff]
        %v5297 = vld [vmem:[#allocation3 + $0x109] sm:$0xff]
        %v5298 = vld [vmem:[#allocation3 + $0x111] sm:$0xff]
        %v5299 = vld [vmem:[#allocation3 + $0x121] sm:$0xff]
        %v5300 = vld [vmem:[#allocation3 + $0x129] sm:$0xff]
        %v5301 = vld [vmem:[#allocation3 + $0x139] sm:$0xff]
        %v5302 = vld [vmem:[#allocation3 + $0x141] sm:$0xff]
        %v5303 = vld [vmem:[#allocation3 + $0x151] sm:$0xff]
        %v5304 = vld [vmem:[#allocation3 + $0x159] sm:$0xff]
        %v5305 = vld [vmem:[#allocation3 + $0x169] sm:$0xff]
        %v5306 = vld [vmem:[#allocation3 + $0x171] sm:$0xff]
        %5339 = vrot.lane.b32.xlu0 %v5275, 4
        %v5340 = vpop.permute.xlu0 %5339
        %5341 = vrot.lane.b32.xlu0 %v5276, 4
        %v5342 = vpop.permute.xlu0 %5341
        %5343 = vrot.lane.b32.xlu0 %v5277, 4
        %v5344 = vpop.permute.xlu0 %5343
        %5345 = vrot.lane.b32.xlu0 %v5278, 4
        %v5346 = vpop.permute.xlu0 %5345
        %5347 = vrot.lane.b32.xlu0 %v5279, 4
        %v5348 = vpop.permute.xlu0 %5347
        %5349 = vrot.lane.b32.xlu0 %v5280, 4
        %v5350 = vpop.permute.xlu0 %5349
        %5351 = vrot.lane.b32.xlu0 %v5281, 4
        %v5352 = vpop.permute.xlu0 %5351
        %5353 = vrot.lane.b32.xlu0 %v5282, 4
        %v5354 = vpop.permute.xlu0 %5353
        %5355 = vrot.lane.b32.xlu0 %v5283, 4
        %v5356 = vpop.permute.xlu0 %5355
        %5357 = vrot.lane.b32.xlu0 %v5284, 4
        %v5358 = vpop.permute.xlu0 %5357
        %5359 = vrot.lane.b32.xlu0 %v5285, 4
        %v5360 = vpop.permute.xlu0 %5359
        %5361 = vrot.lane.b32.xlu0 %v5286, 4
        %v5362 = vpop.permute.xlu0 %5361
        %5363 = vrot.lane.b32.xlu0 %v5287, 4
        %v5364 = vpop.permute.xlu0 %5363
        %5365 = vrot.lane.b32.xlu0 %v5288, 4
        %v5366 = vpop.permute.xlu0 %5365
        %5367 = vrot.lane.b32.xlu0 %v5289, 4
        %v5368 = vpop.permute.xlu0 %5367
        %5369 = vrot.lane.b32.xlu0 %v5290, 4
        %v5370 = vpop.permute.xlu0 %5369
        %5371 = vrot.lane.b32.xlu0 %v5291, 4
        %v5372 = vpop.permute.xlu0 %5371
        %5373 = vrot.lane.b32.xlu0 %v5292, 4
        %v5374 = vpop.permute.xlu0 %5373
        %5375 = vrot.lane.b32.xlu0 %v5293, 4
        %v5376 = vpop.permute.xlu0 %5375
        %5377 = vrot.lane.b32.xlu0 %v5294, 4
        %v5378 = vpop.permute.xlu0 %5377
        %5379 = vrot.lane.b32.xlu0 %v5295, 4
        %v5380 = vpop.permute.xlu0 %5379
        %5381 = vrot.lane.b32.xlu0 %v5296, 4
        %v5382 = vpop.permute.xlu0 %5381
        %5383 = vrot.lane.b32.xlu0 %v5297, 4
        %v5384 = vpop.permute.xlu0 %5383
        %5385 = vrot.lane.b32.xlu0 %v5298, 4
        %v5386 = vpop.permute.xlu0 %5385
        %5387 = vrot.lane.b32.xlu0 %v5299, 4
        %v5388 = vpop.permute.xlu0 %5387
        %5389 = vrot.lane.b32.xlu0 %v5300, 4
        %v5390 = vpop.permute.xlu0 %5389
        %5391 = vrot.lane.b32.xlu0 %v5301, 4
        %v5392 = vpop.permute.xlu0 %5391
        %5393 = vrot.lane.b32.xlu0 %v5302, 4
        %v5394 = vpop.permute.xlu0 %5393
        %5395 = vrot.lane.b32.xlu0 %v5303, 4
        %v5396 = vpop.permute.xlu0 %5395
        %5397 = vrot.lane.b32.xlu0 %v5304, 4
        %v5398 = vpop.permute.xlu0 %5397
        %5399 = vrot.lane.b32.xlu0 %v5305, 4
        %v5400 = vpop.permute.xlu0 %5399
        %5401 = vrot.lane.b32.xlu0 %v5306, 4
        %v5402 = vpop.permute.xlu0 %5401
        %vm5435 = vcmask 64544
        %5436 = vst.msk [vmem:[#allocation4] sm:$0xff] %vm5435, %v5340
        %5437 = vst.msk [vmem:[#allocation4 + $0x8] sm:$0xff] %vm5435, %v5342
        %5438 = vst.msk [vmem:[#allocation4 + $0x10] sm:$0xff] %vm5435, %v5344
        %5439 = vst.msk [vmem:[#allocation4 + $0x18] sm:$0xff] %vm5435, %v5346
        %5440 = vst.msk [vmem:[#allocation4 + $0x20] sm:$0xff] %vm5435, %v5348
        %5441 = vst.msk [vmem:[#allocation4 + $0x28] sm:$0xff] %vm5435, %v5350
        %5442 = vst.msk [vmem:[#allocation4 + $0x30] sm:$0xff] %vm5435, %v5352
        %5443 = vst.msk [vmem:[#allocation4 + $0x38] sm:$0xff] %vm5435, %v5354
        %5444 = vst.msk [vmem:[#allocation4 + $0x40] sm:$0xff] %vm5435, %v5356
        %5445 = vst.msk [vmem:[#allocation4 + $0x48] sm:$0xff] %vm5435, %v5358
        %5446 = vst.msk [vmem:[#allocation4 + $0x50] sm:$0xff] %vm5435, %v5360
        %5447 = vst.msk [vmem:[#allocation4 + $0x58] sm:$0xff] %vm5435, %v5362
        %5448 = vst.msk [vmem:[#allocation4 + $0x60] sm:$0xff] %vm5435, %v5364
        %5449 = vst.msk [vmem:[#allocation4 + $0x68] sm:$0xff] %vm5435, %v5366
        %5450 = vst.msk [vmem:[#allocation4 + $0x70] sm:$0xff] %vm5435, %v5368
        %5451 = vst.msk [vmem:[#allocation4 + $0x78] sm:$0xff] %vm5435, %v5370
        %5452 = vst.msk [vmem:[#allocation4 + $0x80] sm:$0xff] %vm5435, %v5372
        %5453 = vst.msk [vmem:[#allocation4 + $0x88] sm:$0xff] %vm5435, %v5374
        %5454 = vst.msk [vmem:[#allocation4 + $0x90] sm:$0xff] %vm5435, %v5376
        %5455 = vst.msk [vmem:[#allocation4 + $0x98] sm:$0xff] %vm5435, %v5378
        %5456 = vst.msk [vmem:[#allocation4 + $0xa0] sm:$0xff] %vm5435, %v5380
        %5457 = vst.msk [vmem:[#allocation4 + $0xa8] sm:$0xff] %vm5435, %v5382
        %5458 = vst.msk [vmem:[#allocation4 + $0xb0] sm:$0xff] %vm5435, %v5384
        %5459 = vst.msk [vmem:[#allocation4 + $0xb8] sm:$0xff] %vm5435, %v5386
        %5460 = vst.msk [vmem:[#allocation4 + $0xc0] sm:$0xff] %vm5435, %v5388
        %5461 = vst.msk [vmem:[#allocation4 + $0xc8] sm:$0xff] %vm5435, %v5390
        %5462 = vst.msk [vmem:[#allocation4 + $0xd0] sm:$0xff] %vm5435, %v5392
        %5463 = vst.msk [vmem:[#allocation4 + $0xd8] sm:$0xff] %vm5435, %v5394
        %5464 = vst.msk [vmem:[#allocation4 + $0xe0] sm:$0xff] %vm5435, %v5396
        %5465 = vst.msk [vmem:[#allocation4 + $0xe8] sm:$0xff] %vm5435, %v5398
        %5466 = vst.msk [vmem:[#allocation4 + $0xf0] sm:$0xff] %vm5435, %v5400
        %5467 = vst.msk [vmem:[#allocation4 + $0xf8] sm:$0xff] %vm5435, %v5402
        %v5468 = vld [vmem:[#allocation3 + $0x2] sm:$0xff]
        %v5469 = vld [vmem:[#allocation3 + $0xa] sm:$0xff]
        %v5470 = vld [vmem:[#allocation3 + $0x1a] sm:$0xff]
        %v5471 = vld [vmem:[#allocation3 + $0x22] sm:$0xff]
        %v5472 = vld [vmem:[#allocation3 + $0x32] sm:$0xff]
        %v5473 = vld [vmem:[#allocation3 + $0x3a] sm:$0xff]
        %v5474 = vld [vmem:[#allocation3 + $0x4a] sm:$0xff]
        %v5475 = vld [vmem:[#allocation3 + $0x52] sm:$0xff]
        %v5476 = vld [vmem:[#allocation3 + $0x62] sm:$0xff]
        %v5477 = vld [vmem:[#allocation3 + $0x6a] sm:$0xff]
        %v5478 = vld [vmem:[#allocation3 + $0x7a] sm:$0xff]
        %v5479 = vld [vmem:[#allocation3 + $0x82] sm:$0xff]
        %v5480 = vld [vmem:[#allocation3 + $0x92] sm:$0xff]
        %v5481 = vld [vmem:[#allocation3 + $0x9a] sm:$0xff]
        %v5482 = vld [vmem:[#allocation3 + $0xaa] sm:$0xff]
        %v5483 = vld [vmem:[#allocation3 + $0xb2] sm:$0xff]
        %v5484 = vld [vmem:[#allocation3 + $0xc2] sm:$0xff]
        %v5485 = vld [vmem:[#allocation3 + $0xca] sm:$0xff]
        %v5486 = vld [vmem:[#allocation3 + $0xda] sm:$0xff]
        %v5487 = vld [vmem:[#allocation3 + $0xe2] sm:$0xff]
        %v5488 = vld [vmem:[#allocation3 + $0xf2] sm:$0xff]
        %v5489 = vld [vmem:[#allocation3 + $0xfa] sm:$0xff]
        %v5490 = vld [vmem:[#allocation3 + $0x10a] sm:$0xff]
        %v5491 = vld [vmem:[#allocation3 + $0x112] sm:$0xff]
        %v5492 = vld [vmem:[#allocation3 + $0x122] sm:$0xff]
        %v5493 = vld [vmem:[#allocation3 + $0x12a] sm:$0xff]
        %v5494 = vld [vmem:[#allocation3 + $0x13a] sm:$0xff]
        %v5495 = vld [vmem:[#allocation3 + $0x142] sm:$0xff]
        %v5496 = vld [vmem:[#allocation3 + $0x152] sm:$0xff]
        %v5497 = vld [vmem:[#allocation3 + $0x15a] sm:$0xff]
        %v5498 = vld [vmem:[#allocation3 + $0x16a] sm:$0xff]
        %v5499 = vld [vmem:[#allocation3 + $0x172] sm:$0xff]
        %5532 = vrot.lane.b32.xlu0 %v5468, 8
        %v5533 = vpop.permute.xlu0 %5532
        %5534 = vrot.lane.b32.xlu0 %v5469, 8
        %v5535 = vpop.permute.xlu0 %5534
        %5536 = vrot.lane.b32.xlu0 %v5470, 8
        %v5537 = vpop.permute.xlu0 %5536
        %5538 = vrot.lane.b32.xlu0 %v5471, 8
        %v5539 = vpop.permute.xlu0 %5538
        %5540 = vrot.lane.b32.xlu0 %v5472, 8
        %v5541 = vpop.permute.xlu0 %5540
        %5542 = vrot.lane.b32.xlu0 %v5473, 8
        %v5543 = vpop.permute.xlu0 %5542
        %5544 = vrot.lane.b32.xlu0 %v5474, 8
        %v5545 = vpop.permute.xlu0 %5544
        %5546 = vrot.lane.b32.xlu0 %v5475, 8
        %v5547 = vpop.permute.xlu0 %5546
        %5548 = vrot.lane.b32.xlu0 %v5476, 8
        %v5549 = vpop.permute.xlu0 %5548
        %5550 = vrot.lane.b32.xlu0 %v5477, 8
        %v5551 = vpop.permute.xlu0 %5550
        %5552 = vrot.lane.b32.xlu0 %v5478, 8
        %v5553 = vpop.permute.xlu0 %5552
        %5554 = vrot.lane.b32.xlu0 %v5479, 8
        %v5555 = vpop.permute.xlu0 %5554
        %5556 = vrot.lane.b32.xlu0 %v5480, 8
        %v5557 = vpop.permute.xlu0 %5556
        %5558 = vrot.lane.b32.xlu0 %v5481, 8
        %v5559 = vpop.permute.xlu0 %5558
        %5560 = vrot.lane.b32.xlu0 %v5482, 8
        %v5561 = vpop.permute.xlu0 %5560
        %5562 = vrot.lane.b32.xlu0 %v5483, 8
        %v5563 = vpop.permute.xlu0 %5562
        %5564 = vrot.lane.b32.xlu0 %v5484, 8
        %v5565 = vpop.permute.xlu0 %5564
        %5566 = vrot.lane.b32.xlu0 %v5485, 8
        %v5567 = vpop.permute.xlu0 %5566
        %5568 = vrot.lane.b32.xlu0 %v5486, 8
        %v5569 = vpop.permute.xlu0 %5568
        %5570 = vrot.lane.b32.xlu0 %v5487, 8
        %v5571 = vpop.permute.xlu0 %5570
        %5572 = vrot.lane.b32.xlu0 %v5488, 8
        %v5573 = vpop.permute.xlu0 %5572
        %5574 = vrot.lane.b32.xlu0 %v5489, 8
        %v5575 = vpop.permute.xlu0 %5574
        %5576 = vrot.lane.b32.xlu0 %v5490, 8
        %v5577 = vpop.permute.xlu0 %5576
        %5578 = vrot.lane.b32.xlu0 %v5491, 8
        %v5579 = vpop.permute.xlu0 %5578
        %5580 = vrot.lane.b32.xlu0 %v5492, 8
        %v5581 = vpop.permute.xlu0 %5580
        %5582 = vrot.lane.b32.xlu0 %v5493, 8
        %v5583 = vpop.permute.xlu0 %5582
        %5584 = vrot.lane.b32.xlu0 %v5494, 8
        %v5585 = vpop.permute.xlu0 %5584
        %5586 = vrot.lane.b32.xlu0 %v5495, 8
        %v5587 = vpop.permute.xlu0 %5586
        %5588 = vrot.lane.b32.xlu0 %v5496, 8
        %v5589 = vpop.permute.xlu0 %5588
        %5590 = vrot.lane.b32.xlu0 %v5497, 8
        %v5591 = vpop.permute.xlu0 %5590
        %5592 = vrot.lane.b32.xlu0 %v5498, 8
        %v5593 = vpop.permute.xlu0 %5592
        %5594 = vrot.lane.b32.xlu0 %v5499, 8
        %v5595 = vpop.permute.xlu0 %5594
        %vm5628 = vcmask 97344
        %5629 = vst.msk [vmem:[#allocation4] sm:$0xff] %vm5628, %v5533
        %5630 = vst.msk [vmem:[#allocation4 + $0x8] sm:$0xff] %vm5628, %v5535
        %5631 = vst.msk [vmem:[#allocation4 + $0x10] sm:$0xff] %vm5628, %v5537
        %5632 = vst.msk [vmem:[#allocation4 + $0x18] sm:$0xff] %vm5628, %v5539
        %5633 = vst.msk [vmem:[#allocation4 + $0x20] sm:$0xff] %vm5628, %v5541
        %5634 = vst.msk [vmem:[#allocation4 + $0x28] sm:$0xff] %vm5628, %v5543
        %5635 = vst.msk [vmem:[#allocation4 + $0x30] sm:$0xff] %vm5628, %v5545
        %5636 = vst.msk [vmem:[#allocation4 + $0x38] sm:$0xff] %vm5628, %v5547
        %5637 = vst.msk [vmem:[#allocation4 + $0x40] sm:$0xff] %vm5628, %v5549
        %5638 = vst.msk [vmem:[#allocation4 + $0x48] sm:$0xff] %vm5628, %v5551
        %5639 = vst.msk [vmem:[#allocation4 + $0x50] sm:$0xff] %vm5628, %v5553
        %5640 = vst.msk [vmem:[#allocation4 + $0x58] sm:$0xff] %vm5628, %v5555
        %5641 = vst.msk [vmem:[#allocation4 + $0x60] sm:$0xff] %vm5628, %v5557
        %5642 = vst.msk [vmem:[#allocation4 + $0x68] sm:$0xff] %vm5628, %v5559
        %5643 = vst.msk [vmem:[#allocation4 + $0x70] sm:$0xff] %vm5628, %v5561
        %5644 = vst.msk [vmem:[#allocation4 + $0x78] sm:$0xff] %vm5628, %v5563
        %5645 = vst.msk [vmem:[#allocation4 + $0x80] sm:$0xff] %vm5628, %v5565
        %5646 = vst.msk [vmem:[#allocation4 + $0x88] sm:$0xff] %vm5628, %v5567
        %5647 = vst.msk [vmem:[#allocation4 + $0x90] sm:$0xff] %vm5628, %v5569
        %5648 = vst.msk [vmem:[#allocation4 + $0x98] sm:$0xff] %vm5628, %v5571
        %5649 = vst.msk [vmem:[#allocation4 + $0xa0] sm:$0xff] %vm5628, %v5573
        %5650 = vst.msk [vmem:[#allocation4 + $0xa8] sm:$0xff] %vm5628, %v5575
        %5651 = vst.msk [vmem:[#allocation4 + $0xb0] sm:$0xff] %vm5628, %v5577
        %5652 = vst.msk [vmem:[#allocation4 + $0xb8] sm:$0xff] %vm5628, %v5579
        %5653 = vst.msk [vmem:[#allocation4 + $0xc0] sm:$0xff] %vm5628, %v5581
        %5654 = vst.msk [vmem:[#allocation4 + $0xc8] sm:$0xff] %vm5628, %v5583
        %5655 = vst.msk [vmem:[#allocation4 + $0xd0] sm:$0xff] %vm5628, %v5585
        %5656 = vst.msk [vmem:[#allocation4 + $0xd8] sm:$0xff] %vm5628, %v5587
        %5657 = vst.msk [vmem:[#allocation4 + $0xe0] sm:$0xff] %vm5628, %v5589
        %5658 = vst.msk [vmem:[#allocation4 + $0xe8] sm:$0xff] %vm5628, %v5591
        %5659 = vst.msk [vmem:[#allocation4 + $0xf0] sm:$0xff] %vm5628, %v5593
        %5660 = vst.msk [vmem:[#allocation4 + $0xf8] sm:$0xff] %vm5628, %v5595
        %v5661 = vld [vmem:[%s4389] sm:$0xff]
        %v5662 = vld [vmem:[%s4389 + $0x8] sm:$0xff]
        %v5663 = vld [vmem:[%s4389 + $0x18] sm:$0xff]
        %v5664 = vld [vmem:[%s4389 + $0x20] sm:$0xff]
        %v5665 = vld [vmem:[%s4389 + $0x30] sm:$0xff]
        %v5666 = vld [vmem:[%s4389 + $0x38] sm:$0xff]
        %v5667 = vld [vmem:[%s4389 + $0x48] sm:$0xff]
        %v5668 = vld [vmem:[%s4389 + $0x50] sm:$0xff]
        %v5669 = vld [vmem:[%s4389 + $0x60] sm:$0xff]
        %v5670 = vld [vmem:[%s4389 + $0x68] sm:$0xff]
        %v5671 = vld [vmem:[%s4389 + $0x78] sm:$0xff]
        %v5672 = vld [vmem:[%s4389 + $0x80] sm:$0xff]
        %v5673 = vld [vmem:[%s4389 + $0x90] sm:$0xff]
        %v5674 = vld [vmem:[%s4389 + $0x98] sm:$0xff]
        %v5675 = vld [vmem:[%s4389 + $0xa8] sm:$0xff]
        %v5676 = vld [vmem:[%s4389 + $0xb0] sm:$0xff]
        %v5677 = vld [vmem:[%s4389 + $0xc0] sm:$0xff]
        %v5678 = vld [vmem:[%s4389 + $0xc8] sm:$0xff]
        %v5679 = vld [vmem:[%s4389 + $0xd8] sm:$0xff]
        %v5680 = vld [vmem:[%s4389 + $0xe0] sm:$0xff]
        %v5681 = vld [vmem:[%s4389 + $0xf0] sm:$0xff]
        %v5682 = vld [vmem:[%s4389 + $0xf8] sm:$0xff]
        %v5683 = vld [vmem:[%s4389 + $0x108] sm:$0xff]
        %v5684 = vld [vmem:[%s4389 + $0x110] sm:$0xff]
        %v5685 = vld [vmem:[%s4389 + $0x120] sm:$0xff]
        %v5686 = vld [vmem:[%s4389 + $0x128] sm:$0xff]
        %v5687 = vld [vmem:[%s4389 + $0x138] sm:$0xff]
        %v5688 = vld [vmem:[%s4389 + $0x140] sm:$0xff]
        %v5689 = vld [vmem:[%s4389 + $0x150] sm:$0xff]
        %v5690 = vld [vmem:[%s4389 + $0x158] sm:$0xff]
        %v5691 = vld [vmem:[%s4389 + $0x168] sm:$0xff]
        %v5692 = vld [vmem:[%s4389 + $0x170] sm:$0xff]
        %5725 = vrot.lane.b32.xlu0 %v5661, 12
        %v5726 = vpop.permute.xlu0 %5725
        %5727 = vrot.lane.b32.xlu0 %v5662, 12
        %v5728 = vpop.permute.xlu0 %5727
        %5729 = vrot.lane.b32.xlu0 %v5663, 12
        %v5730 = vpop.permute.xlu0 %5729
        %5731 = vrot.lane.b32.xlu0 %v5664, 12
        %v5732 = vpop.permute.xlu0 %5731
        %5733 = vrot.lane.b32.xlu0 %v5665, 12
        %v5734 = vpop.permute.xlu0 %5733
        %5735 = vrot.lane.b32.xlu0 %v5666, 12
        %v5736 = vpop.permute.xlu0 %5735
        %5737 = vrot.lane.b32.xlu0 %v5667, 12
        %v5738 = vpop.permute.xlu0 %5737
        %5739 = vrot.lane.b32.xlu0 %v5668, 12
        %v5740 = vpop.permute.xlu0 %5739
        %5741 = vrot.lane.b32.xlu0 %v5669, 12
        %v5742 = vpop.permute.xlu0 %5741
        %5743 = vrot.lane.b32.xlu0 %v5670, 12
        %v5744 = vpop.permute.xlu0 %5743
        %5745 = vrot.lane.b32.xlu0 %v5671, 12
        %v5746 = vpop.permute.xlu0 %5745
        %5747 = vrot.lane.b32.xlu0 %v5672, 12
        %v5748 = vpop.permute.xlu0 %5747
        %5749 = vrot.lane.b32.xlu0 %v5673, 12
        %v5750 = vpop.permute.xlu0 %5749
        %5751 = vrot.lane.b32.xlu0 %v5674, 12
        %v5752 = vpop.permute.xlu0 %5751
        %5753 = vrot.lane.b32.xlu0 %v5675, 12
        %v5754 = vpop.permute.xlu0 %5753
        %5755 = vrot.lane.b32.xlu0 %v5676, 12
        %v5756 = vpop.permute.xlu0 %5755
        %5757 = vrot.lane.b32.xlu0 %v5677, 12
        %v5758 = vpop.permute.xlu0 %5757
        %5759 = vrot.lane.b32.xlu0 %v5678, 12
        %v5760 = vpop.permute.xlu0 %5759
        %5761 = vrot.lane.b32.xlu0 %v5679, 12
        %v5762 = vpop.permute.xlu0 %5761
        %5763 = vrot.lane.b32.xlu0 %v5680, 12
        %v5764 = vpop.permute.xlu0 %5763
        %5765 = vrot.lane.b32.xlu0 %v5681, 12
        %v5766 = vpop.permute.xlu0 %5765
        %5767 = vrot.lane.b32.xlu0 %v5682, 12
        %v5768 = vpop.permute.xlu0 %5767
        %5769 = vrot.lane.b32.xlu0 %v5683, 12
        %v5770 = vpop.permute.xlu0 %5769
        %5771 = vrot.lane.b32.xlu0 %v5684, 12
        %v5772 = vpop.permute.xlu0 %5771
        %5773 = vrot.lane.b32.xlu0 %v5685, 12
        %v5774 = vpop.permute.xlu0 %5773
        %5775 = vrot.lane.b32.xlu0 %v5686, 12
        %v5776 = vpop.permute.xlu0 %5775
        %5777 = vrot.lane.b32.xlu0 %v5687, 12
        %v5778 = vpop.permute.xlu0 %5777
        %5779 = vrot.lane.b32.xlu0 %v5688, 12
        %v5780 = vpop.permute.xlu0 %5779
        %5781 = vrot.lane.b32.xlu0 %v5689, 12
        %v5782 = vpop.permute.xlu0 %5781
        %5783 = vrot.lane.b32.xlu0 %v5690, 12
        %v5784 = vpop.permute.xlu0 %5783
        %5785 = vrot.lane.b32.xlu0 %v5691, 12
        %v5786 = vpop.permute.xlu0 %5785
        %5787 = vrot.lane.b32.xlu0 %v5692, 12
        %v5788 = vpop.permute.xlu0 %5787
        %vm5821 = vcmask 130144
        %5822 = vst.msk [vmem:[#allocation4] sm:$0xff] %vm5821, %v5726
        %5823 = vst.msk [vmem:[#allocation4 + $0x8] sm:$0xff] %vm5821, %v5728
        %5824 = vst.msk [vmem:[#allocation4 + $0x10] sm:$0xff] %vm5821, %v5730
        %5825 = vst.msk [vmem:[#allocation4 + $0x18] sm:$0xff] %vm5821, %v5732
        %5826 = vst.msk [vmem:[#allocation4 + $0x20] sm:$0xff] %vm5821, %v5734
        %5827 = vst.msk [vmem:[#allocation4 + $0x28] sm:$0xff] %vm5821, %v5736
        %5828 = vst.msk [vmem:[#allocation4 + $0x30] sm:$0xff] %vm5821, %v5738
        %5829 = vst.msk [vmem:[#allocation4 + $0x38] sm:$0xff] %vm5821, %v5740
        %5830 = vst.msk [vmem:[#allocation4 + $0x40] sm:$0xff] %vm5821, %v5742
        %5831 = vst.msk [vmem:[#allocation4 + $0x48] sm:$0xff] %vm5821, %v5744
        %5832 = vst.msk [vmem:[#allocation4 + $0x50] sm:$0xff] %vm5821, %v5746
        %5833 = vst.msk [vmem:[#allocation4 + $0x58] sm:$0xff] %vm5821, %v5748
        %5834 = vst.msk [vmem:[#allocation4 + $0x60] sm:$0xff] %vm5821, %v5750
        %5835 = vst.msk [vmem:[#allocation4 + $0x68] sm:$0xff] %vm5821, %v5752
        %5836 = vst.msk [vmem:[#allocation4 + $0x70] sm:$0xff] %vm5821, %v5754
        %5837 = vst.msk [vmem:[#allocation4 + $0x78] sm:$0xff] %vm5821, %v5756
        %5838 = vst.msk [vmem:[#allocation4 + $0x80] sm:$0xff] %vm5821, %v5758
        %5839 = vst.msk [vmem:[#allocation4 + $0x88] sm:$0xff] %vm5821, %v5760
        %5840 = vst.msk [vmem:[#allocation4 + $0x90] sm:$0xff] %vm5821, %v5762
        %5841 = vst.msk [vmem:[#allocation4 + $0x98] sm:$0xff] %vm5821, %v5764
        %5842 = vst.msk [vmem:[#allocation4 + $0xa0] sm:$0xff] %vm5821, %v5766
        %5843 = vst.msk [vmem:[#allocation4 + $0xa8] sm:$0xff] %vm5821, %v5768
        %5844 = vst.msk [vmem:[#allocation4 + $0xb0] sm:$0xff] %vm5821, %v5770
        %5845 = vst.msk [vmem:[#allocation4 + $0xb8] sm:$0xff] %vm5821, %v5772
        %5846 = vst.msk [vmem:[#allocation4 + $0xc0] sm:$0xff] %vm5821, %v5774
        %5847 = vst.msk [vmem:[#allocation4 + $0xc8] sm:$0xff] %vm5821, %v5776
        %5848 = vst.msk [vmem:[#allocation4 + $0xd0] sm:$0xff] %vm5821, %v5778
        %5849 = vst.msk [vmem:[#allocation4 + $0xd8] sm:$0xff] %vm5821, %v5780
        %5850 = vst.msk [vmem:[#allocation4 + $0xe0] sm:$0xff] %vm5821, %v5782
        %5851 = vst.msk [vmem:[#allocation4 + $0xe8] sm:$0xff] %vm5821, %v5784
        %5852 = vst.msk [vmem:[#allocation4 + $0xf0] sm:$0xff] %vm5821, %v5786
        %5853 = vst.msk [vmem:[#allocation4 + $0xf8] sm:$0xff] %vm5821, %v5788
        %v5854 = vld [vmem:[%s4389 + $0x1] sm:$0xff]
        %v5855 = vld [vmem:[%s4389 + $0x9] sm:$0xff]
        %v5856 = vld [vmem:[%s4389 + $0x19] sm:$0xff]
        %v5857 = vld [vmem:[%s4389 + $0x21] sm:$0xff]
        %v5858 = vld [vmem:[%s4389 + $0x31] sm:$0xff]
        %v5859 = vld [vmem:[%s4389 + $0x39] sm:$0xff]
        %v5860 = vld [vmem:[%s4389 + $0x49] sm:$0xff]
        %v5861 = vld [vmem:[%s4389 + $0x51] sm:$0xff]
        %v5862 = vld [vmem:[%s4389 + $0x61] sm:$0xff]
        %v5863 = vld [vmem:[%s4389 + $0x69] sm:$0xff]
        %v5864 = vld [vmem:[%s4389 + $0x79] sm:$0xff]
        %v5865 = vld [vmem:[%s4389 + $0x81] sm:$0xff]
        %v5866 = vld [vmem:[%s4389 + $0x91] sm:$0xff]
        %v5867 = vld [vmem:[%s4389 + $0x99] sm:$0xff]
        %v5868 = vld [vmem:[%s4389 + $0xa9] sm:$0xff]
        %v5869 = vld [vmem:[%s4389 + $0xb1] sm:$0xff]
        %v5870 = vld [vmem:[%s4389 + $0xc1] sm:$0xff]
        %v5871 = vld [vmem:[%s4389 + $0xc9] sm:$0xff]
        %v5872 = vld [vmem:[%s4389 + $0xd9] sm:$0xff]
        %v5873 = vld [vmem:[%s4389 + $0xe1] sm:$0xff]
        %v5874 = vld [vmem:[%s4389 + $0xf1] sm:$0xff]
        %v5875 = vld [vmem:[%s4389 + $0xf9] sm:$0xff]
        %v5876 = vld [vmem:[%s4389 + $0x109] sm:$0xff]
        %v5877 = vld [vmem:[%s4389 + $0x111] sm:$0xff]
        %v5878 = vld [vmem:[%s4389 + $0x121] sm:$0xff]
        %v5879 = vld [vmem:[%s4389 + $0x129] sm:$0xff]
        %v5880 = vld [vmem:[%s4389 + $0x139] sm:$0xff]
        %v5881 = vld [vmem:[%s4389 + $0x141] sm:$0xff]
        %v5882 = vld [vmem:[%s4389 + $0x151] sm:$0xff]
        %v5883 = vld [vmem:[%s4389 + $0x159] sm:$0xff]
        %v5884 = vld [vmem:[%s4389 + $0x169] sm:$0xff]
        %v5885 = vld [vmem:[%s4389 + $0x171] sm:$0xff]
        %5918 = vrot.lane.b32.xlu0 %v5854, 16
        %v5919 = vpop.permute.xlu0 %5918
        %5920 = vrot.lane.b32.xlu0 %v5855, 16
        %v5921 = vpop.permute.xlu0 %5920
        %5922 = vrot.lane.b32.xlu0 %v5856, 16
        %v5923 = vpop.permute.xlu0 %5922
        %5924 = vrot.lane.b32.xlu0 %v5857, 16
        %v5925 = vpop.permute.xlu0 %5924
        %5926 = vrot.lane.b32.xlu0 %v5858, 16
        %v5927 = vpop.permute.xlu0 %5926
        %5928 = vrot.lane.b32.xlu0 %v5859, 16
        %v5929 = vpop.permute.xlu0 %5928
        %5930 = vrot.lane.b32.xlu0 %v5860, 16
        %v5931 = vpop.permute.xlu0 %5930
        %5932 = vrot.lane.b32.xlu0 %v5861, 16
        %v5933 = vpop.permute.xlu0 %5932
        %5934 = vrot.lane.b32.xlu0 %v5862, 16
        %v5935 = vpop.permute.xlu0 %5934
        %5936 = vrot.lane.b32.xlu0 %v5863, 16
        %v5937 = vpop.permute.xlu0 %5936
        %5938 = vrot.lane.b32.xlu0 %v5864, 16
        %v5939 = vpop.permute.xlu0 %5938
        %5940 = vrot.lane.b32.xlu0 %v5865, 16
        %v5941 = vpop.permute.xlu0 %5940
        %5942 = vrot.lane.b32.xlu0 %v5866, 16
        %v5943 = vpop.permute.xlu0 %5942
        %5944 = vrot.lane.b32.xlu0 %v5867, 16
        %v5945 = vpop.permute.xlu0 %5944
        %5946 = vrot.lane.b32.xlu0 %v5868, 16
        %v5947 = vpop.permute.xlu0 %5946
        %5948 = vrot.lane.b32.xlu0 %v5869, 16
        %v5949 = vpop.permute.xlu0 %5948
        %5950 = vrot.lane.b32.xlu0 %v5870, 16
        %v5951 = vpop.permute.xlu0 %5950
        %5952 = vrot.lane.b32.xlu0 %v5871, 16
        %v5953 = vpop.permute.xlu0 %5952
        %5954 = vrot.lane.b32.xlu0 %v5872, 16
        %v5955 = vpop.permute.xlu0 %5954
        %5956 = vrot.lane.b32.xlu0 %v5873, 16
        %v5957 = vpop.permute.xlu0 %5956
        %5958 = vrot.lane.b32.xlu0 %v5874, 16
        %v5959 = vpop.permute.xlu0 %5958
        %5960 = vrot.lane.b32.xlu0 %v5875, 16
        %v5961 = vpop.permute.xlu0 %5960
        %5962 = vrot.lane.b32.xlu0 %v5876, 16
        %v5963 = vpop.permute.xlu0 %5962
        %5964 = vrot.lane.b32.xlu0 %v5877, 16
        %v5965 = vpop.permute.xlu0 %5964
        %5966 = vrot.lane.b32.xlu0 %v5878, 16
        %v5967 = vpop.permute.xlu0 %5966
        %5968 = vrot.lane.b32.xlu0 %v5879, 16
        %v5969 = vpop.permute.xlu0 %5968
        %5970 = vrot.lane.b32.xlu0 %v5880, 16
        %v5971 = vpop.permute.xlu0 %5970
        %5972 = vrot.lane.b32.xlu0 %v5881, 16
        %v5973 = vpop.permute.xlu0 %5972
        %5974 = vrot.lane.b32.xlu0 %v5882, 16
        %v5975 = vpop.permute.xlu0 %5974
        %5976 = vrot.lane.b32.xlu0 %v5883, 16
        %v5977 = vpop.permute.xlu0 %5976
        %5978 = vrot.lane.b32.xlu0 %v5884, 16
        %v5979 = vpop.permute.xlu0 %5978
        %5980 = vrot.lane.b32.xlu0 %v5885, 16
        %v5981 = vpop.permute.xlu0 %5980
        %vm6014 = vcmask 162944
        %6015 = vst.msk [vmem:[#allocation4] sm:$0xff] %vm6014, %v5919
        %6016 = vst.msk [vmem:[#allocation4 + $0x8] sm:$0xff] %vm6014, %v5921
        %6017 = vst.msk [vmem:[#allocation4 + $0x10] sm:$0xff] %vm6014, %v5923
        %6018 = vst.msk [vmem:[#allocation4 + $0x18] sm:$0xff] %vm6014, %v5925
        %6019 = vst.msk [vmem:[#allocation4 + $0x20] sm:$0xff] %vm6014, %v5927
        %6020 = vst.msk [vmem:[#allocation4 + $0x28] sm:$0xff] %vm6014, %v5929
        %6021 = vst.msk [vmem:[#allocation4 + $0x30] sm:$0xff] %vm6014, %v5931
        %6022 = vst.msk [vmem:[#allocation4 + $0x38] sm:$0xff] %vm6014, %v5933
        %6023 = vst.msk [vmem:[#allocation4 + $0x40] sm:$0xff] %vm6014, %v5935
        %6024 = vst.msk [vmem:[#allocation4 + $0x48] sm:$0xff] %vm6014, %v5937
        %6025 = vst.msk [vmem:[#allocation4 + $0x50] sm:$0xff] %vm6014, %v5939
        %6026 = vst.msk [vmem:[#allocation4 + $0x58] sm:$0xff] %vm6014, %v5941
        %6027 = vst.msk [vmem:[#allocation4 + $0x60] sm:$0xff] %vm6014, %v5943
        %6028 = vst.msk [vmem:[#allocation4 + $0x68] sm:$0xff] %vm6014, %v5945
        %6029 = vst.msk [vmem:[#allocation4 + $0x70] sm:$0xff] %vm6014, %v5947
        %6030 = vst.msk [vmem:[#allocation4 + $0x78] sm:$0xff] %vm6014, %v5949
        %6031 = vst.msk [vmem:[#allocation4 + $0x80] sm:$0xff] %vm6014, %v5951
        %6032 = vst.msk [vmem:[#allocation4 + $0x88] sm:$0xff] %vm6014, %v5953
        %6033 = vst.msk [vmem:[#allocation4 + $0x90] sm:$0xff] %vm6014, %v5955
        %6034 = vst.msk [vmem:[#allocation4 + $0x98] sm:$0xff] %vm6014, %v5957
        %6035 = vst.msk [vmem:[#allocation4 + $0xa0] sm:$0xff] %vm6014, %v5959
        %6036 = vst.msk [vmem:[#allocation4 + $0xa8] sm:$0xff] %vm6014, %v5961
        %6037 = vst.msk [vmem:[#allocation4 + $0xb0] sm:$0xff] %vm6014, %v5963
        %6038 = vst.msk [vmem:[#allocation4 + $0xb8] sm:$0xff] %vm6014, %v5965
        %6039 = vst.msk [vmem:[#allocation4 + $0xc0] sm:$0xff] %vm6014, %v5967
        %6040 = vst.msk [vmem:[#allocation4 + $0xc8] sm:$0xff] %vm6014, %v5969
        %6041 = vst.msk [vmem:[#allocation4 + $0xd0] sm:$0xff] %vm6014, %v5971
        %6042 = vst.msk [vmem:[#allocation4 + $0xd8] sm:$0xff] %vm6014, %v5973
        %6043 = vst.msk [vmem:[#allocation4 + $0xe0] sm:$0xff] %vm6014, %v5975
        %6044 = vst.msk [vmem:[#allocation4 + $0xe8] sm:$0xff] %vm6014, %v5977
        %6045 = vst.msk [vmem:[#allocation4 + $0xf0] sm:$0xff] %vm6014, %v5979
        %6046 = vst.msk [vmem:[#allocation4 + $0xf8] sm:$0xff] %vm6014, %v5981
        %v6047 = vld [vmem:[%s4389 + $0x2] sm:$0xff]
        %v6048 = vld [vmem:[%s4389 + $0xa] sm:$0xff]
        %v6049 = vld [vmem:[%s4389 + $0x1a] sm:$0xff]
        %v6050 = vld [vmem:[%s4389 + $0x22] sm:$0xff]
        %v6051 = vld [vmem:[%s4389 + $0x32] sm:$0xff]
        %v6052 = vld [vmem:[%s4389 + $0x3a] sm:$0xff]
        %v6053 = vld [vmem:[%s4389 + $0x4a] sm:$0xff]
        %v6054 = vld [vmem:[%s4389 + $0x52] sm:$0xff]
        %v6055 = vld [vmem:[%s4389 + $0x62] sm:$0xff]
        %v6056 = vld [vmem:[%s4389 + $0x6a] sm:$0xff]
        %v6057 = vld [vmem:[%s4389 + $0x7a] sm:$0xff]
        %v6058 = vld [vmem:[%s4389 + $0x82] sm:$0xff]
        %v6059 = vld [vmem:[%s4389 + $0x92] sm:$0xff]
        %v6060 = vld [vmem:[%s4389 + $0x9a] sm:$0xff]
        %v6061 = vld [vmem:[%s4389 + $0xaa] sm:$0xff]
        %v6062 = vld [vmem:[%s4389 + $0xb2] sm:$0xff]
        %v6063 = vld [vmem:[%s4389 + $0xc2] sm:$0xff]
        %v6064 = vld [vmem:[%s4389 + $0xca] sm:$0xff]
        %v6065 = vld [vmem:[%s4389 + $0xda] sm:$0xff]
        %v6066 = vld [vmem:[%s4389 + $0xe2] sm:$0xff]
        %v6067 = vld [vmem:[%s4389 + $0xf2] sm:$0xff]
        %v6068 = vld [vmem:[%s4389 + $0xfa] sm:$0xff]
        %v6069 = vld [vmem:[%s4389 + $0x10a] sm:$0xff]
        %v6070 = vld [vmem:[%s4389 + $0x112] sm:$0xff]
        %v6071 = vld [vmem:[%s4389 + $0x122] sm:$0xff]
        %v6072 = vld [vmem:[%s4389 + $0x12a] sm:$0xff]
        %v6073 = vld [vmem:[%s4389 + $0x13a] sm:$0xff]
        %v6074 = vld [vmem:[%s4389 + $0x142] sm:$0xff]
        %v6075 = vld [vmem:[%s4389 + $0x152] sm:$0xff]
        %v6076 = vld [vmem:[%s4389 + $0x15a] sm:$0xff]
        %v6077 = vld [vmem:[%s4389 + $0x16a] sm:$0xff]
        %v6078 = vld [vmem:[%s4389 + $0x172] sm:$0xff]
        %6111 = vrot.lane.b32.xlu0 %v6047, 20
        %v6112 = vpop.permute.xlu0 %6111
        %6113 = vrot.lane.b32.xlu0 %v6048, 20
        %v6114 = vpop.permute.xlu0 %6113
        %6115 = vrot.lane.b32.xlu0 %v6049, 20
        %v6116 = vpop.permute.xlu0 %6115
        %6117 = vrot.lane.b32.xlu0 %v6050, 20
        %v6118 = vpop.permute.xlu0 %6117
        %6119 = vrot.lane.b32.xlu0 %v6051, 20
        %v6120 = vpop.permute.xlu0 %6119
        %6121 = vrot.lane.b32.xlu0 %v6052, 20
        %v6122 = vpop.permute.xlu0 %6121
        %6123 = vrot.lane.b32.xlu0 %v6053, 20
        %v6124 = vpop.permute.xlu0 %6123
        %6125 = vrot.lane.b32.xlu0 %v6054, 20
        %v6126 = vpop.permute.xlu0 %6125
        %6127 = vrot.lane.b32.xlu0 %v6055, 20
        %v6128 = vpop.permute.xlu0 %6127
        %6129 = vrot.lane.b32.xlu0 %v6056, 20
        %v6130 = vpop.permute.xlu0 %6129
        %6131 = vrot.lane.b32.xlu0 %v6057, 20
        %v6132 = vpop.permute.xlu0 %6131
        %6133 = vrot.lane.b32.xlu0 %v6058, 20
        %v6134 = vpop.permute.xlu0 %6133
        %6135 = vrot.lane.b32.xlu0 %v6059, 20
        %v6136 = vpop.permute.xlu0 %6135
        %6137 = vrot.lane.b32.xlu0 %v6060, 20
        %v6138 = vpop.permute.xlu0 %6137
        %6139 = vrot.lane.b32.xlu0 %v6061, 20
        %v6140 = vpop.permute.xlu0 %6139
        %6141 = vrot.lane.b32.xlu0 %v6062, 20
        %v6142 = vpop.permute.xlu0 %6141
        %6143 = vrot.lane.b32.xlu0 %v6063, 20
        %v6144 = vpop.permute.xlu0 %6143
        %6145 = vrot.lane.b32.xlu0 %v6064, 20
        %v6146 = vpop.permute.xlu0 %6145
        %6147 = vrot.lane.b32.xlu0 %v6065, 20
        %v6148 = vpop.permute.xlu0 %6147
        %6149 = vrot.lane.b32.xlu0 %v6066, 20
        %v6150 = vpop.permute.xlu0 %6149
        %6151 = vrot.lane.b32.xlu0 %v6067, 20
        %v6152 = vpop.permute.xlu0 %6151
        %6153 = vrot.lane.b32.xlu0 %v6068, 20
        %v6154 = vpop.permute.xlu0 %6153
        %6155 = vrot.lane.b32.xlu0 %v6069, 20
        %v6156 = vpop.permute.xlu0 %6155
        %6157 = vrot.lane.b32.xlu0 %v6070, 20
        %v6158 = vpop.permute.xlu0 %6157
        %6159 = vrot.lane.b32.xlu0 %v6071, 20
        %v6160 = vpop.permute.xlu0 %6159
        %6161 = vrot.lane.b32.xlu0 %v6072, 20
        %v6162 = vpop.permute.xlu0 %6161
        %6163 = vrot.lane.b32.xlu0 %v6073, 20
        %v6164 = vpop.permute.xlu0 %6163
        %6165 = vrot.lane.b32.xlu0 %v6074, 20
        %v6166 = vpop.permute.xlu0 %6165
        %6167 = vrot.lane.b32.xlu0 %v6075, 20
        %v6168 = vpop.permute.xlu0 %6167
        %6169 = vrot.lane.b32.xlu0 %v6076, 20
        %v6170 = vpop.permute.xlu0 %6169
        %6171 = vrot.lane.b32.xlu0 %v6077, 20
        %v6172 = vpop.permute.xlu0 %6171
        %6173 = vrot.lane.b32.xlu0 %v6078, 20
        %v6174 = vpop.permute.xlu0 %6173
        %vm6207 = vcmask 195744
        %6208 = vst.msk [vmem:[#allocation4] sm:$0xff] %vm6207, %v6112
        %6209 = vst.msk [vmem:[#allocation4 + $0x8] sm:$0xff] %vm6207, %v6114
        %6210 = vst.msk [vmem:[#allocation4 + $0x10] sm:$0xff] %vm6207, %v6116
        %6211 = vst.msk [vmem:[#allocation4 + $0x18] sm:$0xff] %vm6207, %v6118
        %6212 = vst.msk [vmem:[#allocation4 + $0x20] sm:$0xff] %vm6207, %v6120
        %6213 = vst.msk [vmem:[#allocation4 + $0x28] sm:$0xff] %vm6207, %v6122
        %6214 = vst.msk [vmem:[#allocation4 + $0x30] sm:$0xff] %vm6207, %v6124
        %6215 = vst.msk [vmem:[#allocation4 + $0x38] sm:$0xff] %vm6207, %v6126
        %6216 = vst.msk [vmem:[#allocation4 + $0x40] sm:$0xff] %vm6207, %v6128
        %6217 = vst.msk [vmem:[#allocation4 + $0x48] sm:$0xff] %vm6207, %v6130
        %6218 = vst.msk [vmem:[#allocation4 + $0x50] sm:$0xff] %vm6207, %v6132
        %6219 = vst.msk [vmem:[#allocation4 + $0x58] sm:$0xff] %vm6207, %v6134
        %6220 = vst.msk [vmem:[#allocation4 + $0x60] sm:$0xff] %vm6207, %v6136
        %6221 = vst.msk [vmem:[#allocation4 + $0x68] sm:$0xff] %vm6207, %v6138
        %6222 = vst.msk [vmem:[#allocation4 + $0x70] sm:$0xff] %vm6207, %v6140
        %6223 = vst.msk [vmem:[#allocation4 + $0x78] sm:$0xff] %vm6207, %v6142
        %6224 = vst.msk [vmem:[#allocation4 + $0x80] sm:$0xff] %vm6207, %v6144
        %6225 = vst.msk [vmem:[#allocation4 + $0x88] sm:$0xff] %vm6207, %v6146
        %6226 = vst.msk [vmem:[#allocation4 + $0x90] sm:$0xff] %vm6207, %v6148
        %6227 = vst.msk [vmem:[#allocation4 + $0x98] sm:$0xff] %vm6207, %v6150
        %6228 = vst.msk [vmem:[#allocation4 + $0xa0] sm:$0xff] %vm6207, %v6152
        %6229 = vst.msk [vmem:[#allocation4 + $0xa8] sm:$0xff] %vm6207, %v6154
        %6230 = vst.msk [vmem:[#allocation4 + $0xb0] sm:$0xff] %vm6207, %v6156
        %6231 = vst.msk [vmem:[#allocation4 + $0xb8] sm:$0xff] %vm6207, %v6158
        %6232 = vst.msk [vmem:[#allocation4 + $0xc0] sm:$0xff] %vm6207, %v6160
        %6233 = vst.msk [vmem:[#allocation4 + $0xc8] sm:$0xff] %vm6207, %v6162
        %6234 = vst.msk [vmem:[#allocation4 + $0xd0] sm:$0xff] %vm6207, %v6164
        %6235 = vst.msk [vmem:[#allocation4 + $0xd8] sm:$0xff] %vm6207, %v6166
        %6236 = vst.msk [vmem:[#allocation4 + $0xe0] sm:$0xff] %vm6207, %v6168
        %6237 = vst.msk [vmem:[#allocation4 + $0xe8] sm:$0xff] %vm6207, %v6170
        %6238 = vst.msk [vmem:[#allocation4 + $0xf0] sm:$0xff] %vm6207, %v6172
        %6239 = vst.msk [vmem:[#allocation4 + $0xf8] sm:$0xff] %vm6207, %v6174
        %s6240 = scalar_lea.vmem [#allocation3], 48
        %v6241 = vld [vmem:[%s6240] sm:$0xff]
        %v6242 = vld [vmem:[%s6240 + $0x8] sm:$0xff]
        %v6243 = vld [vmem:[%s6240 + $0x18] sm:$0xff]
        %v6244 = vld [vmem:[%s6240 + $0x20] sm:$0xff]
        %v6245 = vld [vmem:[%s6240 + $0x30] sm:$0xff]
        %v6246 = vld [vmem:[%s6240 + $0x38] sm:$0xff]
        %v6247 = vld [vmem:[%s6240 + $0x48] sm:$0xff]
        %v6248 = vld [vmem:[%s6240 + $0x50] sm:$0xff]
        %v6249 = vld [vmem:[%s6240 + $0x60] sm:$0xff]
        %v6250 = vld [vmem:[%s6240 + $0x68] sm:$0xff]
        %v6251 = vld [vmem:[%s6240 + $0x78] sm:$0xff]
        %v6252 = vld [vmem:[%s6240 + $0x80] sm:$0xff]
        %v6253 = vld [vmem:[%s6240 + $0x90] sm:$0xff]
        %v6254 = vld [vmem:[%s6240 + $0x98] sm:$0xff]
        %v6255 = vld [vmem:[%s6240 + $0xa8] sm:$0xff]
        %v6256 = vld [vmem:[%s6240 + $0xb0] sm:$0xff]
        %v6257 = vld [vmem:[%s6240 + $0xc0] sm:$0xff]
        %v6258 = vld [vmem:[%s6240 + $0xc8] sm:$0xff]
        %v6259 = vld [vmem:[%s6240 + $0xd8] sm:$0xff]
        %v6260 = vld [vmem:[%s6240 + $0xe0] sm:$0xff]
        %v6261 = vld [vmem:[%s6240 + $0xf0] sm:$0xff]
        %v6262 = vld [vmem:[%s6240 + $0xf8] sm:$0xff]
        %v6263 = vld [vmem:[%s6240 + $0x108] sm:$0xff]
        %v6264 = vld [vmem:[%s6240 + $0x110] sm:$0xff]
        %v6265 = vld [vmem:[%s6240 + $0x120] sm:$0xff]
        %v6266 = vld [vmem:[%s6240 + $0x128] sm:$0xff]
        %v6267 = vld [vmem:[%s6240 + $0x138] sm:$0xff]
        %v6268 = vld [vmem:[%s6240 + $0x140] sm:$0xff]
        %v6269 = vld [vmem:[%s6240 + $0x150] sm:$0xff]
        %v6270 = vld [vmem:[%s6240 + $0x158] sm:$0xff]
        %v6271 = vld [vmem:[%s6240 + $0x168] sm:$0xff]
        %v6272 = vld [vmem:[%s6240 + $0x170] sm:$0xff]
        %6305 = vrot.lane.b32.xlu0 %v6241, 24
        %v6306 = vpop.permute.xlu0 %6305
        %6307 = vrot.lane.b32.xlu0 %v6242, 24
        %v6308 = vpop.permute.xlu0 %6307
        %6309 = vrot.lane.b32.xlu0 %v6243, 24
        %v6310 = vpop.permute.xlu0 %6309
        %6311 = vrot.lane.b32.xlu0 %v6244, 24
        %v6312 = vpop.permute.xlu0 %6311
        %6313 = vrot.lane.b32.xlu0 %v6245, 24
        %v6314 = vpop.permute.xlu0 %6313
        %6315 = vrot.lane.b32.xlu0 %v6246, 24
        %v6316 = vpop.permute.xlu0 %6315
        %6317 = vrot.lane.b32.xlu0 %v6247, 24
        %v6318 = vpop.permute.xlu0 %6317
        %6319 = vrot.lane.b32.xlu0 %v6248, 24
        %v6320 = vpop.permute.xlu0 %6319
        %6321 = vrot.lane.b32.xlu0 %v6249, 24
        %v6322 = vpop.permute.xlu0 %6321
        %6323 = vrot.lane.b32.xlu0 %v6250, 24
        %v6324 = vpop.permute.xlu0 %6323
        %6325 = vrot.lane.b32.xlu0 %v6251, 24
        %v6326 = vpop.permute.xlu0 %6325
        %6327 = vrot.lane.b32.xlu0 %v6252, 24
        %v6328 = vpop.permute.xlu0 %6327
        %6329 = vrot.lane.b32.xlu0 %v6253, 24
        %v6330 = vpop.permute.xlu0 %6329
        %6331 = vrot.lane.b32.xlu0 %v6254, 24
        %v6332 = vpop.permute.xlu0 %6331
        %6333 = vrot.lane.b32.xlu0 %v6255, 24
        %v6334 = vpop.permute.xlu0 %6333
        %6335 = vrot.lane.b32.xlu0 %v6256, 24
        %v6336 = vpop.permute.xlu0 %6335
        %6337 = vrot.lane.b32.xlu0 %v6257, 24
        %v6338 = vpop.permute.xlu0 %6337
        %6339 = vrot.lane.b32.xlu0 %v6258, 24
        %v6340 = vpop.permute.xlu0 %6339
        %6341 = vrot.lane.b32.xlu0 %v6259, 24
        %v6342 = vpop.permute.xlu0 %6341
        %6343 = vrot.lane.b32.xlu0 %v6260, 24
        %v6344 = vpop.permute.xlu0 %6343
        %6345 = vrot.lane.b32.xlu0 %v6261, 24
        %v6346 = vpop.permute.xlu0 %6345
        %6347 = vrot.lane.b32.xlu0 %v6262, 24
        %v6348 = vpop.permute.xlu0 %6347
        %6349 = vrot.lane.b32.xlu0 %v6263, 24
        %v6350 = vpop.permute.xlu0 %6349
        %6351 = vrot.lane.b32.xlu0 %v6264, 24
        %v6352 = vpop.permute.xlu0 %6351
        %6353 = vrot.lane.b32.xlu0 %v6265, 24
        %v6354 = vpop.permute.xlu0 %6353
        %6355 = vrot.lane.b32.xlu0 %v6266, 24
        %v6356 = vpop.permute.xlu0 %6355
        %6357 = vrot.lane.b32.xlu0 %v6267, 24
        %v6358 = vpop.permute.xlu0 %6357
        %6359 = vrot.lane.b32.xlu0 %v6268, 24
        %v6360 = vpop.permute.xlu0 %6359
        %6361 = vrot.lane.b32.xlu0 %v6269, 24
        %v6362 = vpop.permute.xlu0 %6361
        %6363 = vrot.lane.b32.xlu0 %v6270, 24
        %v6364 = vpop.permute.xlu0 %6363
        %6365 = vrot.lane.b32.xlu0 %v6271, 24
        %v6366 = vpop.permute.xlu0 %6365
        %6367 = vrot.lane.b32.xlu0 %v6272, 24
        %v6368 = vpop.permute.xlu0 %6367
        %vm6401 = vcmask 228544
        %6402 = vst.msk [vmem:[#allocation4] sm:$0xff] %vm6401, %v6306
        %6403 = vst.msk [vmem:[#allocation4 + $0x8] sm:$0xff] %vm6401, %v6308
        %6404 = vst.msk [vmem:[#allocation4 + $0x10] sm:$0xff] %vm6401, %v6310
        %6405 = vst.msk [vmem:[#allocation4 + $0x18] sm:$0xff] %vm6401, %v6312
        %6406 = vst.msk [vmem:[#allocation4 + $0x20] sm:$0xff] %vm6401, %v6314
        %6407 = vst.msk [vmem:[#allocation4 + $0x28] sm:$0xff] %vm6401, %v6316
        %6408 = vst.msk [vmem:[#allocation4 + $0x30] sm:$0xff] %vm6401, %v6318
        %6409 = vst.msk [vmem:[#allocation4 + $0x38] sm:$0xff] %vm6401, %v6320
        %6410 = vst.msk [vmem:[#allocation4 + $0x40] sm:$0xff] %vm6401, %v6322
        %6411 = vst.msk [vmem:[#allocation4 + $0x48] sm:$0xff] %vm6401, %v6324
        %6412 = vst.msk [vmem:[#allocation4 + $0x50] sm:$0xff] %vm6401, %v6326
        %6413 = vst.msk [vmem:[#allocation4 + $0x58] sm:$0xff] %vm6401, %v6328
        %6414 = vst.msk [vmem:[#allocation4 + $0x60] sm:$0xff] %vm6401, %v6330
        %6415 = vst.msk [vmem:[#allocation4 + $0x68] sm:$0xff] %vm6401, %v6332
        %6416 = vst.msk [vmem:[#allocation4 + $0x70] sm:$0xff] %vm6401, %v6334
        %6417 = vst.msk [vmem:[#allocation4 + $0x78] sm:$0xff] %vm6401, %v6336
        %6418 = vst.msk [vmem:[#allocation4 + $0x80] sm:$0xff] %vm6401, %v6338
        %6419 = vst.msk [vmem:[#allocation4 + $0x88] sm:$0xff] %vm6401, %v6340
        %6420 = vst.msk [vmem:[#allocation4 + $0x90] sm:$0xff] %vm6401, %v6342
        %6421 = vst.msk [vmem:[#allocation4 + $0x98] sm:$0xff] %vm6401, %v6344
        %6422 = vst.msk [vmem:[#allocation4 + $0xa0] sm:$0xff] %vm6401, %v6346
        %6423 = vst.msk [vmem:[#allocation4 + $0xa8] sm:$0xff] %vm6401, %v6348
        %6424 = vst.msk [vmem:[#allocation4 + $0xb0] sm:$0xff] %vm6401, %v6350
        %6425 = vst.msk [vmem:[#allocation4 + $0xb8] sm:$0xff] %vm6401, %v6352
        %6426 = vst.msk [vmem:[#allocation4 + $0xc0] sm:$0xff] %vm6401, %v6354
        %6427 = vst.msk [vmem:[#allocation4 + $0xc8] sm:$0xff] %vm6401, %v6356
        %6428 = vst.msk [vmem:[#allocation4 + $0xd0] sm:$0xff] %vm6401, %v6358
        %6429 = vst.msk [vmem:[#allocation4 + $0xd8] sm:$0xff] %vm6401, %v6360
        %6430 = vst.msk [vmem:[#allocation4 + $0xe0] sm:$0xff] %vm6401, %v6362
        %6431 = vst.msk [vmem:[#allocation4 + $0xe8] sm:$0xff] %vm6401, %v6364
        %6432 = vst.msk [vmem:[#allocation4 + $0xf0] sm:$0xff] %vm6401, %v6366
        %6433 = vst.msk [vmem:[#allocation4 + $0xf8] sm:$0xff] %vm6401, %v6368
        %v6434 = vld [vmem:[%s6240 + $0x1] sm:$0xff]
        %v6435 = vld [vmem:[%s6240 + $0x9] sm:$0xff]
        %v6436 = vld [vmem:[%s6240 + $0x19] sm:$0xff]
        %v6437 = vld [vmem:[%s6240 + $0x21] sm:$0xff]
        %v6438 = vld [vmem:[%s6240 + $0x31] sm:$0xff]
        %v6439 = vld [vmem:[%s6240 + $0x39] sm:$0xff]
        %v6440 = vld [vmem:[%s6240 + $0x49] sm:$0xff]
        %v6441 = vld [vmem:[%s6240 + $0x51] sm:$0xff]
        %v6442 = vld [vmem:[%s6240 + $0x61] sm:$0xff]
        %v6443 = vld [vmem:[%s6240 + $0x69] sm:$0xff]
        %v6444 = vld [vmem:[%s6240 + $0x79] sm:$0xff]
        %v6445 = vld [vmem:[%s6240 + $0x81] sm:$0xff]
        %v6446 = vld [vmem:[%s6240 + $0x91] sm:$0xff]
        %v6447 = vld [vmem:[%s6240 + $0x99] sm:$0xff]
        %v6448 = vld [vmem:[%s6240 + $0xa9] sm:$0xff]
        %v6449 = vld [vmem:[%s6240 + $0xb1] sm:$0xff]
        %v6450 = vld [vmem:[%s6240 + $0xc1] sm:$0xff]
        %v6451 = vld [vmem:[%s6240 + $0xc9] sm:$0xff]
        %v6452 = vld [vmem:[%s6240 + $0xd9] sm:$0xff]
        %v6453 = vld [vmem:[%s6240 + $0xe1] sm:$0xff]
        %v6454 = vld [vmem:[%s6240 + $0xf1] sm:$0xff]
        %v6455 = vld [vmem:[%s6240 + $0xf9] sm:$0xff]
        %v6456 = vld [vmem:[%s6240 + $0x109] sm:$0xff]
        %v6457 = vld [vmem:[%s6240 + $0x111] sm:$0xff]
        %v6458 = vld [vmem:[%s6240 + $0x121] sm:$0xff]
        %v6459 = vld [vmem:[%s6240 + $0x129] sm:$0xff]
        %v6460 = vld [vmem:[%s6240 + $0x139] sm:$0xff]
        %v6461 = vld [vmem:[%s6240 + $0x141] sm:$0xff]
        %v6462 = vld [vmem:[%s6240 + $0x151] sm:$0xff]
        %v6463 = vld [vmem:[%s6240 + $0x159] sm:$0xff]
        %v6464 = vld [vmem:[%s6240 + $0x169] sm:$0xff]
        %v6465 = vld [vmem:[%s6240 + $0x171] sm:$0xff]
        %6498 = vrot.lane.b32.xlu0 %v6434, 28
        %v6499 = vpop.permute.xlu0 %6498
        %6500 = vrot.lane.b32.xlu0 %v6435, 28
        %v6501 = vpop.permute.xlu0 %6500
        %6502 = vrot.lane.b32.xlu0 %v6436, 28
        %v6503 = vpop.permute.xlu0 %6502
        %6504 = vrot.lane.b32.xlu0 %v6437, 28
        %v6505 = vpop.permute.xlu0 %6504
        %6506 = vrot.lane.b32.xlu0 %v6438, 28
        %v6507 = vpop.permute.xlu0 %6506
        %6508 = vrot.lane.b32.xlu0 %v6439, 28
        %v6509 = vpop.permute.xlu0 %6508
        %6510 = vrot.lane.b32.xlu0 %v6440, 28
        %v6511 = vpop.permute.xlu0 %6510
        %6512 = vrot.lane.b32.xlu0 %v6441, 28
        %v6513 = vpop.permute.xlu0 %6512
        %6514 = vrot.lane.b32.xlu0 %v6442, 28
        %v6515 = vpop.permute.xlu0 %6514
        %6516 = vrot.lane.b32.xlu0 %v6443, 28
        %v6517 = vpop.permute.xlu0 %6516
        %6518 = vrot.lane.b32.xlu0 %v6444, 28
        %v6519 = vpop.permute.xlu0 %6518
        %6520 = vrot.lane.b32.xlu0 %v6445, 28
        %v6521 = vpop.permute.xlu0 %6520
        %6522 = vrot.lane.b32.xlu0 %v6446, 28
        %v6523 = vpop.permute.xlu0 %6522
        %6524 = vrot.lane.b32.xlu0 %v6447, 28
        %v6525 = vpop.permute.xlu0 %6524
        %6526 = vrot.lane.b32.xlu0 %v6448, 28
        %v6527 = vpop.permute.xlu0 %6526
        %6528 = vrot.lane.b32.xlu0 %v6449, 28
        %v6529 = vpop.permute.xlu0 %6528
        %6530 = vrot.lane.b32.xlu0 %v6450, 28
        %v6531 = vpop.permute.xlu0 %6530
        %6532 = vrot.lane.b32.xlu0 %v6451, 28
        %v6533 = vpop.permute.xlu0 %6532
        %6534 = vrot.lane.b32.xlu0 %v6452, 28
        %v6535 = vpop.permute.xlu0 %6534
        %6536 = vrot.lane.b32.xlu0 %v6453, 28
        %v6537 = vpop.permute.xlu0 %6536
        %6538 = vrot.lane.b32.xlu0 %v6454, 28
        %v6539 = vpop.permute.xlu0 %6538
        %6540 = vrot.lane.b32.xlu0 %v6455, 28
        %v6541 = vpop.permute.xlu0 %6540
        %6542 = vrot.lane.b32.xlu0 %v6456, 28
        %v6543 = vpop.permute.xlu0 %6542
        %6544 = vrot.lane.b32.xlu0 %v6457, 28
        %v6545 = vpop.permute.xlu0 %6544
        %6546 = vrot.lane.b32.xlu0 %v6458, 28
        %v6547 = vpop.permute.xlu0 %6546
        %6548 = vrot.lane.b32.xlu0 %v6459, 28
        %v6549 = vpop.permute.xlu0 %6548
        %6550 = vrot.lane.b32.xlu0 %v6460, 28
        %v6551 = vpop.permute.xlu0 %6550
        %6552 = vrot.lane.b32.xlu0 %v6461, 28
        %v6553 = vpop.permute.xlu0 %6552
        %6554 = vrot.lane.b32.xlu0 %v6462, 28
        %v6555 = vpop.permute.xlu0 %6554
        %6556 = vrot.lane.b32.xlu0 %v6463, 28
        %v6557 = vpop.permute.xlu0 %6556
        %6558 = vrot.lane.b32.xlu0 %v6464, 28
        %v6559 = vpop.permute.xlu0 %6558
        %6560 = vrot.lane.b32.xlu0 %v6465, 28
        %v6561 = vpop.permute.xlu0 %6560
        %vm6594 = vcmask 261344
        %6595 = vst.msk [vmem:[#allocation4] sm:$0xff] %vm6594, %v6499
        %6596 = vst.msk [vmem:[#allocation4 + $0x8] sm:$0xff] %vm6594, %v6501
        %6597 = vst.msk [vmem:[#allocation4 + $0x10] sm:$0xff] %vm6594, %v6503
        %6598 = vst.msk [vmem:[#allocation4 + $0x18] sm:$0xff] %vm6594, %v6505
        %6599 = vst.msk [vmem:[#allocation4 + $0x20] sm:$0xff] %vm6594, %v6507
        %6600 = vst.msk [vmem:[#allocation4 + $0x28] sm:$0xff] %vm6594, %v6509
        %6601 = vst.msk [vmem:[#allocation4 + $0x30] sm:$0xff] %vm6594, %v6511
        %6602 = vst.msk [vmem:[#allocation4 + $0x38] sm:$0xff] %vm6594, %v6513
        %6603 = vst.msk [vmem:[#allocation4 + $0x40] sm:$0xff] %vm6594, %v6515
        %6604 = vst.msk [vmem:[#allocation4 + $0x48] sm:$0xff] %vm6594, %v6517
        %6605 = vst.msk [vmem:[#allocation4 + $0x50] sm:$0xff] %vm6594, %v6519
        %6606 = vst.msk [vmem:[#allocation4 + $0x58] sm:$0xff] %vm6594, %v6521
        %6607 = vst.msk [vmem:[#allocation4 + $0x60] sm:$0xff] %vm6594, %v6523
        %6608 = vst.msk [vmem:[#allocation4 + $0x68] sm:$0xff] %vm6594, %v6525
        %6609 = vst.msk [vmem:[#allocation4 + $0x70] sm:$0xff] %vm6594, %v6527
        %6610 = vst.msk [vmem:[#allocation4 + $0x78] sm:$0xff] %vm6594, %v6529
        %6611 = vst.msk [vmem:[#allocation4 + $0x80] sm:$0xff] %vm6594, %v6531
        %6612 = vst.msk [vmem:[#allocation4 + $0x88] sm:$0xff] %vm6594, %v6533
        %6613 = vst.msk [vmem:[#allocation4 + $0x90] sm:$0xff] %vm6594, %v6535
        %6614 = vst.msk [vmem:[#allocation4 + $0x98] sm:$0xff] %vm6594, %v6537
        %6615 = vst.msk [vmem:[#allocation4 + $0xa0] sm:$0xff] %vm6594, %v6539
        %6616 = vst.msk [vmem:[#allocation4 + $0xa8] sm:$0xff] %vm6594, %v6541
        %6617 = vst.msk [vmem:[#allocation4 + $0xb0] sm:$0xff] %vm6594, %v6543
        %6618 = vst.msk [vmem:[#allocation4 + $0xb8] sm:$0xff] %vm6594, %v6545
        %6619 = vst.msk [vmem:[#allocation4 + $0xc0] sm:$0xff] %vm6594, %v6547
        %6620 = vst.msk [vmem:[#allocation4 + $0xc8] sm:$0xff] %vm6594, %v6549
        %6621 = vst.msk [vmem:[#allocation4 + $0xd0] sm:$0xff] %vm6594, %v6551
        %6622 = vst.msk [vmem:[#allocation4 + $0xd8] sm:$0xff] %vm6594, %v6553
        %6623 = vst.msk [vmem:[#allocation4 + $0xe0] sm:$0xff] %vm6594, %v6555
        %6624 = vst.msk [vmem:[#allocation4 + $0xe8] sm:$0xff] %vm6594, %v6557
        %6625 = vst.msk [vmem:[#allocation4 + $0xf0] sm:$0xff] %vm6594, %v6559
        %6626 = vst.msk [vmem:[#allocation4 + $0xf8] sm:$0xff] %vm6594, %v6561
        %v6627 = vld [vmem:[%s6240 + $0x2] sm:$0xff]
        %v6628 = vld [vmem:[%s6240 + $0xa] sm:$0xff]
        %v6629 = vld [vmem:[%s6240 + $0x1a] sm:$0xff]
        %v6630 = vld [vmem:[%s6240 + $0x22] sm:$0xff]
        %v6631 = vld [vmem:[%s6240 + $0x32] sm:$0xff]
        %v6632 = vld [vmem:[%s6240 + $0x3a] sm:$0xff]
        %v6633 = vld [vmem:[%s6240 + $0x4a] sm:$0xff]
        %v6634 = vld [vmem:[%s6240 + $0x52] sm:$0xff]
        %v6635 = vld [vmem:[%s6240 + $0x62] sm:$0xff]
        %v6636 = vld [vmem:[%s6240 + $0x6a] sm:$0xff]
        %v6637 = vld [vmem:[%s6240 + $0x7a] sm:$0xff]
        %v6638 = vld [vmem:[%s6240 + $0x82] sm:$0xff]
        %v6639 = vld [vmem:[%s6240 + $0x92] sm:$0xff]
        %v6640 = vld [vmem:[%s6240 + $0x9a] sm:$0xff]
        %v6641 = vld [vmem:[%s6240 + $0xaa] sm:$0xff]
        %v6642 = vld [vmem:[%s6240 + $0xb2] sm:$0xff]
        %v6643 = vld [vmem:[%s6240 + $0xc2] sm:$0xff]
        %v6644 = vld [vmem:[%s6240 + $0xca] sm:$0xff]
        %v6645 = vld [vmem:[%s6240 + $0xda] sm:$0xff]
        %v6646 = vld [vmem:[%s6240 + $0xe2] sm:$0xff]
        %v6647 = vld [vmem:[%s6240 + $0xf2] sm:$0xff]
        %v6648 = vld [vmem:[%s6240 + $0xfa] sm:$0xff]
        %v6649 = vld [vmem:[%s6240 + $0x10a] sm:$0xff]
        %v6650 = vld [vmem:[%s6240 + $0x112] sm:$0xff]
        %v6651 = vld [vmem:[%s6240 + $0x122] sm:$0xff]
        %v6652 = vld [vmem:[%s6240 + $0x12a] sm:$0xff]
        %v6653 = vld [vmem:[%s6240 + $0x13a] sm:$0xff]
        %v6654 = vld [vmem:[%s6240 + $0x142] sm:$0xff]
        %v6655 = vld [vmem:[%s6240 + $0x152] sm:$0xff]
        %v6656 = vld [vmem:[%s6240 + $0x15a] sm:$0xff]
        %v6657 = vld [vmem:[%s6240 + $0x16a] sm:$0xff]
        %v6658 = vld [vmem:[%s6240 + $0x172] sm:$0xff]
        %6691 = vrot.lane.b32.xlu0 %v6627, 32
        %v6692 = vpop.permute.xlu0 %6691
        %6693 = vrot.lane.b32.xlu0 %v6628, 32
        %v6694 = vpop.permute.xlu0 %6693
        %6695 = vrot.lane.b32.xlu0 %v6629, 32
        %v6696 = vpop.permute.xlu0 %6695
        %6697 = vrot.lane.b32.xlu0 %v6630, 32
        %v6698 = vpop.permute.xlu0 %6697
        %6699 = vrot.lane.b32.xlu0 %v6631, 32
        %v6700 = vpop.permute.xlu0 %6699
        %6701 = vrot.lane.b32.xlu0 %v6632, 32
        %v6702 = vpop.permute.xlu0 %6701
        %6703 = vrot.lane.b32.xlu0 %v6633, 32
        %v6704 = vpop.permute.xlu0 %6703
        %6705 = vrot.lane.b32.xlu0 %v6634, 32
        %v6706 = vpop.permute.xlu0 %6705
        %6707 = vrot.lane.b32.xlu0 %v6635, 32
        %v6708 = vpop.permute.xlu0 %6707
        %6709 = vrot.lane.b32.xlu0 %v6636, 32
        %v6710 = vpop.permute.xlu0 %6709
        %6711 = vrot.lane.b32.xlu0 %v6637, 32
        %v6712 = vpop.permute.xlu0 %6711
        %6713 = vrot.lane.b32.xlu0 %v6638, 32
        %v6714 = vpop.permute.xlu0 %6713
        %6715 = vrot.lane.b32.xlu0 %v6639, 32
        %v6716 = vpop.permute.xlu0 %6715
        %6717 = vrot.lane.b32.xlu0 %v6640, 32
        %v6718 = vpop.permute.xlu0 %6717
        %6719 = vrot.lane.b32.xlu0 %v6641, 32
        %v6720 = vpop.permute.xlu0 %6719
        %6721 = vrot.lane.b32.xlu0 %v6642, 32
        %v6722 = vpop.permute.xlu0 %6721
        %6723 = vrot.lane.b32.xlu0 %v6643, 32
        %v6724 = vpop.permute.xlu0 %6723
        %6725 = vrot.lane.b32.xlu0 %v6644, 32
        %v6726 = vpop.permute.xlu0 %6725
        %6727 = vrot.lane.b32.xlu0 %v6645, 32
        %v6728 = vpop.permute.xlu0 %6727
        %6729 = vrot.lane.b32.xlu0 %v6646, 32
        %v6730 = vpop.permute.xlu0 %6729
        %6731 = vrot.lane.b32.xlu0 %v6647, 32
        %v6732 = vpop.permute.xlu0 %6731
        %6733 = vrot.lane.b32.xlu0 %v6648, 32
        %v6734 = vpop.permute.xlu0 %6733
        %6735 = vrot.lane.b32.xlu0 %v6649, 32
        %v6736 = vpop.permute.xlu0 %6735
        %6737 = vrot.lane.b32.xlu0 %v6650, 32
        %v6738 = vpop.permute.xlu0 %6737
        %6739 = vrot.lane.b32.xlu0 %v6651, 32
        %v6740 = vpop.permute.xlu0 %6739
        %6741 = vrot.lane.b32.xlu0 %v6652, 32
        %v6742 = vpop.permute.xlu0 %6741
        %6743 = vrot.lane.b32.xlu0 %v6653, 32
        %v6744 = vpop.permute.xlu0 %6743
        %6745 = vrot.lane.b32.xlu0 %v6654, 32
        %v6746 = vpop.permute.xlu0 %6745
        %6747 = vrot.lane.b32.xlu0 %v6655, 32
        %v6748 = vpop.permute.xlu0 %6747
        %6749 = vrot.lane.b32.xlu0 %v6656, 32
        %v6750 = vpop.permute.xlu0 %6749
        %6751 = vrot.lane.b32.xlu0 %v6657, 32
        %v6752 = vpop.permute.xlu0 %6751
        %6753 = vrot.lane.b32.xlu0 %v6658, 32
        %v6754 = vpop.permute.xlu0 %6753
        %vm6787 = vcmask 294144
        %6788 = vst.msk [vmem:[#allocation4] sm:$0xff] %vm6787, %v6692
        %6789 = vst.msk [vmem:[#allocation4 + $0x8] sm:$0xff] %vm6787, %v6694
        %6790 = vst.msk [vmem:[#allocation4 + $0x10] sm:$0xff] %vm6787, %v6696
        %6791 = vst.msk [vmem:[#allocation4 + $0x18] sm:$0xff] %vm6787, %v6698
        %6792 = vst.msk [vmem:[#allocation4 + $0x20] sm:$0xff] %vm6787, %v6700
        %6793 = vst.msk [vmem:[#allocation4 + $0x28] sm:$0xff] %vm6787, %v6702
        %6794 = vst.msk [vmem:[#allocation4 + $0x30] sm:$0xff] %vm6787, %v6704
        %6795 = vst.msk [vmem:[#allocation4 + $0x38] sm:$0xff] %vm6787, %v6706
        %6796 = vst.msk [vmem:[#allocation4 + $0x40] sm:$0xff] %vm6787, %v6708
        %6797 = vst.msk [vmem:[#allocation4 + $0x48] sm:$0xff] %vm6787, %v6710
        %6798 = vst.msk [vmem:[#allocation4 + $0x50] sm:$0xff] %vm6787, %v6712
        %6799 = vst.msk [vmem:[#allocation4 + $0x58] sm:$0xff] %vm6787, %v6714
        %6800 = vst.msk [vmem:[#allocation4 + $0x60] sm:$0xff] %vm6787, %v6716
        %6801 = vst.msk [vmem:[#allocation4 + $0x68] sm:$0xff] %vm6787, %v6718
        %6802 = vst.msk [vmem:[#allocation4 + $0x70] sm:$0xff] %vm6787, %v6720
        %6803 = vst.msk [vmem:[#allocation4 + $0x78] sm:$0xff] %vm6787, %v6722
        %6804 = vst.msk [vmem:[#allocation4 + $0x80] sm:$0xff] %vm6787, %v6724
        %6805 = vst.msk [vmem:[#allocation4 + $0x88] sm:$0xff] %vm6787, %v6726
        %6806 = vst.msk [vmem:[#allocation4 + $0x90] sm:$0xff] %vm6787, %v6728
        %6807 = vst.msk [vmem:[#allocation4 + $0x98] sm:$0xff] %vm6787, %v6730
        %6808 = vst.msk [vmem:[#allocation4 + $0xa0] sm:$0xff] %vm6787, %v6732
        %6809 = vst.msk [vmem:[#allocation4 + $0xa8] sm:$0xff] %vm6787, %v6734
        %6810 = vst.msk [vmem:[#allocation4 + $0xb0] sm:$0xff] %vm6787, %v6736
        %6811 = vst.msk [vmem:[#allocation4 + $0xb8] sm:$0xff] %vm6787, %v6738
        %6812 = vst.msk [vmem:[#allocation4 + $0xc0] sm:$0xff] %vm6787, %v6740
        %6813 = vst.msk [vmem:[#allocation4 + $0xc8] sm:$0xff] %vm6787, %v6742
        %6814 = vst.msk [vmem:[#allocation4 + $0xd0] sm:$0xff] %vm6787, %v6744
        %6815 = vst.msk [vmem:[#allocation4 + $0xd8] sm:$0xff] %vm6787, %v6746
        %6816 = vst.msk [vmem:[#allocation4 + $0xe0] sm:$0xff] %vm6787, %v6748
        %6817 = vst.msk [vmem:[#allocation4 + $0xe8] sm:$0xff] %vm6787, %v6750
        %6818 = vst.msk [vmem:[#allocation4 + $0xf0] sm:$0xff] %vm6787, %v6752
        %6819 = vst.msk [vmem:[#allocation4 + $0xf8] sm:$0xff] %vm6787, %v6754
        %v6820 = vld [vmem:[#allocation4] sm:$0xff]
        %v6821 = vld [vmem:[#allocation4 + $0x8] sm:$0xff]
        %v6822 = vld [vmem:[#allocation4 + $0x10] sm:$0xff]
        %v6823 = vld [vmem:[#allocation4 + $0x18] sm:$0xff]
        %v6824 = vld [vmem:[#allocation4 + $0x20] sm:$0xff]
        %v6825 = vld [vmem:[#allocation4 + $0x28] sm:$0xff]
        %v6826 = vld [vmem:[#allocation4 + $0x30] sm:$0xff]
        %v6827 = vld [vmem:[#allocation4 + $0x38] sm:$0xff]
        %v6828 = vld [vmem:[#allocation4 + $0x40] sm:$0xff]
        %v6829 = vld [vmem:[#allocation4 + $0x48] sm:$0xff]
        %v6830 = vld [vmem:[#allocation4 + $0x50] sm:$0xff]
        %v6831 = vld [vmem:[#allocation4 + $0x58] sm:$0xff]
        %v6832 = vld [vmem:[#allocation4 + $0x60] sm:$0xff]
        %v6833 = vld [vmem:[#allocation4 + $0x68] sm:$0xff]
        %v6834 = vld [vmem:[#allocation4 + $0x70] sm:$0xff]
        %v6835 = vld [vmem:[#allocation4 + $0x78] sm:$0xff]
        %v6836 = vld [vmem:[#allocation4 + $0x80] sm:$0xff]
        %v6837 = vld [vmem:[#allocation4 + $0x88] sm:$0xff]
        %v6838 = vld [vmem:[#allocation4 + $0x90] sm:$0xff]
        %v6839 = vld [vmem:[#allocation4 + $0x98] sm:$0xff]
        %v6840 = vld [vmem:[#allocation4 + $0xa0] sm:$0xff]
        %v6841 = vld [vmem:[#allocation4 + $0xa8] sm:$0xff]
        %v6842 = vld [vmem:[#allocation4 + $0xb0] sm:$0xff]
        %v6843 = vld [vmem:[#allocation4 + $0xb8] sm:$0xff]
        %v6844 = vld [vmem:[#allocation4 + $0xc0] sm:$0xff]
        %v6845 = vld [vmem:[#allocation4 + $0xc8] sm:$0xff]
        %v6846 = vld [vmem:[#allocation4 + $0xd0] sm:$0xff]
        %v6847 = vld [vmem:[#allocation4 + $0xd8] sm:$0xff]
        %v6848 = vld [vmem:[#allocation4 + $0xe0] sm:$0xff]
        %v6849 = vld [vmem:[#allocation4 + $0xe8] sm:$0xff]
        %v6850 = vld [vmem:[#allocation4 + $0xf0] sm:$0xff]
        %v6851 = vld [vmem:[#allocation4 + $0xf8] sm:$0xff]
        %v6852 = vld [vmem:[%s5] sm:$0xff]
        %v6853 = vld [vmem:[%s5 + $0x8] sm:$0xff]
        %v6854 = vld [vmem:[%s5 + $0x10] sm:$0xff]
        %v6855 = vld [vmem:[%s5 + $0x18] sm:$0xff]
        %v6856 = vld [vmem:[%s5 + $0x20] sm:$0xf]
        %v6857 = vld [vmem:[%s6] sm:$0x1]
        %v6859 = vlaneseq
        %v6860 = vshrl.u32 %v6859, 7
        %v6861 = vsub.s32 0, %v6860
        %v6862 = vrot.slane %v6857, %v6861
        %vm6864 = vcmask 293888
        %v6866 = vsel %vm6864, %v6820, 0
        %v6869 = vsel %vm6864, %v6821, 0
        %v6872 = vsel %vm6864, %v6822, 0
        %v6875 = vsel %vm6864, %v6823, 0
        %v6878 = vsel %vm6864, %v6824, 0
        %v6881 = vsel %vm6864, %v6825, 0
        %v6884 = vsel %vm6864, %v6826, 0
        %v6887 = vsel %vm6864, %v6827, 0
        %v6890 = vsel %vm6864, %v6828, 0
        %v6893 = vsel %vm6864, %v6829, 0
        %v6896 = vsel %vm6864, %v6830, 0
        %v6899 = vsel %vm6864, %v6831, 0
        %v6902 = vsel %vm6864, %v6832, 0
        %v6905 = vsel %vm6864, %v6833, 0
        %v6908 = vsel %vm6864, %v6834, 0
        %v6911 = vsel %vm6864, %v6835, 0
        %v6914 = vsel %vm6864, %v6836, 0
        %v6917 = vsel %vm6864, %v6837, 0
        %v6920 = vsel %vm6864, %v6838, 0
        %v6923 = vsel %vm6864, %v6839, 0
        %v6926 = vsel %vm6864, %v6840, 0
        %v6929 = vsel %vm6864, %v6841, 0
        %v6932 = vsel %vm6864, %v6842, 0
        %v6935 = vsel %vm6864, %v6843, 0
        %v6938 = vsel %vm6864, %v6844, 0
        %v6941 = vsel %vm6864, %v6845, 0
        %v6944 = vsel %vm6864, %v6846, 0
        %v6947 = vsel %vm6864, %v6847, 0
        %v6950 = vsel %vm6864, %v6848, 0
        %v6953 = vsel %vm6864, %v6849, 0
        %v6956 = vsel %vm6864, %v6850, 0
        %v6959 = vsel %vm6864, %v6851, 0
        %vm6961 = vcmask 1043456
        %v6963 = vsel %vm6961, %v6856, 0
        %6965 = vmatprep.subr.mxu0 0.0
        %6966 = vmatpush1.msra.mxu0 %v6852
        %6967 = vmatprep.subr.mxu0 0.0
        %6968 = vmatpush1.msra.mxu0 %v6853
        %6969 = vmatprep.subr.mxu0 0.0
        %6970 = vmatpush1.msra.mxu0 %v6854
        %6971 = vmatprep.subr.mxu0 0.0
        %6972 = vmatpush1.msra.mxu0 %v6855
        %6973 = vmatprep.subr.mxu0 0.0
        %6974 = vmatpush1.msra.mxu0 %v6963
        %6975 = vmatprep.subr.mxu0 0.0
        %6976 = vmatpush1.msra.mxu0 0.0
        %6977 = vmatprep.subr.mxu0 0.0
        %6978 = vmatpush1.msra.mxu0 0.0
        %6979 = vmatprep.subr.mxu0 0.0
        %6980 = vmatpush1.msra.mxu0 0.0
        %6981 = vmatprep.subr.mxu0 0.0
        %6982 = vmatpush1.msra.mxu0 0.0
        %6983 = vmatprep.subr.mxu0 0.0
        %6984 = vmatpush1.msra.mxu0 0.0
        %6985 = vmatprep.subr.mxu0 0.0
        %6986 = vmatpush1.msra.mxu0 0.0
        %6987 = vmatprep.subr.mxu0 0.0
        %6988 = vmatpush1.msra.mxu0 0.0
        %6989 = vmatprep.subr.mxu0 0.0
        %6990 = vmatpush1.msra.mxu0 0.0
        %6991 = vmatprep.subr.mxu0 0.0
        %6992 = vmatpush1.msra.mxu0 0.0
        %6993 = vmatprep.subr.mxu0 0.0
        %6994 = vmatpush1.msra.mxu0 0.0
        %6995 = vmatprep.subr.mxu0 0.0
        %6996 = vmatpush1.msra.mxu0 0.0
        %6997 = vmatprep.subr.mxu0 0.0
        %6998 = vmatpush1.msra.mxu0 0.0
        %6999 = vmatprep.subr.mxu0 0.0
        %7000 = vmatpush1.msra.mxu0 0.0
        %7001 = vmatprep.subr.mxu0 0.0
        %7002 = vmatpush1.msra.mxu0 0.0
        %7003 = vmatprep.subr.mxu0 0.0
        %7004 = vmatpush1.msra.mxu0 0.0
        %7005 = vmatprep.subr.mxu0 0.0
        %7006 = vmatpush1.msra.mxu0 0.0
        %7007 = vmatprep.subr.mxu0 0.0
        %7008 = vmatpush1.msra.mxu0 0.0
        %7009 = vmatprep.subr.mxu0 0.0
        %7010 = vmatpush1.msra.mxu0 0.0
        %7011 = vmatprep.subr.mxu0 0.0
        %7012 = vmatpush1.msra.mxu0 0.0
        %7013 = vmatprep.subr.mxu0 0.0
        %7014 = vmatpush1.msra.mxu0 0.0
        %7015 = vmatprep.subr.mxu0 0.0
        %7016 = vmatpush1.msra.mxu0 0.0
        %7017 = vmatprep.subr.mxu0 0.0
        %7018 = vmatpush1.msra.mxu0 0.0
        %7019 = vmatprep.subr.mxu0 0.0
        %7020 = vmatpush1.msra.mxu0 0.0
        %7021 = vmatprep.subr.mxu0 0.0
        %7022 = vmatpush1.msra.mxu0 0.0
        %7023 = vmatprep.subr.mxu0 0.0
        %7024 = vmatpush1.msra.mxu0 0.0
        %7025 = vmatprep.subr.mxu0 0.0
        %7026 = vmatpush1.msra.mxu0 0.0
        %7027 = vmatprep.subr.mxu0 0.0
        %7028 = vmatpush1.msra.mxu0 0.0
        %7029 = vmatprep.mubr.f32.mxu0 0.0
        %7030 = vmatmul.mubr.f32.gmra.mrb[0].mxu0 %v6866
        %v7031 = vpop.f32.mrb[0].mxu0
        %v7032 = vadd.f32 %v6862, %v7031
        %v7033 = vpop.f32.mrb[0].mxu0
        %7034 = vmatprep.mubr.f32.mxu0 0.0
        %7035 = vmatmul.mubr.f32.gmra.mrb[0].mxu0 %v6869
        %v7036 = vpop.f32.mrb[0].mxu0
        %v7037 = vadd.f32 %v6862, %v7036
        %v7038 = vpop.f32.mrb[0].mxu0
        %7039 = vmatprep.mubr.f32.mxu0 0.0
        %7040 = vmatmul.mubr.f32.gmra.mrb[0].mxu0 %v6872
        %v7041 = vpop.f32.mrb[0].mxu0
        %v7042 = vadd.f32 %v6862, %v7041
        %v7043 = vpop.f32.mrb[0].mxu0
        %7044 = vmatprep.mubr.f32.mxu0 0.0
        %7045 = vmatmul.mubr.f32.gmra.mrb[0].mxu0 %v6875
        %v7046 = vpop.f32.mrb[0].mxu0
        %v7047 = vadd.f32 %v6862, %v7046
        %v7048 = vpop.f32.mrb[0].mxu0
        %7049 = vmatprep.mubr.f32.mxu0 0.0
        %7050 = vmatmul.mubr.f32.gmra.mrb[0].mxu0 %v6878
        %v7051 = vpop.f32.mrb[0].mxu0
        %v7052 = vadd.f32 %v6862, %v7051
        %v7053 = vpop.f32.mrb[0].mxu0
        %7054 = vmatprep.mubr.f32.mxu0 0.0
        %7055 = vmatmul.mubr.f32.gmra.mrb[0].mxu0 %v6881
        %v7056 = vpop.f32.mrb[0].mxu0
        %v7057 = vadd.f32 %v6862, %v7056
        %v7058 = vpop.f32.mrb[0].mxu0
        %7059 = vmatprep.mubr.f32.mxu0 0.0
        %7060 = vmatmul.mubr.f32.gmra.mrb[0].mxu0 %v6884
        %v7061 = vpop.f32.mrb[0].mxu0
        %v7062 = vadd.f32 %v6862, %v7061
        %v7063 = vpop.f32.mrb[0].mxu0
        %7064 = vmatprep.mubr.f32.mxu0 0.0
        %7065 = vmatmul.mubr.f32.gmra.mrb[0].mxu0 %v6887
        %v7066 = vpop.f32.mrb[0].mxu0
        %v7067 = vadd.f32 %v6862, %v7066
        %v7068 = vpop.f32.mrb[0].mxu0
        %7069 = vmatprep.mubr.f32.mxu0 0.0
        %7070 = vmatmul.mubr.f32.gmra.mrb[0].mxu0 %v6890
        %v7071 = vpop.f32.mrb[0].mxu0
        %v7072 = vadd.f32 %v6862, %v7071
        %v7073 = vpop.f32.mrb[0].mxu0
        %7074 = vmatprep.mubr.f32.mxu0 0.0
        %7075 = vmatmul.mubr.f32.gmra.mrb[0].mxu0 %v6893
        %v7076 = vpop.f32.mrb[0].mxu0
        %v7077 = vadd.f32 %v6862, %v7076
        %v7078 = vpop.f32.mrb[0].mxu0
        %7079 = vmatprep.mubr.f32.mxu0 0.0
        %7080 = vmatmul.mubr.f32.gmra.mrb[0].mxu0 %v6896
        %v7081 = vpop.f32.mrb[0].mxu0
        %v7082 = vadd.f32 %v6862, %v7081
        %v7083 = vpop.f32.mrb[0].mxu0
        %7084 = vmatprep.mubr.f32.mxu0 0.0
        %7085 = vmatmul.mubr.f32.gmra.mrb[0].mxu0 %v6899
        %v7086 = vpop.f32.mrb[0].mxu0
        %v7087 = vadd.f32 %v6862, %v7086
        %v7088 = vpop.f32.mrb[0].mxu0
        %7089 = vmatprep.mubr.f32.mxu0 0.0
        %7090 = vmatmul.mubr.f32.gmra.mrb[0].mxu0 %v6902
        %v7091 = vpop.f32.mrb[0].mxu0
        %v7092 = vadd.f32 %v6862, %v7091
        %v7093 = vpop.f32.mrb[0].mxu0
        %7094 = vmatprep.mubr.f32.mxu0 0.0
        %7095 = vmatmul.mubr.f32.gmra.mrb[0].mxu0 %v6905
        %v7096 = vpop.f32.mrb[0].mxu0
        %v7097 = vadd.f32 %v6862, %v7096
        %v7098 = vpop.f32.mrb[0].mxu0
        %7099 = vmatprep.mubr.f32.mxu0 0.0
        %7100 = vmatmul.mubr.f32.gmra.mrb[0].mxu0 %v6908
        %v7101 = vpop.f32.mrb[0].mxu0
        %v7102 = vadd.f32 %v6862, %v7101
        %v7103 = vpop.f32.mrb[0].mxu0
        %7104 = vmatprep.mubr.f32.mxu0 0.0
        %7105 = vmatmul.mubr.f32.gmra.mrb[0].mxu0 %v6911
        %v7106 = vpop.f32.mrb[0].mxu0
        %v7107 = vadd.f32 %v6862, %v7106
        %v7108 = vpop.f32.mrb[0].mxu0
        %7109 = vmatprep.mubr.f32.mxu0 0.0
        %7110 = vmatmul.mubr.f32.gmra.mrb[0].mxu0 %v6914
        %v7111 = vpop.f32.mrb[0].mxu0
        %v7112 = vadd.f32 %v6862, %v7111
        %v7113 = vpop.f32.mrb[0].mxu0
        %7114 = vmatprep.mubr.f32.mxu0 0.0
        %7115 = vmatmul.mubr.f32.gmra.mrb[0].mxu0 %v6917
        %v7116 = vpop.f32.mrb[0].mxu0
        %v7117 = vadd.f32 %v6862, %v7116
        %v7118 = vpop.f32.mrb[0].mxu0
        %7119 = vmatprep.mubr.f32.mxu0 0.0
        %7120 = vmatmul.mubr.f32.gmra.mrb[0].mxu0 %v6920
        %v7121 = vpop.f32.mrb[0].mxu0
        %v7122 = vadd.f32 %v6862, %v7121
        %v7123 = vpop.f32.mrb[0].mxu0
        %7124 = vmatprep.mubr.f32.mxu0 0.0
        %7125 = vmatmul.mubr.f32.gmra.mrb[0].mxu0 %v6923
        %v7126 = vpop.f32.mrb[0].mxu0
        %v7127 = vadd.f32 %v6862, %v7126
        %v7128 = vpop.f32.mrb[0].mxu0
        %7129 = vmatprep.mubr.f32.mxu0 0.0
        %7130 = vmatmul.mubr.f32.gmra.mrb[0].mxu0 %v6926
        %v7131 = vpop.f32.mrb[0].mxu0
        %v7132 = vadd.f32 %v6862, %v7131
        %v7133 = vpop.f32.mrb[0].mxu0
        %7134 = vmatprep.mubr.f32.mxu0 0.0
        %7135 = vmatmul.mubr.f32.gmra.mrb[0].mxu0 %v6929
        %v7136 = vpop.f32.mrb[0].mxu0
        %v7137 = vadd.f32 %v6862, %v7136
        %v7138 = vpop.f32.mrb[0].mxu0
        %7139 = vmatprep.mubr.f32.mxu0 0.0
        %7140 = vmatmul.mubr.f32.gmra.mrb[0].mxu0 %v6932
        %v7141 = vpop.f32.mrb[0].mxu0
        %v7142 = vadd.f32 %v6862, %v7141
        %v7143 = vpop.f32.mrb[0].mxu0
        %7144 = vmatprep.mubr.f32.mxu0 0.0
        %7145 = vmatmul.mubr.f32.gmra.mrb[0].mxu0 %v6935
        %v7146 = vpop.f32.mrb[0].mxu0
        %v7147 = vadd.f32 %v6862, %v7146
        %v7148 = vpop.f32.mrb[0].mxu0
        %7149 = vmatprep.mubr.f32.mxu0 0.0
        %7150 = vmatmul.mubr.f32.gmra.mrb[0].mxu0 %v6938
        %v7151 = vpop.f32.mrb[0].mxu0
        %v7152 = vadd.f32 %v6862, %v7151
        %v7153 = vpop.f32.mrb[0].mxu0
        %7154 = vmatprep.mubr.f32.mxu0 0.0
        %7155 = vmatmul.mubr.f32.gmra.mrb[0].mxu0 %v6941
        %v7156 = vpop.f32.mrb[0].mxu0
        %v7157 = vadd.f32 %v6862, %v7156
        %v7158 = vpop.f32.mrb[0].mxu0
        %7159 = vmatprep.mubr.f32.mxu0 0.0
        %7160 = vmatmul.mubr.f32.gmra.mrb[0].mxu0 %v6944
        %v7161 = vpop.f32.mrb[0].mxu0
        %v7162 = vadd.f32 %v6862, %v7161
        %v7163 = vpop.f32.mrb[0].mxu0
        %7164 = vmatprep.mubr.f32.mxu0 0.0
        %7165 = vmatmul.mubr.f32.gmra.mrb[0].mxu0 %v6947
        %v7166 = vpop.f32.mrb[0].mxu0
        %v7167 = vadd.f32 %v6862, %v7166
        %v7168 = vpop.f32.mrb[0].mxu0
        %7169 = vmatprep.mubr.f32.mxu0 0.0
        %7170 = vmatmul.mubr.f32.gmra.mrb[0].mxu0 %v6950
        %v7171 = vpop.f32.mrb[0].mxu0
        %v7172 = vadd.f32 %v6862, %v7171
        %v7173 = vpop.f32.mrb[0].mxu0
        %7174 = vmatprep.mubr.f32.mxu0 0.0
        %7175 = vmatmul.mubr.f32.gmra.mrb[0].mxu0 %v6953
        %v7176 = vpop.f32.mrb[0].mxu0
        %v7177 = vadd.f32 %v6862, %v7176
        %v7178 = vpop.f32.mrb[0].mxu0
        %7179 = vmatprep.mubr.f32.mxu0 0.0
        %7180 = vmatmul.mubr.f32.gmra.mrb[0].mxu0 %v6956
        %v7181 = vpop.f32.mrb[0].mxu0
        %v7182 = vadd.f32 %v6862, %v7181
        %v7183 = vpop.f32.mrb[0].mxu0
        %7184 = vmatprep.mubr.f32.mxu0 0.0
        %7185 = vmatmul.mubr.f32.gmra.mrb[0].mxu0 %v6959
        %v7186 = vpop.f32.mrb[0].mxu0
        %v7187 = vadd.f32 %v6862, %v7186
        %v7188 = vpop.f32.mrb[0].mxu0
        %7189 = vdwg.mxu0
        %7190 = vst.msk [vmem:[%s325] sm:$0xff] %vm4001, %v7032
        %7191 = vst.msk [vmem:[%s325 + $0x8] sm:$0xff] %vm4001, %v7037
        %7192 = vst.msk [vmem:[%s325 + $0x10] sm:$0xff] %vm4001, %v7042
        %7193 = vst.msk [vmem:[%s325 + $0x18] sm:$0xff] %vm4001, %v7047
        %7194 = vst.msk [vmem:[%s325 + $0x20] sm:$0xff] %vm4001, %v7052
        %7195 = vst.msk [vmem:[%s325 + $0x28] sm:$0xff] %vm4001, %v7057
        %7196 = vst.msk [vmem:[%s325 + $0x30] sm:$0xff] %vm4001, %v7062
        %7197 = vst.msk [vmem:[%s325 + $0x38] sm:$0xff] %vm4001, %v7067
        %7198 = vst.msk [vmem:[%s325 + $0x40] sm:$0xff] %vm4001, %v7072
        %7199 = vst.msk [vmem:[%s325 + $0x48] sm:$0xff] %vm4001, %v7077
        %7200 = vst.msk [vmem:[%s325 + $0x50] sm:$0xff] %vm4001, %v7082
        %7201 = vst.msk [vmem:[%s325 + $0x58] sm:$0xff] %vm4001, %v7087
        %7202 = vst.msk [vmem:[%s325 + $0x60] sm:$0xff] %vm4001, %v7092
        %7203 = vst.msk [vmem:[%s325 + $0x68] sm:$0xff] %vm4001, %v7097
        %7204 = vst.msk [vmem:[%s325 + $0x70] sm:$0xff] %vm4001, %v7102
        %7205 = vst.msk [vmem:[%s325 + $0x78] sm:$0xff] %vm4001, %v7107
        %7206 = vst.msk [vmem:[%s325 + $0x80] sm:$0xff] %vm4001, %v7112
        %7207 = vst.msk [vmem:[%s325 + $0x88] sm:$0xff] %vm4001, %v7117
        %7208 = vst.msk [vmem:[%s325 + $0x90] sm:$0xff] %vm4001, %v7122
        %7209 = vst.msk [vmem:[%s325 + $0x98] sm:$0xff] %vm4001, %v7127
        %7210 = vst.msk [vmem:[%s325 + $0xa0] sm:$0xff] %vm4001, %v7132
        %7211 = vst.msk [vmem:[%s325 + $0xa8] sm:$0xff] %vm4001, %v7137
        %7212 = vst.msk [vmem:[%s325 + $0xb0] sm:$0xff] %vm4001, %v7142
        %7213 = vst.msk [vmem:[%s325 + $0xb8] sm:$0xff] %vm4001, %v7147
        %7214 = vst.msk [vmem:[%s325 + $0xc0] sm:$0xff] %vm4001, %v7152
        %7215 = vst.msk [vmem:[%s325 + $0xc8] sm:$0xff] %vm4001, %v7157
        %7216 = vst.msk [vmem:[%s325 + $0xd0] sm:$0xff] %vm4001, %v7162
        %7217 = vst.msk [vmem:[%s325 + $0xd8] sm:$0xff] %vm4001, %v7167
        %7218 = vst.msk [vmem:[%s325 + $0xe0] sm:$0xff] %vm4001, %v7172
        %7219 = vst.msk [vmem:[%s325 + $0xe8] sm:$0xff] %vm4001, %v7177
        %7220 = vst.msk [vmem:[%s325 + $0xf0] sm:$0xff] %vm4001, %v7182
        %7221 = vst.msk [vmem:[%s325 + $0xf8] sm:$0xff] %vm4001, %v7187
      $region56: #{tpu_custom_call.1} parent=47 // pred_fallthru
        _
      %p7222 = scmp.lt.s32.totalorder %s23, 1
      %s7223 = scalar_select %p7222, %s23, 1
      %s7224 = smul.addr %s7223, 32
      %s7225 = smul.addr %s7224, 8
      %s7226 = scalar_lea.vmem %s7, %s7225
      // Predicated region
      $region57: #{tpu_custom_call.1} parent=47 // pred_check
        %p7227 = pneg %p208
      $region58: #{tpu_custom_call.1} parent=47 // pred_check_branch
        %7229 = sbr.rel (%p7227) target = $region60
      $region59: #{tpu_custom_call.1} parent=47 // pred_region
        _
      $region60: #{tpu_custom_call.1} parent=47 // pred_fallthru
        _
    $region48: #{tpu_custom_call.1} parent=5 // pred_fallthru
      _
    %p7230 = scmp.le.s32.totalorder 2, %s14
    // Predicated region
    $region61: #{tpu_custom_call.1} parent=5 // pred_check
      %p7231 = pneg %p7230
    $region62: #{tpu_custom_call.1} parent=5 // pred_check_branch
      %7233 = sbr.rel (%p7231) target = $region64
    $region63: #{tpu_custom_call.1} parent=5 // pred_region
      %s7234 = ssub.s32 %s14, 2
      // Predicated region
      $region65: #{tpu_custom_call.1} parent=63 // pred_check
        %p7235 = pneg %p214
      $region66: #{tpu_custom_call.1} parent=63 // pred_check_branch
        %7237 = sbr.rel (%p7235) target = $region68
      $region67: #{tpu_custom_call.1} parent=63 // pred_region
        %p7238 = scmp.lt.s32.totalorder %s25, 1
        %s7239 = scalar_select %p7238, %s25, 1
        %s7240 = smul.addr %s7239, 32
        %s7241 = smul.addr %s7240, 8
        %s7242 = scalar_lea.vmem %s7, %s7241
      $region68: #{tpu_custom_call.1} parent=63 // pred_fallthru
        _
    $region64: #{tpu_custom_call.1} parent=5 // pred_fallthru
      _
  $region6: #{tpu_custom_call.1} parent=0 // loop_footer
    %s18 = sadd.s32 1, %s14
  $region7: #{tpu_custom_call.1} parent=0 // loop_footer_branch
    %13 = sbr.rel target = $region3
  $region8: #{tpu_custom_call.1} parent=0 // loop_exit
    _

</llo_original>
